<compile_context>
chip_gen: v7x
topology: tpu7x:2x2x1
jax: 0.10.0
libtpu: 0.0.40
codegen_flags: <defaults>
</compile_context>

<pallas_src>
import functools
import math

import jax
import jax.numpy as jnp
from jax.experimental import pallas as pl
from jax.experimental.pallas import tpu as pltpu


def _layernorm(x, gamma, beta, eps=1e-5):
    # One-pass mean / variance (single pair of cross-lane reductions).
    m = jnp.mean(x, axis=-1, keepdims=True)
    ms = jnp.mean(x * x, axis=-1, keepdims=True)
    var = jnp.maximum(ms - m * m, 0.0)
    return (x - m) * jax.lax.rsqrt(var + eps) * gamma + beta


def _padded_block_bytes(shape, dtype):
    itemsize = jnp.dtype(dtype).itemsize
    if len(shape) == 1:
        return (-(-int(shape[0]) // 128) * 128) * itemsize
    lead = 1
    for d in shape[:-2]:
        lead *= int(d)
    sub = -(-int(shape[-2]) // 8) * 8
    lane = -(-int(shape[-1]) // 128) * 128
    return lead * sub * lane * itemsize


def decoder_kernel(
    latq_ref, latkv_ref, enc_ref,
    wq1_ref, bq1_ref, wkv1_ref, bkv1_ref, wo1_ref, bo1_ref, g1_ref, be1_ref,
    wq2_ref, bq2_ref, wkv2_ref, bkv2_ref, wo2_ref, bo2_ref, g2_ref, be2_ref,
    wfi_ref, bfi_ref, wfo_ref, bfo_ref, g3_ref, be3_ref,
    out_ref, *, heads):
    f32 = jnp.float32
    bf16 = jnp.bfloat16

    xq = latq_ref[0]                      # (TQ, D) f32 — query tile / residual path
    tq, d = xq.shape
    hd = d // heads
    scale = 1.0 / math.sqrt(hd)

    x_kv = latkv_ref[0]                   # (S_dec, D) bf16 — self-attn K/V source
    enc = enc_ref[0]                      # (S_enc, D) bf16 — cross-attn K/V source

    def mha(q_in, kv_in_bf, wq_ref, bq_ref, wkv_ref, bkv_ref, wo_ref, bo_ref):
        # Q projection from the (tiled) query activations; weights pre-transposed (D,D).
        q = jnp.dot(q_in.astype(bf16), wq_ref[...],
                    preferred_element_type=f32) + bq_ref[...]
        q = q * scale                                               # (TQ, D) f32
        # Fused K/V projection: one (S,D)x(D,2D) matmul.
        kv = jnp.dot(kv_in_bf, wkv_ref[...],
                     preferred_element_type=f32) + bkv_ref[...]     # (S, 2D) f32
        k = kv[:, :d]
        v = kv[:, d:]
        kt = k.T                                                    # (D, S), one transpose total
        # Per-head attention; heads are merged via the out-projection accumulation:
        #   concat_h(ctx_h) @ Wo^T == sum_h ctx_h @ Wo^T[h*hd:(h+1)*hd, :]
        # (wo_ref is pre-split (heads, hd, D) in the wrapper -> no lane concatenate).
        acc = jnp.zeros((tq, d), f32)
        for h in range(heads):
            sl = slice(h * hd, (h + 1) * hd)
            s = jnp.dot(q[:, sl].astype(bf16), kt[sl, :].astype(bf16),
                        preferred_element_type=f32)                 # (TQ, S)
            s = s - jnp.max(s, axis=-1, keepdims=True)
            p = jnp.exp(s)
            denom = jnp.sum(p, axis=-1, keepdims=True)
            inv = pl.reciprocal(denom, approx=True)                 # EUP slot
            inv = inv * (2.0 - denom * inv)                         # Newton step -> ~f32 accurate
            p = (p * inv).astype(bf16)
            ctx = jnp.dot(p, v[:, sl].astype(bf16),
                          preferred_element_type=f32)               # (TQ, hd)
            acc = acc + jnp.dot(ctx.astype(bf16), wo_ref[h],
                                preferred_element_type=f32)
        return acc + bo_ref[...]

    # 1) self-attention ("masked_multihead"; the torch forward applies no mask).
    attn1 = mha(xq, x_kv, wq1_ref, bq1_ref, wkv1_ref, bkv1_ref, wo1_ref, bo1_ref)
    x1 = _layernorm(attn1 + xq, g1_ref[...], be1_ref[...])

    # 2) cross-attention over the encoder memory.
    attn2 = mha(x1, enc, wq2_ref, bq2_ref, wkv2_ref, bkv2_ref, wo2_ref, bo2_ref)
    x2 = _layernorm(attn2 + x1, g2_ref[...], be2_ref[...])

    # 3) PWFF: Linear -> tanh -> Linear.
    hmid = jnp.tanh(jnp.dot(x2.astype(bf16), wfi_ref[...],
                            preferred_element_type=f32) + bfi_ref[...])
    ff = jnp.dot(hmid.astype(bf16), wfo_ref[...],
                 preferred_element_type=f32) + bfo_ref[...]
    x3 = _layernorm(ff + x2, g3_ref[...], be3_ref[...])

    out_ref[0] = x3.astype(out_ref.dtype)


def transformer_decoder(latents, encoding, unpadded_len, params, *, heads, block_q=128):
    # `unpadded_len` mirrors the torch forward signature; torch never uses it (no mask).
    del unpadded_len
    B, S_dec, D = latents.shape
    Be, S_enc, De = encoding.shape
    assert Be == B and De == D and D % heads == 0
    hd = D // heads
    F = params["ff"]["in_w"].shape[0]

    block_q = min(block_q, S_dec)
    if S_dec % block_q != 0:
        block_q = S_dec  # TODO(synk): pad S_dec in the wrapper for ragged production shapes.
    nq = S_dec // block_q

    f32, bf16 = jnp.float32, jnp.bfloat16

    # ---- Pre-transpose / pre-split / bf16-cast all weights once (XLA side, not per grid step).
    def prep_attn(p):
        wq_t = jnp.transpose(p["in_w"][:D]).astype(bf16)            # (D, D)   = Wq^T
        wkv_t = jnp.transpose(p["in_w"][D:]).astype(bf16)           # (D, 2D)  = [Wk^T | Wv^T]
        bq = p["in_b"][:D].reshape(1, D).astype(f32)
        bkv = p["in_b"][D:].reshape(1, 2 * D).astype(f32)
        wo_h = jnp.transpose(p["out_w"]).reshape(heads, hd, D).astype(bf16)  # per-head rows of Wo^T
        bo = p["out_b"].reshape(1, D).astype(f32)
        return wq_t, bq, wkv_t, bkv, wo_h, bo

    wq1, bq1, wkv1, bkv1, wo1, bo1 = prep_attn(params["self_attn"])
    wq2, bq2, wkv2, bkv2, wo2, bo2 = prep_attn(params["cross_attn"])
    wfi = jnp.transpose(params["ff"]["in_w"]).astype(bf16)          # (D, F)
    bfi = params["ff"]["in_b"].reshape(1, F).astype(f32)
    wfo = jnp.transpose(params["ff"]["out_w"]).astype(bf16)         # (F, D)
    bfo = params["ff"]["out_b"].reshape(1, D).astype(f32)
    g1 = params["self_norm"]["g"].reshape(1, D).astype(f32)
    be1 = params["self_norm"]["b"].reshape(1, D).astype(f32)
    g2 = params["cross_norm"]["g"].reshape(1, D).astype(f32)
    be2 = params["cross_norm"]["b"].reshape(1, D).astype(f32)
    g3 = params["ff_norm"]["g"].reshape(1, D).astype(f32)
    be3 = params["ff_norm"]["b"].reshape(1, D).astype(f32)

    lat_kv = latents.astype(bf16)    # matmul-only K/V source (residual path stays f32)
    enc_bf = encoding.astype(bf16)   # matmul-only K/V source

    def full(arr):
        nd = arr.ndim
        return (arr, arr.shape, lambda b, qi, _nd=nd: (0,) * _nd)

    entries = [
        (latents, (1, block_q, D), lambda b, qi: (b, qi, 0)),       # Q tile (f32)
        (lat_kv, (1, S_dec, D), lambda b, qi: (b, 0, 0)),           # full self-attn K/V (bf16)
        (enc_bf, (1, S_enc, D), lambda b, qi: (b, 0, 0)),           # full cross-attn K/V (bf16)
        full(wq1), full(bq1), full(wkv1), full(bkv1), full(wo1), full(bo1), full(g1), full(be1),
        full(wq2), full(bq2), full(wkv2), full(bkv2), full(wo2), full(bo2), full(g2), full(be2),
        full(wfi), full(bfi), full(wfo), full(bfo), full(g3), full(be3),
    ]
    args = [e[0] for e in entries]
    in_specs = [pl.BlockSpec(e[1], e[2]) for e in entries]

    # Explicit VMEM budget: resident blocks x2 (double buffering) + headroom,
    # floored/capped so it is safe across v5e/v6e (128 MiB) and v7x (64 MiB).
    est = sum(_padded_block_bytes(e[1], e[0].dtype) for e in entries)
    est += _padded_block_bytes((1, block_q, D), f32)
    vmem_limit = int(min(max(2 * est + (8 << 20), 32 << 20), 64 << 20))

    grid_spec = pltpu.PrefetchScalarGridSpec(
        num_scalar_prefetch=0,
        grid=(B, nq),
        in_specs=in_specs,
        out_specs=pl.BlockSpec((1, block_q, D), lambda b, qi: (b, qi, 0)),
    )

    kernel = functools.partial(decoder_kernel, heads=heads)
    return pl.pallas_call(
        kernel,
        out_shape=jax.ShapeDtypeStruct((B, S_dec, D), f32),
        grid_spec=grid_spec,
        compiler_params=pltpu.CompilerParams(
            dimension_semantics=("parallel", "parallel"),
            vmem_limit_bytes=vmem_limit,
        ),
    )(*args)


def reference_decoder(latents, encoding, params, *, heads, mm_dtype=jnp.float32):
    """Pure-JAX reference of the torch forward.  mm_dtype selects matmul-operand precision
    (f32 == exact torch math; bf16 mirrors the kernel's mixed-precision matmuls)."""
    B, Sq, D = latents.shape
    hd = D // heads
    scale = 1.0 / math.sqrt(hd)
    c = lambda a: a.astype(mm_dtype)

    def mha(q_in, kv_in, p):
        sq, sk = q_in.shape[1], kv_in.shape[1]
        wq, wk, wv = p["in_w"][:D], p["in_w"][D:2 * D], p["in_w"][2 * D:]
        bq, bk, bv = p["in_b"][:D], p["in_b"][D:2 * D], p["in_b"][2 * D:]
        q = jnp.einsum("bsd,ed->bse", c(q_in), c(wq), preferred_element_type=jnp.float32) + bq
        k = jnp.einsum("bsd,ed->bse", c(kv_in), c(wk), preferred_element_type=jnp.float32) + bk
        v = jnp.einsum("bsd,ed->bse", c(kv_in), c(wv), preferred_element_type=jnp.float32) + bv
        q = (q * scale).reshape(B, sq, heads, hd).transpose(0, 2, 1, 3)
        k = k.reshape(B, sk, heads, hd).transpose(0, 2, 1, 3)
        v = v.reshape(B, sk, heads, hd).transpose(0, 2, 1, 3)
        s = jnp.einsum("bhqe,bhke->bhqk", c(q), c(k), preferred_element_type=jnp.float32)
        pr = jax.nn.softmax(s, axis=-1)
        ctx = jnp.einsum("bhqk,bhke->bhqe", c(pr), c(v), preferred_element_type=jnp.float32)
        ctx = ctx.transpose(0, 2, 1, 3).reshape(B, sq, D)
        return jnp.einsum("bsd,ed->bse", c(ctx), c(p["out_w"]),
                          preferred_element_type=jnp.float32) + p["out_b"]

    x1 = _layernorm(mha(latents, latents, params["self_attn"]) + latents,
                    params["self_norm"]["g"], params["self_norm"]["b"])
    x2 = _layernorm(mha(x1, encoding, params["cross_attn"]) + x1,
                    params["cross_norm"]["g"], params["cross_norm"]["b"])
    h = jnp.tanh(jnp.einsum("bsd,fd->bsf", c(x2), c(params["ff"]["in_w"]),
                            preferred_element_type=jnp.float32) + params["ff"]["in_b"])
    ff = jnp.einsum("bsf,df->bsd", c(h), c(params["ff"]["out_w"]),
                    preferred_element_type=jnp.float32) + params["ff"]["out_b"]
    return _layernorm(ff + x2, params["ff_norm"]["g"], params["ff_norm"]["b"])


def init_params(key, dims, ff_width):
    ks = jax.random.split(key, 16)

    def u(k, shape, fan_in):
        b = 1.0 / math.sqrt(fan_in)
        return jax.random.uniform(k, shape, jnp.float32, -b, b)

    def mha_params(k):
        kk = jax.random.split(k, 4)
        return {"in_w": u(kk[0], (3 * dims, dims), dims),
                "in_b": u(kk[1], (3 * dims,), dims),
                "out_w": u(kk[2], (dims, dims), dims),
                "out_b": u(kk[3], (dims,), dims)}

    def ln_params(k):
        kk = jax.random.split(k, 2)
        return {"g": 1.0 + 0.1 * jax.random.normal(kk[0], (dims,), jnp.float32),
                "b": 0.1 * jax.random.normal(kk[1], (dims,), jnp.float32)}

    return {
        "self_attn": mha_params(ks[0]),
        "self_norm": ln_params(ks[1]),
        "cross_attn": mha_params(ks[2]),
        "cross_norm": ln_params(ks[3]),
        "ff": {"in_w": u(ks[4], (ff_width, dims), dims),
               "in_b": u(ks[5], (ff_width,), dims),
               "out_w": u(ks[6], (dims, ff_width), ff_width),
               "out_b": u(ks[7], (dims,), ff_width)},
        "ff_norm": ln_params(ks[8]),
    }


if __name__ == "__main__":
    B, S_DEC, S_ENC, D, FF, H = 2, 8, 16, 32, 64, 4
    key = jax.random.PRNGKey(0)
    k_lat, k_enc, k_par = jax.random.split(key, 3)
    latents = jax.random.normal(k_lat, (B, S_DEC, D), jnp.float32)
    encoding = jax.random.normal(k_enc, (B, S_ENC, D), jnp.float32)
    unpadded_len = jnp.full((B,), S_DEC, jnp.int32)   # unused by the torch forward
    params = init_params(k_par, D, FF)

    out = transformer_decoder(latents, encoding, unpadded_len, params, heads=H)
    out = jax.block_until_ready(out)
    assert out.shape == (B, S_DEC, D)

    ref_mixed = reference_decoder(latents, encoding, params, heads=H, mm_dtype=jnp.bfloat16)
    ref_f32 = reference_decoder(latents, encoding, params, heads=H, mm_dtype=jnp.float32)
    err_mixed = float(jnp.max(jnp.abs(out - ref_mixed)))
    err_f32 = float(jnp.max(jnp.abs(out - ref_f32)))
    assert err_mixed < 2e-3, f"mixed-precision reference mismatch: {err_mixed}"
    assert err_f32 < 1e-1, f"f32 reference mismatch: {err_f32}"
    print("KERNEL_OK")
</pallas_src>

<mosaic_0001>
module attributes {stable_mosaic.version = 11 : i64} {
  func.func @decoder_kernel(%arg0: i32, %arg1: i32, %arg2: memref<1x8x32xf32, #tpu.memory_space<vmem>>, %arg3: memref<1x8x32xbf16, #tpu.memory_space<vmem>>, %arg4: memref<1x16x32xbf16, #tpu.memory_space<vmem>>, %arg5: memref<32x32xbf16, #tpu.memory_space<vmem>>, %arg6: memref<1x32xf32, #tpu.memory_space<vmem>>, %arg7: memref<32x64xbf16, #tpu.memory_space<vmem>>, %arg8: memref<1x64xf32, #tpu.memory_space<vmem>>, %arg9: memref<4x8x32xbf16, #tpu.memory_space<vmem>>, %arg10: memref<1x32xf32, #tpu.memory_space<vmem>>, %arg11: memref<1x32xf32, #tpu.memory_space<vmem>>, %arg12: memref<1x32xf32, #tpu.memory_space<vmem>>, %arg13: memref<32x32xbf16, #tpu.memory_space<vmem>>, %arg14: memref<1x32xf32, #tpu.memory_space<vmem>>, %arg15: memref<32x64xbf16, #tpu.memory_space<vmem>>, %arg16: memref<1x64xf32, #tpu.memory_space<vmem>>, %arg17: memref<4x8x32xbf16, #tpu.memory_space<vmem>>, %arg18: memref<1x32xf32, #tpu.memory_space<vmem>>, %arg19: memref<1x32xf32, #tpu.memory_space<vmem>>, %arg20: memref<1x32xf32, #tpu.memory_space<vmem>>, %arg21: memref<32x64xbf16, #tpu.memory_space<vmem>>, %arg22: memref<1x64xf32, #tpu.memory_space<vmem>>, %arg23: memref<64x32xbf16, #tpu.memory_space<vmem>>, %arg24: memref<1x32xf32, #tpu.memory_space<vmem>>, %arg25: memref<1x32xf32, #tpu.memory_space<vmem>>, %arg26: memref<1x32xf32, #tpu.memory_space<vmem>>, %arg27: memref<1x8x32xf32, #tpu.memory_space<vmem>>) attributes {dimension_semantics = [#tpu.dimension_semantics<parallel>, #tpu.dimension_semantics<parallel>], iteration_bounds = array<i64: 2, 1>, scalar_prefetch = 0 : i64, scratch_operands = 0 : i64, tpu.core_type = #tpu.core_type<tc>, window_params = [{transform_indices = @transform_0, window_bounds = array<i64: 1, 8, 32>}, {transform_indices = @transform_1, window_bounds = array<i64: 1, 8, 32>}, {transform_indices = @transform_2, window_bounds = array<i64: 1, 16, 32>}, {pipeline_mode = #tpu.pipeline_mode<synchronous>, transform_indices = @transform_3, window_bounds = array<i64: 32, 32>}, {pipeline_mode = #tpu.pipeline_mode<synchronous>, transform_indices = @transform_4, window_bounds = array<i64: 1, 32>}, {pipeline_mode = #tpu.pipeline_mode<synchronous>, transform_indices = @transform_5, window_bounds = array<i64: 32, 64>}, {pipeline_mode = #tpu.pipeline_mode<synchronous>, transform_indices = @transform_6, window_bounds = array<i64: 1, 64>}, {pipeline_mode = #tpu.pipeline_mode<synchronous>, transform_indices = @transform_7, window_bounds = array<i64: 4, 8, 32>}, {pipeline_mode = #tpu.pipeline_mode<synchronous>, transform_indices = @transform_8, window_bounds = array<i64: 1, 32>}, {pipeline_mode = #tpu.pipeline_mode<synchronous>, transform_indices = @transform_9, window_bounds = array<i64: 1, 32>}, {pipeline_mode = #tpu.pipeline_mode<synchronous>, transform_indices = @transform_10, window_bounds = array<i64: 1, 32>}, {pipeline_mode = #tpu.pipeline_mode<synchronous>, transform_indices = @transform_11, window_bounds = array<i64: 32, 32>}, {pipeline_mode = #tpu.pipeline_mode<synchronous>, transform_indices = @transform_12, window_bounds = array<i64: 1, 32>}, {pipeline_mode = #tpu.pipeline_mode<synchronous>, transform_indices = @transform_13, window_bounds = array<i64: 32, 64>}, {pipeline_mode = #tpu.pipeline_mode<synchronous>, transform_indices = @transform_14, window_bounds = array<i64: 1, 64>}, {pipeline_mode = #tpu.pipeline_mode<synchronous>, transform_indices = @transform_15, window_bounds = array<i64: 4, 8, 32>}, {pipeline_mode = #tpu.pipeline_mode<synchronous>, transform_indices = @transform_16, window_bounds = array<i64: 1, 32>}, {pipeline_mode = #tpu.pipeline_mode<synchronous>, transform_indices = @transform_17, window_bounds = array<i64: 1, 32>}, {pipeline_mode = #tpu.pipeline_mode<synchronous>, transform_indices = @transform_18, window_bounds = array<i64: 1, 32>}, {pipeline_mode = #tpu.pipeline_mode<synchronous>, transform_indices = @transform_19, window_bounds = array<i64: 32, 64>}, {pipeline_mode = #tpu.pipeline_mode<synchronous>, transform_indices = @transform_20, window_bounds = array<i64: 1, 64>}, {pipeline_mode = #tpu.pipeline_mode<synchronous>, transform_indices = @transform_21, window_bounds = array<i64: 64, 32>}, {pipeline_mode = #tpu.pipeline_mode<synchronous>, transform_indices = @transform_22, window_bounds = array<i64: 1, 32>}, {pipeline_mode = #tpu.pipeline_mode<synchronous>, transform_indices = @transform_23, window_bounds = array<i64: 1, 32>}, {pipeline_mode = #tpu.pipeline_mode<synchronous>, transform_indices = @transform_24, window_bounds = array<i64: 1, 32>}, {transform_indices = @transform_25, window_bounds = array<i64: 1, 8, 32>}]} {
    %c0 = arith.constant 0 : index
    %c0_0 = arith.constant 0 : index
    %c0_1 = arith.constant 0 : index
    %0 = vector.load %arg2[%c0, %c0_0, %c0_1] : memref<1x8x32xf32, #tpu.memory_space<vmem>>, vector<1x8x32xf32>
    %1 = vector.shape_cast %0 : vector<1x8x32xf32> to vector<8x32xf32>
    %c0_2 = arith.constant 0 : index
    %c0_3 = arith.constant 0 : index
    %c0_4 = arith.constant 0 : index
    %2 = vector.load %arg3[%c0_2, %c0_3, %c0_4] : memref<1x8x32xbf16, #tpu.memory_space<vmem>>, vector<1x8x32xbf16>
    %3 = vector.shape_cast %2 : vector<1x8x32xbf16> to vector<8x32xbf16>
    %c0_5 = arith.constant 0 : index
    %c0_6 = arith.constant 0 : index
    %c0_7 = arith.constant 0 : index
    %4 = vector.load %arg4[%c0_5, %c0_6, %c0_7] : memref<1x16x32xbf16, #tpu.memory_space<vmem>>, vector<1x16x32xbf16>
    %5 = vector.shape_cast %4 : vector<1x16x32xbf16> to vector<16x32xbf16>
    %6 = arith.truncf %1 : vector<8x32xf32> to vector<8x32xbf16>
    %c0_8 = arith.constant 0 : index
    %c0_9 = arith.constant 0 : index
    %7 = vector.load %arg5[%c0_8, %c0_9] : memref<32x32xbf16, #tpu.memory_space<vmem>>, vector<32x32xbf16>
    %cst = arith.constant dense<0.000000e+00> : vector<8x32xf32>
    %8 = tpu.matmul %6, %7, %cst {dimension_numbers = #tpu.dot_dimension_numbers<[1], [0], [0], [1], [0, 0, 1, 1], [], []>} : vector<8x32xbf16>, vector<32x32xbf16>, vector<8x32xf32> -> vector<8x32xf32>
    %c0_10 = arith.constant 0 : index
    %c0_11 = arith.constant 0 : index
    %9 = vector.load %arg6[%c0_10, %c0_11] : memref<1x32xf32, #tpu.memory_space<vmem>>, vector<1x32xf32>
    %10 = vector.broadcast %9 : vector<1x32xf32> to vector<8x32xf32>
    %11 = arith.addf %8, %10 : vector<8x32xf32>
    %cst_12 = arith.constant 0.353553385 : f32
    %12 = vector.broadcast %cst_12 : f32 to vector<8x32xf32>
    %13 = arith.mulf %11, %12 : vector<8x32xf32>
    %c0_13 = arith.constant 0 : index
    %c0_14 = arith.constant 0 : index
    %14 = vector.load %arg7[%c0_13, %c0_14] : memref<32x64xbf16, #tpu.memory_space<vmem>>, vector<32x64xbf16>
    %cst_15 = arith.constant dense<0.000000e+00> : vector<8x64xf32>
    %15 = tpu.matmul %3, %14, %cst_15 {dimension_numbers = #tpu.dot_dimension_numbers<[1], [0], [0], [1], [0, 0, 1, 1], [], []>} : vector<8x32xbf16>, vector<32x64xbf16>, vector<8x64xf32> -> vector<8x64xf32>
    %c0_16 = arith.constant 0 : index
    %c0_17 = arith.constant 0 : index
    %16 = vector.load %arg8[%c0_16, %c0_17] : memref<1x64xf32, #tpu.memory_space<vmem>>, vector<1x64xf32>
    %17 = vector.broadcast %16 : vector<1x64xf32> to vector<8x64xf32>
    %18 = arith.addf %15, %17 : vector<8x64xf32>
    %19 = vector.extract_strided_slice %18 {offsets = [0, 0], sizes = [8, 32], strides = [1, 1]} : vector<8x64xf32> to vector<8x32xf32>
    %20 = vector.extract_strided_slice %18 {offsets = [0, 32], sizes = [8, 32], strides = [1, 1]} : vector<8x64xf32> to vector<8x32xf32>
    %21 = tpu.transpose %19, [1, 0] : vector<8x32xf32> -> vector<32x8xf32>
    %cst_18 = arith.constant 0.000000e+00 : f32
    %22 = vector.broadcast %cst_18 : f32 to vector<8x32xf32>
    %23 = vector.extract_strided_slice %13 {offsets = [0, 0], sizes = [8, 8], strides = [1, 1]} : vector<8x32xf32> to vector<8x8xf32>
    %24 = arith.truncf %23 : vector<8x8xf32> to vector<8x8xbf16>
    %25 = vector.extract_strided_slice %21 {offsets = [0, 0], sizes = [8, 8], strides = [1, 1]} : vector<32x8xf32> to vector<8x8xf32>
    %26 = arith.truncf %25 : vector<8x8xf32> to vector<8x8xbf16>
    %cst_19 = arith.constant dense<0.000000e+00> : vector<8x8xf32>
    %27 = tpu.matmul %24, %26, %cst_19 {dimension_numbers = #tpu.dot_dimension_numbers<[1], [0], [0], [1], [0, 0, 1, 1], [], []>} : vector<8x8xbf16>, vector<8x8xbf16>, vector<8x8xf32> -> vector<8x8xf32>
    %cst_20 = arith.constant dense<0xFF800000> : vector<8xf32>
    %28 = vector.multi_reduction <maximumf>, %27, %cst_20 [1] : vector<8x8xf32> to vector<8xf32>
    %29 = vector.shape_cast %28 : vector<8xf32> to vector<8x1xf32>
    %30 = vector.broadcast %29 : vector<8x1xf32> to vector<8x8xf32>
    %31 = arith.subf %27, %30 : vector<8x8xf32>
    %32 = math.exp %31 : vector<8x8xf32>
    %cst_21 = arith.constant dense<0.000000e+00> : vector<8xf32>
    %33 = vector.multi_reduction <add>, %32, %cst_21 [1] : vector<8x8xf32> to vector<8xf32>
    %34 = vector.shape_cast %33 : vector<8xf32> to vector<8x1xf32>
    %35 = tpu.reciprocal %34 {approx = true} : vector<8x1xf32> -> vector<8x1xf32>
    %36 = arith.mulf %34, %35 : vector<8x1xf32>
    %cst_22 = arith.constant 2.000000e+00 : f32
    %37 = vector.broadcast %cst_22 : f32 to vector<8x1xf32>
    %38 = arith.subf %37, %36 : vector<8x1xf32>
    %39 = arith.mulf %35, %38 : vector<8x1xf32>
    %40 = vector.broadcast %39 : vector<8x1xf32> to vector<8x8xf32>
    %41 = arith.mulf %32, %40 : vector<8x8xf32>
    %42 = arith.truncf %41 : vector<8x8xf32> to vector<8x8xbf16>
    %43 = vector.extract_strided_slice %20 {offsets = [0, 0], sizes = [8, 8], strides = [1, 1]} : vector<8x32xf32> to vector<8x8xf32>
    %44 = arith.truncf %43 : vector<8x8xf32> to vector<8x8xbf16>
    %cst_23 = arith.constant dense<0.000000e+00> : vector<8x8xf32>
    %45 = tpu.matmul %42, %44, %cst_23 {dimension_numbers = #tpu.dot_dimension_numbers<[1], [0], [0], [1], [0, 0, 1, 1], [], []>} : vector<8x8xbf16>, vector<8x8xbf16>, vector<8x8xf32> -> vector<8x8xf32>
    %46 = arith.truncf %45 : vector<8x8xf32> to vector<8x8xbf16>
    %c0_24 = arith.constant 0 : index
    %c0_25 = arith.constant 0 : index
    %c0_26 = arith.constant 0 : index
    %47 = vector.load %arg9[%c0_24, %c0_25, %c0_26] : memref<4x8x32xbf16, #tpu.memory_space<vmem>>, vector<1x8x32xbf16>
    %48 = vector.shape_cast %47 : vector<1x8x32xbf16> to vector<8x32xbf16>
    %cst_27 = arith.constant dense<0.000000e+00> : vector<8x32xf32>
    %49 = tpu.matmul %46, %48, %cst_27 {dimension_numbers = #tpu.dot_dimension_numbers<[1], [0], [0], [1], [0, 0, 1, 1], [], []>} : vector<8x8xbf16>, vector<8x32xbf16>, vector<8x32xf32> -> vector<8x32xf32>
    %50 = arith.addf %22, %49 : vector<8x32xf32>
    %51 = vector.extract_strided_slice %13 {offsets = [0, 8], sizes = [8, 8], strides = [1, 1]} : vector<8x32xf32> to vector<8x8xf32>
    %52 = arith.truncf %51 : vector<8x8xf32> to vector<8x8xbf16>
    %53 = vector.extract_strided_slice %21 {offsets = [8, 0], sizes = [8, 8], strides = [1, 1]} : vector<32x8xf32> to vector<8x8xf32>
    %54 = arith.truncf %53 : vector<8x8xf32> to vector<8x8xbf16>
    %cst_28 = arith.constant dense<0.000000e+00> : vector<8x8xf32>
    %55 = tpu.matmul %52, %54, %cst_28 {dimension_numbers = #tpu.dot_dimension_numbers<[1], [0], [0], [1], [0, 0, 1, 1], [], []>} : vector<8x8xbf16>, vector<8x8xbf16>, vector<8x8xf32> -> vector<8x8xf32>
    %cst_29 = arith.constant dense<0xFF800000> : vector<8xf32>
    %56 = vector.multi_reduction <maximumf>, %55, %cst_29 [1] : vector<8x8xf32> to vector<8xf32>
    %57 = vector.shape_cast %56 : vector<8xf32> to vector<8x1xf32>
    %58 = vector.broadcast %57 : vector<8x1xf32> to vector<8x8xf32>
    %59 = arith.subf %55, %58 : vector<8x8xf32>
    %60 = math.exp %59 : vector<8x8xf32>
    %cst_30 = arith.constant dense<0.000000e+00> : vector<8xf32>
    %61 = vector.multi_reduction <add>, %60, %cst_30 [1] : vector<8x8xf32> to vector<8xf32>
    %62 = vector.shape_cast %61 : vector<8xf32> to vector<8x1xf32>
    %63 = tpu.reciprocal %62 {approx = true} : vector<8x1xf32> -> vector<8x1xf32>
    %64 = arith.mulf %62, %63 : vector<8x1xf32>
    %cst_31 = arith.constant 2.000000e+00 : f32
    %65 = vector.broadcast %cst_31 : f32 to vector<8x1xf32>
    %66 = arith.subf %65, %64 : vector<8x1xf32>
    %67 = arith.mulf %63, %66 : vector<8x1xf32>
    %68 = vector.broadcast %67 : vector<8x1xf32> to vector<8x8xf32>
    %69 = arith.mulf %60, %68 : vector<8x8xf32>
    %70 = arith.truncf %69 : vector<8x8xf32> to vector<8x8xbf16>
    %71 = vector.extract_strided_slice %20 {offsets = [0, 8], sizes = [8, 8], strides = [1, 1]} : vector<8x32xf32> to vector<8x8xf32>
    %72 = arith.truncf %71 : vector<8x8xf32> to vector<8x8xbf16>
    %cst_32 = arith.constant dense<0.000000e+00> : vector<8x8xf32>
    %73 = tpu.matmul %70, %72, %cst_32 {dimension_numbers = #tpu.dot_dimension_numbers<[1], [0], [0], [1], [0, 0, 1, 1], [], []>} : vector<8x8xbf16>, vector<8x8xbf16>, vector<8x8xf32> -> vector<8x8xf32>
    %74 = arith.truncf %73 : vector<8x8xf32> to vector<8x8xbf16>
    %c1 = arith.constant 1 : index
    %c0_33 = arith.constant 0 : index
    %c0_34 = arith.constant 0 : index
    %75 = vector.load %arg9[%c1, %c0_33, %c0_34] : memref<4x8x32xbf16, #tpu.memory_space<vmem>>, vector<1x8x32xbf16>
    %76 = vector.shape_cast %75 : vector<1x8x32xbf16> to vector<8x32xbf16>
    %cst_35 = arith.constant dense<0.000000e+00> : vector<8x32xf32>
    %77 = tpu.matmul %74, %76, %cst_35 {dimension_numbers = #tpu.dot_dimension_numbers<[1], [0], [0], [1], [0, 0, 1, 1], [], []>} : vector<8x8xbf16>, vector<8x32xbf16>, vector<8x32xf32> -> vector<8x32xf32>
    %78 = arith.addf %50, %77 : vector<8x32xf32>
    %79 = vector.extract_strided_slice %13 {offsets = [0, 16], sizes = [8, 8], strides = [1, 1]} : vector<8x32xf32> to vector<8x8xf32>
    %80 = arith.truncf %79 : vector<8x8xf32> to vector<8x8xbf16>
    %81 = vector.extract_strided_slice %21 {offsets = [16, 0], sizes = [8, 8], strides = [1, 1]} : vector<32x8xf32> to vector<8x8xf32>
    %82 = arith.truncf %81 : vector<8x8xf32> to vector<8x8xbf16>
    %cst_36 = arith.constant dense<0.000000e+00> : vector<8x8xf32>
    %83 = tpu.matmul %80, %82, %cst_36 {dimension_numbers = #tpu.dot_dimension_numbers<[1], [0], [0], [1], [0, 0, 1, 1], [], []>} : vector<8x8xbf16>, vector<8x8xbf16>, vector<8x8xf32> -> vector<8x8xf32>
    %cst_37 = arith.constant dense<0xFF800000> : vector<8xf32>
    %84 = vector.multi_reduction <maximumf>, %83, %cst_37 [1] : vector<8x8xf32> to vector<8xf32>
    %85 = vector.shape_cast %84 : vector<8xf32> to vector<8x1xf32>
    %86 = vector.broadcast %85 : vector<8x1xf32> to vector<8x8xf32>
    %87 = arith.subf %83, %86 : vector<8x8xf32>
    %88 = math.exp %87 : vector<8x8xf32>
    %cst_38 = arith.constant dense<0.000000e+00> : vector<8xf32>
    %89 = vector.multi_reduction <add>, %88, %cst_38 [1] : vector<8x8xf32> to vector<8xf32>
    %90 = vector.shape_cast %89 : vector<8xf32> to vector<8x1xf32>
    %91 = tpu.reciprocal %90 {approx = true} : vector<8x1xf32> -> vector<8x1xf32>
    %92 = arith.mulf %90, %91 : vector<8x1xf32>
    %cst_39 = arith.constant 2.000000e+00 : f32
    %93 = vector.broadcast %cst_39 : f32 to vector<8x1xf32>
    %94 = arith.subf %93, %92 : vector<8x1xf32>
    %95 = arith.mulf %91, %94 : vector<8x1xf32>
    %96 = vector.broadcast %95 : vector<8x1xf32> to vector<8x8xf32>
    %97 = arith.mulf %88, %96 : vector<8x8xf32>
    %98 = arith.truncf %97 : vector<8x8xf32> to vector<8x8xbf16>
    %99 = vector.extract_strided_slice %20 {offsets = [0, 16], sizes = [8, 8], strides = [1, 1]} : vector<8x32xf32> to vector<8x8xf32>
    %100 = arith.truncf %99 : vector<8x8xf32> to vector<8x8xbf16>
    %cst_40 = arith.constant dense<0.000000e+00> : vector<8x8xf32>
    %101 = tpu.matmul %98, %100, %cst_40 {dimension_numbers = #tpu.dot_dimension_numbers<[1], [0], [0], [1], [0, 0, 1, 1], [], []>} : vector<8x8xbf16>, vector<8x8xbf16>, vector<8x8xf32> -> vector<8x8xf32>
    %102 = arith.truncf %101 : vector<8x8xf32> to vector<8x8xbf16>
    %c2 = arith.constant 2 : index
    %c0_41 = arith.constant 0 : index
    %c0_42 = arith.constant 0 : index
    %103 = vector.load %arg9[%c2, %c0_41, %c0_42] : memref<4x8x32xbf16, #tpu.memory_space<vmem>>, vector<1x8x32xbf16>
    %104 = vector.shape_cast %103 : vector<1x8x32xbf16> to vector<8x32xbf16>
    %cst_43 = arith.constant dense<0.000000e+00> : vector<8x32xf32>
    %105 = tpu.matmul %102, %104, %cst_43 {dimension_numbers = #tpu.dot_dimension_numbers<[1], [0], [0], [1], [0, 0, 1, 1], [], []>} : vector<8x8xbf16>, vector<8x32xbf16>, vector<8x32xf32> -> vector<8x32xf32>
    %106 = arith.addf %78, %105 : vector<8x32xf32>
    %107 = vector.extract_strided_slice %13 {offsets = [0, 24], sizes = [8, 8], strides = [1, 1]} : vector<8x32xf32> to vector<8x8xf32>
    %108 = arith.truncf %107 : vector<8x8xf32> to vector<8x8xbf16>
    %109 = vector.extract_strided_slice %21 {offsets = [24, 0], sizes = [8, 8], strides = [1, 1]} : vector<32x8xf32> to vector<8x8xf32>
    %110 = arith.truncf %109 : vector<8x8xf32> to vector<8x8xbf16>
    %cst_44 = arith.constant dense<0.000000e+00> : vector<8x8xf32>
    %111 = tpu.matmul %108, %110, %cst_44 {dimension_numbers = #tpu.dot_dimension_numbers<[1], [0], [0], [1], [0, 0, 1, 1], [], []>} : vector<8x8xbf16>, vector<8x8xbf16>, vector<8x8xf32> -> vector<8x8xf32>
    %cst_45 = arith.constant dense<0xFF800000> : vector<8xf32>
    %112 = vector.multi_reduction <maximumf>, %111, %cst_45 [1] : vector<8x8xf32> to vector<8xf32>
    %113 = vector.shape_cast %112 : vector<8xf32> to vector<8x1xf32>
    %114 = vector.broadcast %113 : vector<8x1xf32> to vector<8x8xf32>
    %115 = arith.subf %111, %114 : vector<8x8xf32>
    %116 = math.exp %115 : vector<8x8xf32>
    %cst_46 = arith.constant dense<0.000000e+00> : vector<8xf32>
    %117 = vector.multi_reduction <add>, %116, %cst_46 [1] : vector<8x8xf32> to vector<8xf32>
    %118 = vector.shape_cast %117 : vector<8xf32> to vector<8x1xf32>
    %119 = tpu.reciprocal %118 {approx = true} : vector<8x1xf32> -> vector<8x1xf32>
    %120 = arith.mulf %118, %119 : vector<8x1xf32>
    %cst_47 = arith.constant 2.000000e+00 : f32
    %121 = vector.broadcast %cst_47 : f32 to vector<8x1xf32>
    %122 = arith.subf %121, %120 : vector<8x1xf32>
    %123 = arith.mulf %119, %122 : vector<8x1xf32>
    %124 = vector.broadcast %123 : vector<8x1xf32> to vector<8x8xf32>
    %125 = arith.mulf %116, %124 : vector<8x8xf32>
    %126 = arith.truncf %125 : vector<8x8xf32> to vector<8x8xbf16>
    %127 = vector.extract_strided_slice %20 {offsets = [0, 24], sizes = [8, 8], strides = [1, 1]} : vector<8x32xf32> to vector<8x8xf32>
    %128 = arith.truncf %127 : vector<8x8xf32> to vector<8x8xbf16>
    %cst_48 = arith.constant dense<0.000000e+00> : vector<8x8xf32>
    %129 = tpu.matmul %126, %128, %cst_48 {dimension_numbers = #tpu.dot_dimension_numbers<[1], [0], [0], [1], [0, 0, 1, 1], [], []>} : vector<8x8xbf16>, vector<8x8xbf16>, vector<8x8xf32> -> vector<8x8xf32>
    %130 = arith.truncf %129 : vector<8x8xf32> to vector<8x8xbf16>
    %c3 = arith.constant 3 : index
    %c0_49 = arith.constant 0 : index
    %c0_50 = arith.constant 0 : index
    %131 = vector.load %arg9[%c3, %c0_49, %c0_50] : memref<4x8x32xbf16, #tpu.memory_space<vmem>>, vector<1x8x32xbf16>
    %132 = vector.shape_cast %131 : vector<1x8x32xbf16> to vector<8x32xbf16>
    %cst_51 = arith.constant dense<0.000000e+00> : vector<8x32xf32>
    %133 = tpu.matmul %130, %132, %cst_51 {dimension_numbers = #tpu.dot_dimension_numbers<[1], [0], [0], [1], [0, 0, 1, 1], [], []>} : vector<8x8xbf16>, vector<8x32xbf16>, vector<8x32xf32> -> vector<8x32xf32>
    %134 = arith.addf %106, %133 : vector<8x32xf32>
    %c0_52 = arith.constant 0 : index
    %c0_53 = arith.constant 0 : index
    %135 = vector.load %arg10[%c0_52, %c0_53] : memref<1x32xf32, #tpu.memory_space<vmem>>, vector<1x32xf32>
    %136 = vector.broadcast %135 : vector<1x32xf32> to vector<8x32xf32>
    %137 = arith.addf %134, %136 : vector<8x32xf32>
    %138 = arith.addf %137, %1 : vector<8x32xf32>
    %c0_54 = arith.constant 0 : index
    %c0_55 = arith.constant 0 : index
    %139 = vector.load %arg11[%c0_54, %c0_55] : memref<1x32xf32, #tpu.memory_space<vmem>>, vector<1x32xf32>
    %c0_56 = arith.constant 0 : index
    %c0_57 = arith.constant 0 : index
    %140 = vector.load %arg12[%c0_56, %c0_57] : memref<1x32xf32, #tpu.memory_space<vmem>>, vector<1x32xf32>
    %cst_58 = arith.constant dense<0.000000e+00> : vector<8xf32>
    %141 = vector.multi_reduction <add>, %138, %cst_58 [1] : vector<8x32xf32> to vector<8xf32>
    %142 = vector.shape_cast %141 : vector<8xf32> to vector<8x1xf32>
    %cst_59 = arith.constant 3.200000e+01 : f32
    %143 = vector.broadcast %cst_59 : f32 to vector<8x1xf32>
    %144 = arith.divf %142, %143 : vector<8x1xf32>
    %145 = arith.mulf %138, %138 : vector<8x32xf32>
    %cst_60 = arith.constant dense<0.000000e+00> : vector<8xf32>
    %146 = vector.multi_reduction <add>, %145, %cst_60 [1] : vector<8x32xf32> to vector<8xf32>
    %147 = vector.shape_cast %146 : vector<8xf32> to vector<8x1xf32>
    %cst_61 = arith.constant 3.200000e+01 : f32
    %148 = vector.broadcast %cst_61 : f32 to vector<8x1xf32>
    %149 = arith.divf %147, %148 : vector<8x1xf32>
    %150 = arith.mulf %144, %144 : vector<8x1xf32>
    %151 = arith.subf %149, %150 : vector<8x1xf32>
    %cst_62 = arith.constant 0.000000e+00 : f32
    %152 = vector.broadcast %cst_62 : f32 to vector<8x1xf32>
    %153 = arith.maximumf %151, %152 : vector<8x1xf32>
    %154 = vector.broadcast %144 : vector<8x1xf32> to vector<8x32xf32>
    %155 = arith.subf %138, %154 : vector<8x32xf32>
    %cst_63 = arith.constant 9.99999974E-6 : f32
    %156 = vector.broadcast %cst_63 : f32 to vector<8x1xf32>
    %157 = arith.addf %153, %156 : vector<8x1xf32>
    %158 = math.rsqrt %157 : vector<8x1xf32>
    %159 = vector.broadcast %158 : vector<8x1xf32> to vector<8x32xf32>
    %160 = arith.mulf %155, %159 : vector<8x32xf32>
    %161 = vector.broadcast %139 : vector<1x32xf32> to vector<8x32xf32>
    %162 = arith.mulf %160, %161 : vector<8x32xf32>
    %163 = vector.broadcast %140 : vector<1x32xf32> to vector<8x32xf32>
    %164 = arith.addf %162, %163 : vector<8x32xf32>
    %165 = arith.truncf %164 : vector<8x32xf32> to vector<8x32xbf16>
    %c0_64 = arith.constant 0 : index
    %c0_65 = arith.constant 0 : index
    %166 = vector.load %arg13[%c0_64, %c0_65] : memref<32x32xbf16, #tpu.memory_space<vmem>>, vector<32x32xbf16>
    %cst_66 = arith.constant dense<0.000000e+00> : vector<8x32xf32>
    %167 = tpu.matmul %165, %166, %cst_66 {dimension_numbers = #tpu.dot_dimension_numbers<[1], [0], [0], [1], [0, 0, 1, 1], [], []>} : vector<8x32xbf16>, vector<32x32xbf16>, vector<8x32xf32> -> vector<8x32xf32>
    %c0_67 = arith.constant 0 : index
    %c0_68 = arith.constant 0 : index
    %168 = vector.load %arg14[%c0_67, %c0_68] : memref<1x32xf32, #tpu.memory_space<vmem>>, vector<1x32xf32>
    %169 = vector.broadcast %168 : vector<1x32xf32> to vector<8x32xf32>
    %170 = arith.addf %167, %169 : vector<8x32xf32>
    %cst_69 = arith.constant 0.353553385 : f32
    %171 = vector.broadcast %cst_69 : f32 to vector<8x32xf32>
    %172 = arith.mulf %170, %171 : vector<8x32xf32>
    %c0_70 = arith.constant 0 : index
    %c0_71 = arith.constant 0 : index
    %173 = vector.load %arg15[%c0_70, %c0_71] : memref<32x64xbf16, #tpu.memory_space<vmem>>, vector<32x64xbf16>
    %cst_72 = arith.constant dense<0.000000e+00> : vector<16x64xf32>
    %174 = tpu.matmul %5, %173, %cst_72 {dimension_numbers = #tpu.dot_dimension_numbers<[1], [0], [0], [1], [0, 0, 1, 1], [], []>} : vector<16x32xbf16>, vector<32x64xbf16>, vector<16x64xf32> -> vector<16x64xf32>
    %c0_73 = arith.constant 0 : index
    %c0_74 = arith.constant 0 : index
    %175 = vector.load %arg16[%c0_73, %c0_74] : memref<1x64xf32, #tpu.memory_space<vmem>>, vector<1x64xf32>
    %176 = vector.broadcast %175 : vector<1x64xf32> to vector<16x64xf32>
    %177 = arith.addf %174, %176 : vector<16x64xf32>
    %178 = vector.extract_strided_slice %177 {offsets = [0, 0], sizes = [16, 32], strides = [1, 1]} : vector<16x64xf32> to vector<16x32xf32>
    %179 = vector.extract_strided_slice %177 {offsets = [0, 32], sizes = [16, 32], strides = [1, 1]} : vector<16x64xf32> to vector<16x32xf32>
    %180 = tpu.transpose %178, [1, 0] : vector<16x32xf32> -> vector<32x16xf32>
    %cst_75 = arith.constant 0.000000e+00 : f32
    %181 = vector.broadcast %cst_75 : f32 to vector<8x32xf32>
    %182 = vector.extract_strided_slice %172 {offsets = [0, 0], sizes = [8, 8], strides = [1, 1]} : vector<8x32xf32> to vector<8x8xf32>
    %183 = arith.truncf %182 : vector<8x8xf32> to vector<8x8xbf16>
    %184 = vector.extract_strided_slice %180 {offsets = [0, 0], sizes = [8, 16], strides = [1, 1]} : vector<32x16xf32> to vector<8x16xf32>
    %185 = arith.truncf %184 : vector<8x16xf32> to vector<8x16xbf16>
    %cst_76 = arith.constant dense<0.000000e+00> : vector<8x16xf32>
    %186 = tpu.matmul %183, %185, %cst_76 {dimension_numbers = #tpu.dot_dimension_numbers<[1], [0], [0], [1], [0, 0, 1, 1], [], []>} : vector<8x8xbf16>, vector<8x16xbf16>, vector<8x16xf32> -> vector<8x16xf32>
    %cst_77 = arith.constant dense<0xFF800000> : vector<8xf32>
    %187 = vector.multi_reduction <maximumf>, %186, %cst_77 [1] : vector<8x16xf32> to vector<8xf32>
    %188 = vector.shape_cast %187 : vector<8xf32> to vector<8x1xf32>
    %189 = vector.broadcast %188 : vector<8x1xf32> to vector<8x16xf32>
    %190 = arith.subf %186, %189 : vector<8x16xf32>
    %191 = math.exp %190 : vector<8x16xf32>
    %cst_78 = arith.constant dense<0.000000e+00> : vector<8xf32>
    %192 = vector.multi_reduction <add>, %191, %cst_78 [1] : vector<8x16xf32> to vector<8xf32>
    %193 = vector.shape_cast %192 : vector<8xf32> to vector<8x1xf32>
    %194 = tpu.reciprocal %193 {approx = true} : vector<8x1xf32> -> vector<8x1xf32>
    %195 = arith.mulf %193, %194 : vector<8x1xf32>
    %cst_79 = arith.constant 2.000000e+00 : f32
    %196 = vector.broadcast %cst_79 : f32 to vector<8x1xf32>
    %197 = arith.subf %196, %195 : vector<8x1xf32>
    %198 = arith.mulf %194, %197 : vector<8x1xf32>
    %199 = vector.broadcast %198 : vector<8x1xf32> to vector<8x16xf32>
    %200 = arith.mulf %191, %199 : vector<8x16xf32>
    %201 = arith.truncf %200 : vector<8x16xf32> to vector<8x16xbf16>
    %202 = vector.extract_strided_slice %179 {offsets = [0, 0], sizes = [16, 8], strides = [1, 1]} : vector<16x32xf32> to vector<16x8xf32>
    %203 = arith.truncf %202 : vector<16x8xf32> to vector<16x8xbf16>
    %cst_80 = arith.constant dense<0.000000e+00> : vector<8x8xf32>
    %204 = tpu.matmul %201, %203, %cst_80 {dimension_numbers = #tpu.dot_dimension_numbers<[1], [0], [0], [1], [0, 0, 1, 1], [], []>} : vector<8x16xbf16>, vector<16x8xbf16>, vector<8x8xf32> -> vector<8x8xf32>
    %205 = arith.truncf %204 : vector<8x8xf32> to vector<8x8xbf16>
    %c0_81 = arith.constant 0 : index
    %c0_82 = arith.constant 0 : index
    %c0_83 = arith.constant 0 : index
    %206 = vector.load %arg17[%c0_81, %c0_82, %c0_83] : memref<4x8x32xbf16, #tpu.memory_space<vmem>>, vector<1x8x32xbf16>
    %207 = vector.shape_cast %206 : vector<1x8x32xbf16> to vector<8x32xbf16>
    %cst_84 = arith.constant dense<0.000000e+00> : vector<8x32xf32>
    %208 = tpu.matmul %205, %207, %cst_84 {dimension_numbers = #tpu.dot_dimension_numbers<[1], [0], [0], [1], [0, 0, 1, 1], [], []>} : vector<8x8xbf16>, vector<8x32xbf16>, vector<8x32xf32> -> vector<8x32xf32>
    %209 = arith.addf %181, %208 : vector<8x32xf32>
    %210 = vector.extract_strided_slice %172 {offsets = [0, 8], sizes = [8, 8], strides = [1, 1]} : vector<8x32xf32> to vector<8x8xf32>
    %211 = arith.truncf %210 : vector<8x8xf32> to vector<8x8xbf16>
    %212 = vector.extract_strided_slice %180 {offsets = [8, 0], sizes = [8, 16], strides = [1, 1]} : vector<32x16xf32> to vector<8x16xf32>
    %213 = arith.truncf %212 : vector<8x16xf32> to vector<8x16xbf16>
    %cst_85 = arith.constant dense<0.000000e+00> : vector<8x16xf32>
    %214 = tpu.matmul %211, %213, %cst_85 {dimension_numbers = #tpu.dot_dimension_numbers<[1], [0], [0], [1], [0, 0, 1, 1], [], []>} : vector<8x8xbf16>, vector<8x16xbf16>, vector<8x16xf32> -> vector<8x16xf32>
    %cst_86 = arith.constant dense<0xFF800000> : vector<8xf32>
    %215 = vector.multi_reduction <maximumf>, %214, %cst_86 [1] : vector<8x16xf32> to vector<8xf32>
    %216 = vector.shape_cast %215 : vector<8xf32> to vector<8x1xf32>
    %217 = vector.broadcast %216 : vector<8x1xf32> to vector<8x16xf32>
    %218 = arith.subf %214, %217 : vector<8x16xf32>
    %219 = math.exp %218 : vector<8x16xf32>
    %cst_87 = arith.constant dense<0.000000e+00> : vector<8xf32>
    %220 = vector.multi_reduction <add>, %219, %cst_87 [1] : vector<8x16xf32> to vector<8xf32>
    %221 = vector.shape_cast %220 : vector<8xf32> to vector<8x1xf32>
    %222 = tpu.reciprocal %221 {approx = true} : vector<8x1xf32> -> vector<8x1xf32>
    %223 = arith.mulf %221, %222 : vector<8x1xf32>
    %cst_88 = arith.constant 2.000000e+00 : f32
    %224 = vector.broadcast %cst_88 : f32 to vector<8x1xf32>
    %225 = arith.subf %224, %223 : vector<8x1xf32>
    %226 = arith.mulf %222, %225 : vector<8x1xf32>
    %227 = vector.broadcast %226 : vector<8x1xf32> to vector<8x16xf32>
    %228 = arith.mulf %219, %227 : vector<8x16xf32>
    %229 = arith.truncf %228 : vector<8x16xf32> to vector<8x16xbf16>
    %230 = vector.extract_strided_slice %179 {offsets = [0, 8], sizes = [16, 8], strides = [1, 1]} : vector<16x32xf32> to vector<16x8xf32>
    %231 = arith.truncf %230 : vector<16x8xf32> to vector<16x8xbf16>
    %cst_89 = arith.constant dense<0.000000e+00> : vector<8x8xf32>
    %232 = tpu.matmul %229, %231, %cst_89 {dimension_numbers = #tpu.dot_dimension_numbers<[1], [0], [0], [1], [0, 0, 1, 1], [], []>} : vector<8x16xbf16>, vector<16x8xbf16>, vector<8x8xf32> -> vector<8x8xf32>
    %233 = arith.truncf %232 : vector<8x8xf32> to vector<8x8xbf16>
    %c1_90 = arith.constant 1 : index
    %c0_91 = arith.constant 0 : index
    %c0_92 = arith.constant 0 : index
    %234 = vector.load %arg17[%c1_90, %c0_91, %c0_92] : memref<4x8x32xbf16, #tpu.memory_space<vmem>>, vector<1x8x32xbf16>
    %235 = vector.shape_cast %234 : vector<1x8x32xbf16> to vector<8x32xbf16>
    %cst_93 = arith.constant dense<0.000000e+00> : vector<8x32xf32>
    %236 = tpu.matmul %233, %235, %cst_93 {dimension_numbers = #tpu.dot_dimension_numbers<[1], [0], [0], [1], [0, 0, 1, 1], [], []>} : vector<8x8xbf16>, vector<8x32xbf16>, vector<8x32xf32> -> vector<8x32xf32>
    %237 = arith.addf %209, %236 : vector<8x32xf32>
    %238 = vector.extract_strided_slice %172 {offsets = [0, 16], sizes = [8, 8], strides = [1, 1]} : vector<8x32xf32> to vector<8x8xf32>
    %239 = arith.truncf %238 : vector<8x8xf32> to vector<8x8xbf16>
    %240 = vector.extract_strided_slice %180 {offsets = [16, 0], sizes = [8, 16], strides = [1, 1]} : vector<32x16xf32> to vector<8x16xf32>
    %241 = arith.truncf %240 : vector<8x16xf32> to vector<8x16xbf16>
    %cst_94 = arith.constant dense<0.000000e+00> : vector<8x16xf32>
    %242 = tpu.matmul %239, %241, %cst_94 {dimension_numbers = #tpu.dot_dimension_numbers<[1], [0], [0], [1], [0, 0, 1, 1], [], []>} : vector<8x8xbf16>, vector<8x16xbf16>, vector<8x16xf32> -> vector<8x16xf32>
    %cst_95 = arith.constant dense<0xFF800000> : vector<8xf32>
    %243 = vector.multi_reduction <maximumf>, %242, %cst_95 [1] : vector<8x16xf32> to vector<8xf32>
    %244 = vector.shape_cast %243 : vector<8xf32> to vector<8x1xf32>
    %245 = vector.broadcast %244 : vector<8x1xf32> to vector<8x16xf32>
    %246 = arith.subf %242, %245 : vector<8x16xf32>
    %247 = math.exp %246 : vector<8x16xf32>
    %cst_96 = arith.constant dense<0.000000e+00> : vector<8xf32>
    %248 = vector.multi_reduction <add>, %247, %cst_96 [1] : vector<8x16xf32> to vector<8xf32>
    %249 = vector.shape_cast %248 : vector<8xf32> to vector<8x1xf32>
    %250 = tpu.reciprocal %249 {approx = true} : vector<8x1xf32> -> vector<8x1xf32>
    %251 = arith.mulf %249, %250 : vector<8x1xf32>
    %cst_97 = arith.constant 2.000000e+00 : f32
    %252 = vector.broadcast %cst_97 : f32 to vector<8x1xf32>
    %253 = arith.subf %252, %251 : vector<8x1xf32>
    %254 = arith.mulf %250, %253 : vector<8x1xf32>
    %255 = vector.broadcast %254 : vector<8x1xf32> to vector<8x16xf32>
    %256 = arith.mulf %247, %255 : vector<8x16xf32>
    %257 = arith.truncf %256 : vector<8x16xf32> to vector<8x16xbf16>
    %258 = vector.extract_strided_slice %179 {offsets = [0, 16], sizes = [16, 8], strides = [1, 1]} : vector<16x32xf32> to vector<16x8xf32>
    %259 = arith.truncf %258 : vector<16x8xf32> to vector<16x8xbf16>
    %cst_98 = arith.constant dense<0.000000e+00> : vector<8x8xf32>
    %260 = tpu.matmul %257, %259, %cst_98 {dimension_numbers = #tpu.dot_dimension_numbers<[1], [0], [0], [1], [0, 0, 1, 1], [], []>} : vector<8x16xbf16>, vector<16x8xbf16>, vector<8x8xf32> -> vector<8x8xf32>
    %261 = arith.truncf %260 : vector<8x8xf32> to vector<8x8xbf16>
    %c2_99 = arith.constant 2 : index
    %c0_100 = arith.constant 0 : index
    %c0_101 = arith.constant 0 : index
    %262 = vector.load %arg17[%c2_99, %c0_100, %c0_101] : memref<4x8x32xbf16, #tpu.memory_space<vmem>>, vector<1x8x32xbf16>
    %263 = vector.shape_cast %262 : vector<1x8x32xbf16> to vector<8x32xbf16>
    %cst_102 = arith.constant dense<0.000000e+00> : vector<8x32xf32>
    %264 = tpu.matmul %261, %263, %cst_102 {dimension_numbers = #tpu.dot_dimension_numbers<[1], [0], [0], [1], [0, 0, 1, 1], [], []>} : vector<8x8xbf16>, vector<8x32xbf16>, vector<8x32xf32> -> vector<8x32xf32>
    %265 = arith.addf %237, %264 : vector<8x32xf32>
    %266 = vector.extract_strided_slice %172 {offsets = [0, 24], sizes = [8, 8], strides = [1, 1]} : vector<8x32xf32> to vector<8x8xf32>
    %267 = arith.truncf %266 : vector<8x8xf32> to vector<8x8xbf16>
    %268 = vector.extract_strided_slice %180 {offsets = [24, 0], sizes = [8, 16], strides = [1, 1]} : vector<32x16xf32> to vector<8x16xf32>
    %269 = arith.truncf %268 : vector<8x16xf32> to vector<8x16xbf16>
    %cst_103 = arith.constant dense<0.000000e+00> : vector<8x16xf32>
    %270 = tpu.matmul %267, %269, %cst_103 {dimension_numbers = #tpu.dot_dimension_numbers<[1], [0], [0], [1], [0, 0, 1, 1], [], []>} : vector<8x8xbf16>, vector<8x16xbf16>, vector<8x16xf32> -> vector<8x16xf32>
    %cst_104 = arith.constant dense<0xFF800000> : vector<8xf32>
    %271 = vector.multi_reduction <maximumf>, %270, %cst_104 [1] : vector<8x16xf32> to vector<8xf32>
    %272 = vector.shape_cast %271 : vector<8xf32> to vector<8x1xf32>
    %273 = vector.broadcast %272 : vector<8x1xf32> to vector<8x16xf32>
    %274 = arith.subf %270, %273 : vector<8x16xf32>
    %275 = math.exp %274 : vector<8x16xf32>
    %cst_105 = arith.constant dense<0.000000e+00> : vector<8xf32>
    %276 = vector.multi_reduction <add>, %275, %cst_105 [1] : vector<8x16xf32> to vector<8xf32>
    %277 = vector.shape_cast %276 : vector<8xf32> to vector<8x1xf32>
    %278 = tpu.reciprocal %277 {approx = true} : vector<8x1xf32> -> vector<8x1xf32>
    %279 = arith.mulf %277, %278 : vector<8x1xf32>
    %cst_106 = arith.constant 2.000000e+00 : f32
    %280 = vector.broadcast %cst_106 : f32 to vector<8x1xf32>
    %281 = arith.subf %280, %279 : vector<8x1xf32>
    %282 = arith.mulf %278, %281 : vector<8x1xf32>
    %283 = vector.broadcast %282 : vector<8x1xf32> to vector<8x16xf32>
    %284 = arith.mulf %275, %283 : vector<8x16xf32>
    %285 = arith.truncf %284 : vector<8x16xf32> to vector<8x16xbf16>
    %286 = vector.extract_strided_slice %179 {offsets = [0, 24], sizes = [16, 8], strides = [1, 1]} : vector<16x32xf32> to vector<16x8xf32>
    %287 = arith.truncf %286 : vector<16x8xf32> to vector<16x8xbf16>
    %cst_107 = arith.constant dense<0.000000e+00> : vector<8x8xf32>
    %288 = tpu.matmul %285, %287, %cst_107 {dimension_numbers = #tpu.dot_dimension_numbers<[1], [0], [0], [1], [0, 0, 1, 1], [], []>} : vector<8x16xbf16>, vector<16x8xbf16>, vector<8x8xf32> -> vector<8x8xf32>
    %289 = arith.truncf %288 : vector<8x8xf32> to vector<8x8xbf16>
    %c3_108 = arith.constant 3 : index
    %c0_109 = arith.constant 0 : index
    %c0_110 = arith.constant 0 : index
    %290 = vector.load %arg17[%c3_108, %c0_109, %c0_110] : memref<4x8x32xbf16, #tpu.memory_space<vmem>>, vector<1x8x32xbf16>
    %291 = vector.shape_cast %290 : vector<1x8x32xbf16> to vector<8x32xbf16>
    %cst_111 = arith.constant dense<0.000000e+00> : vector<8x32xf32>
    %292 = tpu.matmul %289, %291, %cst_111 {dimension_numbers = #tpu.dot_dimension_numbers<[1], [0], [0], [1], [0, 0, 1, 1], [], []>} : vector<8x8xbf16>, vector<8x32xbf16>, vector<8x32xf32> -> vector<8x32xf32>
    %293 = arith.addf %265, %292 : vector<8x32xf32>
    %c0_112 = arith.constant 0 : index
    %c0_113 = arith.constant 0 : index
    %294 = vector.load %arg18[%c0_112, %c0_113] : memref<1x32xf32, #tpu.memory_space<vmem>>, vector<1x32xf32>
    %295 = vector.broadcast %294 : vector<1x32xf32> to vector<8x32xf32>
    %296 = arith.addf %293, %295 : vector<8x32xf32>
    %297 = arith.addf %296, %164 : vector<8x32xf32>
    %c0_114 = arith.constant 0 : index
    %c0_115 = arith.constant 0 : index
    %298 = vector.load %arg19[%c0_114, %c0_115] : memref<1x32xf32, #tpu.memory_space<vmem>>, vector<1x32xf32>
    %c0_116 = arith.constant 0 : index
    %c0_117 = arith.constant 0 : index
    %299 = vector.load %arg20[%c0_116, %c0_117] : memref<1x32xf32, #tpu.memory_space<vmem>>, vector<1x32xf32>
    %cst_118 = arith.constant dense<0.000000e+00> : vector<8xf32>
    %300 = vector.multi_reduction <add>, %297, %cst_118 [1] : vector<8x32xf32> to vector<8xf32>
    %301 = vector.shape_cast %300 : vector<8xf32> to vector<8x1xf32>
    %cst_119 = arith.constant 3.200000e+01 : f32
    %302 = vector.broadcast %cst_119 : f32 to vector<8x1xf32>
    %303 = arith.divf %301, %302 : vector<8x1xf32>
    %304 = arith.mulf %297, %297 : vector<8x32xf32>
    %cst_120 = arith.constant dense<0.000000e+00> : vector<8xf32>
    %305 = vector.multi_reduction <add>, %304, %cst_120 [1] : vector<8x32xf32> to vector<8xf32>
    %306 = vector.shape_cast %305 : vector<8xf32> to vector<8x1xf32>
    %cst_121 = arith.constant 3.200000e+01 : f32
    %307 = vector.broadcast %cst_121 : f32 to vector<8x1xf32>
    %308 = arith.divf %306, %307 : vector<8x1xf32>
    %309 = arith.mulf %303, %303 : vector<8x1xf32>
    %310 = arith.subf %308, %309 : vector<8x1xf32>
    %cst_122 = arith.constant 0.000000e+00 : f32
    %311 = vector.broadcast %cst_122 : f32 to vector<8x1xf32>
    %312 = arith.maximumf %310, %311 : vector<8x1xf32>
    %313 = vector.broadcast %303 : vector<8x1xf32> to vector<8x32xf32>
    %314 = arith.subf %297, %313 : vector<8x32xf32>
    %cst_123 = arith.constant 9.99999974E-6 : f32
    %315 = vector.broadcast %cst_123 : f32 to vector<8x1xf32>
    %316 = arith.addf %312, %315 : vector<8x1xf32>
    %317 = math.rsqrt %316 : vector<8x1xf32>
    %318 = vector.broadcast %317 : vector<8x1xf32> to vector<8x32xf32>
    %319 = arith.mulf %314, %318 : vector<8x32xf32>
    %320 = vector.broadcast %298 : vector<1x32xf32> to vector<8x32xf32>
    %321 = arith.mulf %319, %320 : vector<8x32xf32>
    %322 = vector.broadcast %299 : vector<1x32xf32> to vector<8x32xf32>
    %323 = arith.addf %321, %322 : vector<8x32xf32>
    %324 = arith.truncf %323 : vector<8x32xf32> to vector<8x32xbf16>
    %c0_124 = arith.constant 0 : index
    %c0_125 = arith.constant 0 : index
    %325 = vector.load %arg21[%c0_124, %c0_125] : memref<32x64xbf16, #tpu.memory_space<vmem>>, vector<32x64xbf16>
    %cst_126 = arith.constant dense<0.000000e+00> : vector<8x64xf32>
    %326 = tpu.matmul %324, %325, %cst_126 {dimension_numbers = #tpu.dot_dimension_numbers<[1], [0], [0], [1], [0, 0, 1, 1], [], []>} : vector<8x32xbf16>, vector<32x64xbf16>, vector<8x64xf32> -> vector<8x64xf32>
    %c0_127 = arith.constant 0 : index
    %c0_128 = arith.constant 0 : index
    %327 = vector.load %arg22[%c0_127, %c0_128] : memref<1x64xf32, #tpu.memory_space<vmem>>, vector<1x64xf32>
    %328 = vector.broadcast %327 : vector<1x64xf32> to vector<8x64xf32>
    %329 = arith.addf %326, %328 : vector<8x64xf32>
    %330 = math.tanh %329 : vector<8x64xf32>
    %331 = arith.truncf %330 : vector<8x64xf32> to vector<8x64xbf16>
    %c0_129 = arith.constant 0 : index
    %c0_130 = arith.constant 0 : index
    %332 = vector.load %arg23[%c0_129, %c0_130] : memref<64x32xbf16, #tpu.memory_space<vmem>>, vector<64x32xbf16>
    %cst_131 = arith.constant dense<0.000000e+00> : vector<8x32xf32>
    %333 = tpu.matmul %331, %332, %cst_131 {dimension_numbers = #tpu.dot_dimension_numbers<[1], [0], [0], [1], [0, 0, 1, 1], [], []>} : vector<8x64xbf16>, vector<64x32xbf16>, vector<8x32xf32> -> vector<8x32xf32>
    %c0_132 = arith.constant 0 : index
    %c0_133 = arith.constant 0 : index
    %334 = vector.load %arg24[%c0_132, %c0_133] : memref<1x32xf32, #tpu.memory_space<vmem>>, vector<1x32xf32>
    %335 = vector.broadcast %334 : vector<1x32xf32> to vector<8x32xf32>
    %336 = arith.addf %333, %335 : vector<8x32xf32>
    %337 = arith.addf %336, %323 : vector<8x32xf32>
    %c0_134 = arith.constant 0 : index
    %c0_135 = arith.constant 0 : index
    %338 = vector.load %arg25[%c0_134, %c0_135] : memref<1x32xf32, #tpu.memory_space<vmem>>, vector<1x32xf32>
    %c0_136 = arith.constant 0 : index
    %c0_137 = arith.constant 0 : index
    %339 = vector.load %arg26[%c0_136, %c0_137] : memref<1x32xf32, #tpu.memory_space<vmem>>, vector<1x32xf32>
    %cst_138 = arith.constant dense<0.000000e+00> : vector<8xf32>
    %340 = vector.multi_reduction <add>, %337, %cst_138 [1] : vector<8x32xf32> to vector<8xf32>
    %341 = vector.shape_cast %340 : vector<8xf32> to vector<8x1xf32>
    %cst_139 = arith.constant 3.200000e+01 : f32
    %342 = vector.broadcast %cst_139 : f32 to vector<8x1xf32>
    %343 = arith.divf %341, %342 : vector<8x1xf32>
    %344 = arith.mulf %337, %337 : vector<8x32xf32>
    %cst_140 = arith.constant dense<0.000000e+00> : vector<8xf32>
    %345 = vector.multi_reduction <add>, %344, %cst_140 [1] : vector<8x32xf32> to vector<8xf32>
    %346 = vector.shape_cast %345 : vector<8xf32> to vector<8x1xf32>
    %cst_141 = arith.constant 3.200000e+01 : f32
    %347 = vector.broadcast %cst_141 : f32 to vector<8x1xf32>
    %348 = arith.divf %346, %347 : vector<8x1xf32>
    %349 = arith.mulf %343, %343 : vector<8x1xf32>
    %350 = arith.subf %348, %349 : vector<8x1xf32>
    %cst_142 = arith.constant 0.000000e+00 : f32
    %351 = vector.broadcast %cst_142 : f32 to vector<8x1xf32>
    %352 = arith.maximumf %350, %351 : vector<8x1xf32>
    %353 = vector.broadcast %343 : vector<8x1xf32> to vector<8x32xf32>
    %354 = arith.subf %337, %353 : vector<8x32xf32>
    %cst_143 = arith.constant 9.99999974E-6 : f32
    %355 = vector.broadcast %cst_143 : f32 to vector<8x1xf32>
    %356 = arith.addf %352, %355 : vector<8x1xf32>
    %357 = math.rsqrt %356 : vector<8x1xf32>
    %358 = vector.broadcast %357 : vector<8x1xf32> to vector<8x32xf32>
    %359 = arith.mulf %354, %358 : vector<8x32xf32>
    %360 = vector.broadcast %338 : vector<1x32xf32> to vector<8x32xf32>
    %361 = arith.mulf %359, %360 : vector<8x32xf32>
    %362 = vector.broadcast %339 : vector<1x32xf32> to vector<8x32xf32>
    %363 = arith.addf %361, %362 : vector<8x32xf32>
    %c0_144 = arith.constant 0 : index
    %c0_145 = arith.constant 0 : index
    %c0_146 = arith.constant 0 : index
    %364 = vector.load %arg27[%c0_144, %c0_145, %c0_146] : memref<1x8x32xf32, #tpu.memory_space<vmem>>, vector<1x8x32xf32>
    %365 = vector.shape_cast %364 : vector<1x8x32xf32> to vector<8x32xf32>
    %366 = vector.shape_cast %363 : vector<8x32xf32> to vector<1x8x32xf32>
    tpu.vector_store %arg27[%c0_144, %c0_145, %c0_146], %366 {strides = array<i32>} : memref<1x8x32xf32, #tpu.memory_space<vmem>>, vector<1x8x32xf32>,
    return
  }
  func.func @transform_0(%arg0: i32, %arg1: i32) -> (i32, i32, i32) {
    %c0_i32 = arith.constant 0 : i32
    %c0_i32_0 = arith.constant 0 : i32
    return %arg0, %arg1, %c0_i32 : i32, i32, i32
  }
  func.func @transform_1(%arg0: i32, %arg1: i32) -> (i32, i32, i32) {
    %c0_i32 = arith.constant 0 : i32
    %c0_i32_0 = arith.constant 0 : i32
    %c0_i32_1 = arith.constant 0 : i32
    return %arg0, %c0_i32, %c0_i32_0 : i32, i32, i32
  }
  func.func @transform_2(%arg0: i32, %arg1: i32) -> (i32, i32, i32) {
    %c0_i32 = arith.constant 0 : i32
    %c0_i32_0 = arith.constant 0 : i32
    %c0_i32_1 = arith.constant 0 : i32
    return %arg0, %c0_i32, %c0_i32_0 : i32, i32, i32
  }
  func.func @transform_3(%arg0: i32, %arg1: i32) -> (i32, i32) {
    %c0_i32 = arith.constant 0 : i32
    %c0_i32_0 = arith.constant 0 : i32
    %c0_i32_1 = arith.constant 0 : i32
    return %c0_i32, %c0_i32_0 : i32, i32
  }
  func.func @transform_4(%arg0: i32, %arg1: i32) -> (i32, i32) {
    %c0_i32 = arith.constant 0 : i32
    %c0_i32_0 = arith.constant 0 : i32
    %c0_i32_1 = arith.constant 0 : i32
    return %c0_i32, %c0_i32_0 : i32, i32
  }
  func.func @transform_5(%arg0: i32, %arg1: i32) -> (i32, i32) {
    %c0_i32 = arith.constant 0 : i32
    %c0_i32_0 = arith.constant 0 : i32
    %c0_i32_1 = arith.constant 0 : i32
    return %c0_i32, %c0_i32_0 : i32, i32
  }
  func.func @transform_6(%arg0: i32, %arg1: i32) -> (i32, i32) {
    %c0_i32 = arith.constant 0 : i32
    %c0_i32_0 = arith.constant 0 : i32
    %c0_i32_1 = arith.constant 0 : i32
    return %c0_i32, %c0_i32_0 : i32, i32
  }
  func.func @transform_7(%arg0: i32, %arg1: i32) -> (i32, i32, i32) {
    %c0_i32 = arith.constant 0 : i32
    %c0_i32_0 = arith.constant 0 : i32
    %c0_i32_1 = arith.constant 0 : i32
    %c0_i32_2 = arith.constant 0 : i32
    return %c0_i32, %c0_i32_0, %c0_i32_1 : i32, i32, i32
  }
  func.func @transform_8(%arg0: i32, %arg1: i32) -> (i32, i32) {
    %c0_i32 = arith.constant 0 : i32
    %c0_i32_0 = arith.constant 0 : i32
    %c0_i32_1 = arith.constant 0 : i32
    return %c0_i32, %c0_i32_0 : i32, i32
  }
  func.func @transform_9(%arg0: i32, %arg1: i32) -> (i32, i32) {
    %c0_i32 = arith.constant 0 : i32
    %c0_i32_0 = arith.constant 0 : i32
    %c0_i32_1 = arith.constant 0 : i32
    return %c0_i32, %c0_i32_0 : i32, i32
  }
  func.func @transform_10(%arg0: i32, %arg1: i32) -> (i32, i32) {
    %c0_i32 = arith.constant 0 : i32
    %c0_i32_0 = arith.constant 0 : i32
    %c0_i32_1 = arith.constant 0 : i32
    return %c0_i32, %c0_i32_0 : i32, i32
  }
  func.func @transform_11(%arg0: i32, %arg1: i32) -> (i32, i32) {
    %c0_i32 = arith.constant 0 : i32
    %c0_i32_0 = arith.constant 0 : i32
    %c0_i32_1 = arith.constant 0 : i32
    return %c0_i32, %c0_i32_0 : i32, i32
  }
  func.func @transform_12(%arg0: i32, %arg1: i32) -> (i32, i32) {
    %c0_i32 = arith.constant 0 : i32
    %c0_i32_0 = arith.constant 0 : i32
    %c0_i32_1 = arith.constant 0 : i32
    return %c0_i32, %c0_i32_0 : i32, i32
  }
  func.func @transform_13(%arg0: i32, %arg1: i32) -> (i32, i32) {
    %c0_i32 = arith.constant 0 : i32
    %c0_i32_0 = arith.constant 0 : i32
    %c0_i32_1 = arith.constant 0 : i32
    return %c0_i32, %c0_i32_0 : i32, i32
  }
  func.func @transform_14(%arg0: i32, %arg1: i32) -> (i32, i32) {
    %c0_i32 = arith.constant 0 : i32
    %c0_i32_0 = arith.constant 0 : i32
    %c0_i32_1 = arith.constant 0 : i32
    return %c0_i32, %c0_i32_0 : i32, i32
  }
  func.func @transform_15(%arg0: i32, %arg1: i32) -> (i32, i32, i32) {
    %c0_i32 = arith.constant 0 : i32
    %c0_i32_0 = arith.constant 0 : i32
    %c0_i32_1 = arith.constant 0 : i32
    %c0_i32_2 = arith.constant 0 : i32
    return %c0_i32, %c0_i32_0, %c0_i32_1 : i32, i32, i32
  }
  func.func @transform_16(%arg0: i32, %arg1: i32) -> (i32, i32) {
    %c0_i32 = arith.constant 0 : i32
    %c0_i32_0 = arith.constant 0 : i32
    %c0_i32_1 = arith.constant 0 : i32
    return %c0_i32, %c0_i32_0 : i32, i32
  }
  func.func @transform_17(%arg0: i32, %arg1: i32) -> (i32, i32) {
    %c0_i32 = arith.constant 0 : i32
    %c0_i32_0 = arith.constant 0 : i32
    %c0_i32_1 = arith.constant 0 : i32
    return %c0_i32, %c0_i32_0 : i32, i32
  }
  func.func @transform_18(%arg0: i32, %arg1: i32) -> (i32, i32) {
    %c0_i32 = arith.constant 0 : i32
    %c0_i32_0 = arith.constant 0 : i32
    %c0_i32_1 = arith.constant 0 : i32
    return %c0_i32, %c0_i32_0 : i32, i32
  }
  func.func @transform_19(%arg0: i32, %arg1: i32) -> (i32, i32) {
    %c0_i32 = arith.constant 0 : i32
    %c0_i32_0 = arith.constant 0 : i32
    %c0_i32_1 = arith.constant 0 : i32
    return %c0_i32, %c0_i32_0 : i32, i32
  }
  func.func @transform_20(%arg0: i32, %arg1: i32) -> (i32, i32) {
    %c0_i32 = arith.constant 0 : i32
    %c0_i32_0 = arith.constant 0 : i32
    %c0_i32_1 = arith.constant 0 : i32
    return %c0_i32, %c0_i32_0 : i32, i32
  }
  func.func @transform_21(%arg0: i32, %arg1: i32) -> (i32, i32) {
    %c0_i32 = arith.constant 0 : i32
    %c0_i32_0 = arith.constant 0 : i32
    %c0_i32_1 = arith.constant 0 : i32
    return %c0_i32, %c0_i32_0 : i32, i32
  }
  func.func @transform_22(%arg0: i32, %arg1: i32) -> (i32, i32) {
    %c0_i32 = arith.constant 0 : i32
    %c0_i32_0 = arith.constant 0 : i32
    %c0_i32_1 = arith.constant 0 : i32
    return %c0_i32, %c0_i32_0 : i32, i32
  }
  func.func @transform_23(%arg0: i32, %arg1: i32) -> (i32, i32) {
    %c0_i32 = arith.constant 0 : i32
    %c0_i32_0 = arith.constant 0 : i32
    %c0_i32_1 = arith.constant 0 : i32
    return %c0_i32, %c0_i32_0 : i32, i32
  }
  func.func @transform_24(%arg0: i32, %arg1: i32) -> (i32, i32) {
    %c0_i32 = arith.constant 0 : i32
    %c0_i32_0 = arith.constant 0 : i32
    %c0_i32_1 = arith.constant 0 : i32
    return %c0_i32, %c0_i32_0 : i32, i32
  }
  func.func @transform_25(%arg0: i32, %arg1: i32) -> (i32, i32, i32) {
    %c0_i32 = arith.constant 0 : i32
    %c0_i32_0 = arith.constant 0 : i32
    return %arg0, %arg1, %c0_i32 : i32, i32, i32
  }
}

</mosaic_0001>

<llo_original>
// kernel: tpu_custom_call.1
$region0: #{tpu_custom_call.1}
  #allocation0 [shape = 'u32[]', space=smem, size = 0x4, offset = 0x4, fixed_abs, tag = 'smem constant byte address 0x4 - core index']
  #allocation1 [shape = 'u32[144,128]{1,0:T(1,128)}', space=vmem, size = 0x12000, scoped, tag = 'internal scratch']
  %s0 = inlined_call_operand.vmem [shape: f32[2,8,32], index: 0, kind: input, shape index: {}]
  %s1 = inlined_call_operand.hbm [shape: bf16[2,8,32], index: 1, kind: input, shape index: {}]
  %s2 = inlined_call_operand.vmem [shape: bf16[2,16,32], index: 2, kind: input, shape index: {}]
  %s3 = inlined_call_operand.vmem [shape: bf16[32,32], index: 3, kind: input, shape index: {}]
  %s4 = inlined_call_operand.hbm [shape: f32[1,32], index: 4, kind: input, shape index: {}]
  %s5 = inlined_call_operand.hbm [shape: bf16[32,64], index: 5, kind: input, shape index: {}]
  %s6 = inlined_call_operand.hbm [shape: f32[1,64], index: 6, kind: input, shape index: {}]
  %s7 = inlined_call_operand.hbm [shape: bf16[4,8,32], index: 7, kind: input, shape index: {}]
  %s8 = inlined_call_operand.hbm [shape: f32[1,32], index: 8, kind: input, shape index: {}]
  %s9 = inlined_call_operand.hbm [shape: f32[1,32], index: 9, kind: input, shape index: {}]
  %s10 = inlined_call_operand.hbm [shape: f32[1,32], index: 10, kind: input, shape index: {}]
  %s11 = inlined_call_operand.vmem [shape: bf16[32,32], index: 11, kind: input, shape index: {}]
  %s12 = inlined_call_operand.hbm [shape: f32[1,32], index: 12, kind: input, shape index: {}]
  %s13 = inlined_call_operand.vmem [shape: bf16[32,64], index: 13, kind: input, shape index: {}]
  %s14 = inlined_call_operand.hbm [shape: f32[1,64], index: 14, kind: input, shape index: {}]
  %s15 = inlined_call_operand.hbm [shape: bf16[4,8,32], index: 15, kind: input, shape index: {}]
  %s16 = inlined_call_operand.hbm [shape: f32[1,32], index: 16, kind: input, shape index: {}]
  %s17 = inlined_call_operand.hbm [shape: f32[1,32], index: 17, kind: input, shape index: {}]
  %s18 = inlined_call_operand.vmem [shape: f32[1,32], index: 18, kind: input, shape index: {}]
  %s19 = inlined_call_operand.vmem [shape: bf16[32,64], index: 19, kind: input, shape index: {}]
  %s20 = inlined_call_operand.vmem [shape: f32[1,64], index: 20, kind: input, shape index: {}]
  %s21 = inlined_call_operand.vmem [shape: bf16[64,32], index: 21, kind: input, shape index: {}]
  %s22 = inlined_call_operand.vmem [shape: f32[1,32], index: 22, kind: input, shape index: {}]
  %s23 = inlined_call_operand.vmem [shape: f32[1,32], index: 23, kind: input, shape index: {}]
  %s24 = inlined_call_operand.vmem [shape: f32[1,32], index: 24, kind: input, shape index: {}]
  %s25 = inlined_call_operand.hbm [shape: f32[2,8,32], index: 25, kind: output, shape index: {}]
  %s26 = sld [smem:[#allocation0]]
  $region185: #{tpu_custom_call.1} parent=0
    _
  %s28 = ssub.s32 1, %s26
  %s29 = scalar_select 0, %s28, %s26
  $region1: #{tpu_custom_call.1} parent=0
    #allocation2 [shape = 'u8[4096]{0}', space=vmem, size = 0x1000, scoped, tag = 'input window, operand 1']
    #allocation3 [shape = 's32[2]{0}', space=sflag, size = 0x8, scoped, tag = 'scoped memory for tpu_custom_call.1']
    #allocation4 [shape = 's32[2]{0}', space=sflag, size = 0x8, scoped, tag = 'scoped memory for tpu_custom_call.1']
    #allocation5 [shape = 'u8[512]{0}', space=vmem, size = 0x400, scoped, tag = 'input window, operand 4, single buffered']
    #allocation6 [shape = 's32[1]{0}', space=sflag, size = 0x4, scoped, tag = 'scoped memory for tpu_custom_call.1']
    #allocation7 [shape = 'u8[8192]{0}', space=vmem, size = 0x2000, scoped, tag = 'input window, operand 5, single buffered']
    #allocation8 [shape = 'u8[512]{0}', space=vmem, size = 0x400, scoped, tag = 'input window, operand 6, single buffered']
    #allocation9 [shape = 's32[1]{0}', space=sflag, size = 0x4, scoped, tag = 'scoped memory for tpu_custom_call.1']
    #allocation10 [shape = 'u8[8192]{0}', space=vmem, size = 0x2000, scoped, tag = 'input window, operand 7, single buffered']
    #allocation11 [shape = 'u8[512]{0}', space=vmem, size = 0x400, scoped, tag = 'input window, operand 8, single buffered']
    #allocation12 [shape = 's32[1]{0}', space=sflag, size = 0x4, scoped, tag = 'scoped memory for tpu_custom_call.1']
    #allocation13 [shape = 'u8[512]{0}', space=vmem, size = 0x400, scoped, tag = 'input window, operand 9, single buffered']
    #allocation14 [shape = 'u8[512]{0}', space=vmem, size = 0x400, scoped, tag = 'input window, operand 10, single buffered']
    #allocation15 [shape = 's32[1]{0}', space=sflag, size = 0x4, scoped, tag = 'scoped memory for tpu_custom_call.1']
    #allocation16 [shape = 'u8[512]{0}', space=vmem, size = 0x400, scoped, tag = 'input window, operand 12, single buffered']
    #allocation17 [shape = 'u8[512]{0}', space=vmem, size = 0x400, scoped, tag = 'input window, operand 14, single buffered']
    #allocation18 [shape = 's32[1]{0}', space=sflag, size = 0x4, scoped, tag = 'scoped memory for tpu_custom_call.1']
    #allocation19 [shape = 'u8[8192]{0}', space=vmem, size = 0x2000, scoped, tag = 'input window, operand 15, single buffered']
    #allocation20 [shape = 'u8[512]{0}', space=vmem, size = 0x400, scoped, tag = 'input window, operand 16, single buffered']
    #allocation21 [shape = 's32[1]{0}', space=sflag, size = 0x4, scoped, tag = 'scoped memory for tpu_custom_call.1']
    #allocation22 [shape = 'u8[512]{0}', space=vmem, size = 0x400, scoped, tag = 'input window, operand 17, single buffered']
    #allocation23 [shape = 'u8[8192]{0}', space=vmem, size = 0x2000, scoped, tag = 'output window, operand 0']
    %30 = vsyncpa [#allocation3], 0
    %s31 = scalar_lea.sflag [#allocation3], 1
    %32 = vsyncpa %s31, 0
    %33 = vsyncpa [#allocation6], 0
    %34 = vsyncpa [#allocation9], 0
    %35 = vsyncpa [#allocation12], 0
    %36 = vsyncpa [#allocation15], 0
    %37 = vsyncpa [#allocation18], 0
    %38 = vsyncpa [#allocation21], 0
    %39 = vsyncpa [#allocation4], 0
    %s40 = scalar_lea.sflag [#allocation4], 1
    %41 = vsyncpa %s40, 0
    loop: start=0, step=1, limit=4
    $region2: #{tpu_custom_call.1} parent=1 // loop_pre_header
      _
    $region3: #{tpu_custom_call.1} parent=1 // loop_header
      %s43 = sphi 0, %s47
      %p44 = scmp.ge.s32.totalorder %s43, 4
      %s50 = sphi 0, %s62
      %s51 = sphi 0, %s58
      %s52 = sphi 0, %s50
      %s53 = sphi 0, %s51
      %s54 = sphi 0, %s52
      %s55 = sphi 0, %s53
      %s67 = sphi 0, %s69
      %s70 = sphi 0, %s67
      %s71 = sphi 0, %s70
      %s87 = sphi 0, %s71
      %s93 = sphi 0, %s95
      %s96 = sphi 0, %s93
      %s97 = sphi 0, %s96
      %s113 = sphi 0, %s97
      %s119 = sphi 0, %s121
      %s122 = sphi 0, %s119
      %s123 = sphi 0, %s122
      %s139 = sphi 0, %s123
      %s143 = sphi 0, %s143
      %s145 = sphi 0, %s143
      %s146 = sphi 0, %s145
      %s160 = sphi 0, %s146
      %s164 = sphi 0, %s164
      %s166 = sphi 0, %s164
      %s167 = sphi 0, %s166
      %s181 = sphi 0, %s167
      %s185 = sphi 0, %s185
      %s187 = sphi 0, %s185
      %s188 = sphi 0, %s187
      %s202 = sphi 0, %s188
      %s206 = sphi 0, %s206
      %s208 = sphi 0, %s206
      %s209 = sphi 0, %s208
      %s223 = sphi 0, %s209
      %s227 = sphi 0, %s227
      %s229 = sphi 0, %s227
      %s230 = sphi 0, %s229
      %s244 = sphi 0, %s230
      %s248 = sphi 0, %s248
      %s250 = sphi 0, %s248
      %s251 = sphi 0, %s250
      %s265 = sphi 0, %s251
      %s269 = sphi 0, %s269
      %s271 = sphi 0, %s269
      %s272 = sphi 0, %s271
      %s286 = sphi 0, %s272
      %s290 = sphi 0, %s290
      %s292 = sphi 0, %s290
      %s293 = sphi 0, %s292
      %s307 = sphi 0, %s293
      %s311 = sphi 0, %s311
      %s313 = sphi 0, %s311
      %s314 = sphi 0, %s313
      %s328 = sphi 0, %s314
      %s332 = sphi 0, %s332
      %s334 = sphi 0, %s332
      %s335 = sphi 0, %s334
      %s349 = sphi 0, %s335
      %s353 = sphi 0, %s353
      %s355 = sphi 0, %s353
      %s356 = sphi 0, %s355
      %s370 = sphi 0, %s356
      %s374 = sphi 0, %s374
      %s376 = sphi 0, %s374
      %s377 = sphi 0, %s376
      %s391 = sphi 0, %s377
      %s395 = sphi 0, %s395
      %s397 = sphi 0, %s395
      %s398 = sphi 0, %s397
      %s412 = sphi 0, %s398
      %s416 = sphi 0, %s416
      %s418 = sphi 0, %s416
      %s419 = sphi 0, %s418
      %s433 = sphi 0, %s419
      %s437 = sphi 0, %s437
      %s439 = sphi 0, %s437
      %s440 = sphi 0, %s439
      %s454 = sphi 0, %s440
      %s458 = sphi 0, %s458
      %s460 = sphi 0, %s458
      %s461 = sphi 0, %s460
      %s475 = sphi 0, %s461
      %s479 = sphi 0, %s479
      %s481 = sphi 0, %s479
      %s482 = sphi 0, %s481
      %s496 = sphi 0, %s482
      %s500 = sphi 0, %s500
      %s502 = sphi 0, %s500
      %s503 = sphi 0, %s502
      %s517 = sphi 0, %s503
      %s521 = sphi 0, %s521
      %s523 = sphi 0, %s521
      %s524 = sphi 0, %s523
      %s538 = sphi 0, %s524
      %s542 = sphi 0, %s542
      %s544 = sphi 0, %s542
      %s545 = sphi 0, %s544
      %s559 = sphi 0, %s545
      %s563 = sphi 0, %s563
      %s565 = sphi 0, %s563
      %s566 = sphi 0, %s565
      %s580 = sphi 0, %s566
      %s584 = sphi 0, %s584
      %s586 = sphi 0, %s584
      %s587 = sphi 0, %s586
      %s601 = sphi 0, %s587
      %s609 = sphi 0, %s611
      %s612 = sphi 0, %s609
      %s613 = sphi 0, %s612
      %s629 = sphi 0, %s613
    $region4: #{tpu_custom_call.1} parent=1 // loop_header_branch
      %46 = sbr.rel (%p44) target = $region8
    $region5: #{tpu_custom_call.1} parent=1 // loop_body
      %s48 = ssub.s32 %s43, 1
      %s49 = ssub.s32 %s43, 2
      %s56 = sadd.s32 1, %s51
      %p57 = scmp.ge.s32.totalorder %s56, 1
      %s58 = scalar_select %p57, 0, %s56
      %s59 = sadd.s32 1, %s50
      %s60 = scalar_select %p57, %s59, %s50
      %p61 = scmp.ge.s32.totalorder %s60, 2
      %s62 = scalar_select %p61, 0, %s60
      %s63 = ssub.s32 %s50, %s62
      %s64 = ssub.s32 %s51, %s58
      %s65 = sor.u32 %s63, %s64
      %p66 = scmp.eq.s32.totalorder %s65, 0
      %s68 = sadd.s32 %s67, 1
      %s69 = scalar_select %p66, %s67, %s68
      %p72 = pneg %p66
      %p73 = scmp.eq.s32.totalorder %s43, 1
      %p74 = por %p72, %p73
      %p75 = scmp.ne.s32.totalorder %s67, %s70
      %p76 = scmp.eq.s32.totalorder %s43, 0
      %p77 = por %p75, %p76
      %p78 = scmp.ne.s32.totalorder %s67, %s70
      %p79 = scmp.eq.s32.totalorder %s48, 1
      %p80 = por %p78, %p79
      %p81 = scmp.ne.s32.totalorder %s70, %s71
      %p82 = scmp.eq.s32.totalorder %s48, 0
      %p83 = por %p81, %p82
      %p84 = scmp.ne.s32.totalorder %s70, %s71
      %p85 = scmp.eq.s32.totalorder %s49, 1
      %p86 = por %p84, %p85
      %p88 = scmp.ne.s32.totalorder %s71, %s87
      %p89 = scmp.eq.s32.totalorder %s49, 0
      %p90 = por %p88, %p89
      %s91 = ssub.s32 %s50, %s62
      %p92 = scmp.eq.s32.totalorder %s91, 0
      %s94 = sadd.s32 %s93, 1
      %s95 = scalar_select %p92, %s93, %s94
      %p98 = pneg %p92
      %p99 = scmp.eq.s32.totalorder %s43, 1
      %p100 = por %p98, %p99
      %p101 = scmp.ne.s32.totalorder %s93, %s96
      %p102 = scmp.eq.s32.totalorder %s43, 0
      %p103 = por %p101, %p102
      %p104 = scmp.ne.s32.totalorder %s93, %s96
      %p105 = scmp.eq.s32.totalorder %s48, 1
      %p106 = por %p104, %p105
      %p107 = scmp.ne.s32.totalorder %s96, %s97
      %p108 = scmp.eq.s32.totalorder %s48, 0
      %p109 = por %p107, %p108
      %p110 = scmp.ne.s32.totalorder %s96, %s97
      %p111 = scmp.eq.s32.totalorder %s49, 1
      %p112 = por %p110, %p111
      %p114 = scmp.ne.s32.totalorder %s97, %s113
      %p115 = scmp.eq.s32.totalorder %s49, 0
      %p116 = por %p114, %p115
      %s117 = ssub.s32 %s50, %s62
      %p118 = scmp.eq.s32.totalorder %s117, 0
      %s120 = sadd.s32 %s119, 1
      %s121 = scalar_select %p118, %s119, %s120
      %p124 = pneg %p118
      %p125 = scmp.eq.s32.totalorder %s43, 1
      %p126 = por %p124, %p125
      %p127 = scmp.ne.s32.totalorder %s119, %s122
      %p128 = scmp.eq.s32.totalorder %s43, 0
      %p129 = por %p127, %p128
      %p130 = scmp.ne.s32.totalorder %s119, %s122
      %p131 = scmp.eq.s32.totalorder %s48, 1
      %p132 = por %p130, %p131
      %p133 = scmp.ne.s32.totalorder %s122, %s123
      %p134 = scmp.eq.s32.totalorder %s48, 0
      %p135 = por %p133, %p134
      %p136 = scmp.ne.s32.totalorder %s122, %s123
      %p137 = scmp.eq.s32.totalorder %s49, 1
      %p138 = por %p136, %p137
      %p140 = scmp.ne.s32.totalorder %s123, %s139
      %p141 = scmp.eq.s32.totalorder %s49, 0
      %p142 = por %p140, %p141
      %s144 = sadd.s32 %s143, 1
      %p147 = scmp.eq.s32.totalorder %s43, 1
      %p148 = scmp.ne.s32.totalorder %s143, %s145
      %p149 = scmp.eq.s32.totalorder %s43, 0
      %p150 = por %p148, %p149
      %p151 = scmp.ne.s32.totalorder %s143, %s145
      %p152 = scmp.eq.s32.totalorder %s48, 1
      %p153 = por %p151, %p152
      %p154 = scmp.ne.s32.totalorder %s145, %s146
      %p155 = scmp.eq.s32.totalorder %s48, 0
      %p156 = por %p154, %p155
      %p157 = scmp.ne.s32.totalorder %s145, %s146
      %p158 = scmp.eq.s32.totalorder %s49, 1
      %p159 = por %p157, %p158
      %p161 = scmp.ne.s32.totalorder %s146, %s160
      %p162 = scmp.eq.s32.totalorder %s49, 0
      %p163 = por %p161, %p162
      %s165 = sadd.s32 %s164, 1
      %p168 = scmp.eq.s32.totalorder %s43, 1
      %p169 = scmp.ne.s32.totalorder %s164, %s166
      %p170 = scmp.eq.s32.totalorder %s43, 0
      %p171 = por %p169, %p170
      %p172 = scmp.ne.s32.totalorder %s164, %s166
      %p173 = scmp.eq.s32.totalorder %s48, 1
      %p174 = por %p172, %p173
      %p175 = scmp.ne.s32.totalorder %s166, %s167
      %p176 = scmp.eq.s32.totalorder %s48, 0
      %p177 = por %p175, %p176
      %p178 = scmp.ne.s32.totalorder %s166, %s167
      %p179 = scmp.eq.s32.totalorder %s49, 1
      %p180 = por %p178, %p179
      %p182 = scmp.ne.s32.totalorder %s167, %s181
      %p183 = scmp.eq.s32.totalorder %s49, 0
      %p184 = por %p182, %p183
      %s186 = sadd.s32 %s185, 1
      %p189 = scmp.eq.s32.totalorder %s43, 1
      %p190 = scmp.ne.s32.totalorder %s185, %s187
      %p191 = scmp.eq.s32.totalorder %s43, 0
      %p192 = por %p190, %p191
      %p193 = scmp.ne.s32.totalorder %s185, %s187
      %p194 = scmp.eq.s32.totalorder %s48, 1
      %p195 = por %p193, %p194
      %p196 = scmp.ne.s32.totalorder %s187, %s188
      %p197 = scmp.eq.s32.totalorder %s48, 0
      %p198 = por %p196, %p197
      %p199 = scmp.ne.s32.totalorder %s187, %s188
      %p200 = scmp.eq.s32.totalorder %s49, 1
      %p201 = por %p199, %p200
      %p203 = scmp.ne.s32.totalorder %s188, %s202
      %p204 = scmp.eq.s32.totalorder %s49, 0
      %p205 = por %p203, %p204
      %s207 = sadd.s32 %s206, 1
      %p210 = scmp.eq.s32.totalorder %s43, 1
      %p211 = scmp.ne.s32.totalorder %s206, %s208
      %p212 = scmp.eq.s32.totalorder %s43, 0
      %p213 = por %p211, %p212
      %p214 = scmp.ne.s32.totalorder %s206, %s208
      %p215 = scmp.eq.s32.totalorder %s48, 1
      %p216 = por %p214, %p215
      %p217 = scmp.ne.s32.totalorder %s208, %s209
      %p218 = scmp.eq.s32.totalorder %s48, 0
      %p219 = por %p217, %p218
      %p220 = scmp.ne.s32.totalorder %s208, %s209
      %p221 = scmp.eq.s32.totalorder %s49, 1
      %p222 = por %p220, %p221
      %p224 = scmp.ne.s32.totalorder %s209, %s223
      %p225 = scmp.eq.s32.totalorder %s49, 0
      %p226 = por %p224, %p225
      %s228 = sadd.s32 %s227, 1
      %p231 = scmp.eq.s32.totalorder %s43, 1
      %p232 = scmp.ne.s32.totalorder %s227, %s229
      %p233 = scmp.eq.s32.totalorder %s43, 0
      %p234 = por %p232, %p233
      %p235 = scmp.ne.s32.totalorder %s227, %s229
      %p236 = scmp.eq.s32.totalorder %s48, 1
      %p237 = por %p235, %p236
      %p238 = scmp.ne.s32.totalorder %s229, %s230
      %p239 = scmp.eq.s32.totalorder %s48, 0
      %p240 = por %p238, %p239
      %p241 = scmp.ne.s32.totalorder %s229, %s230
      %p242 = scmp.eq.s32.totalorder %s49, 1
      %p243 = por %p241, %p242
      %p245 = scmp.ne.s32.totalorder %s230, %s244
      %p246 = scmp.eq.s32.totalorder %s49, 0
      %p247 = por %p245, %p246
      %s249 = sadd.s32 %s248, 1
      %p252 = scmp.eq.s32.totalorder %s43, 1
      %p253 = scmp.ne.s32.totalorder %s248, %s250
      %p254 = scmp.eq.s32.totalorder %s43, 0
      %p255 = por %p253, %p254
      %p256 = scmp.ne.s32.totalorder %s248, %s250
      %p257 = scmp.eq.s32.totalorder %s48, 1
      %p258 = por %p256, %p257
      %p259 = scmp.ne.s32.totalorder %s250, %s251
      %p260 = scmp.eq.s32.totalorder %s48, 0
      %p261 = por %p259, %p260
      %p262 = scmp.ne.s32.totalorder %s250, %s251
      %p263 = scmp.eq.s32.totalorder %s49, 1
      %p264 = por %p262, %p263
      %p266 = scmp.ne.s32.totalorder %s251, %s265
      %p267 = scmp.eq.s32.totalorder %s49, 0
      %p268 = por %p266, %p267
      %s270 = sadd.s32 %s269, 1
      %p273 = scmp.eq.s32.totalorder %s43, 1
      %p274 = scmp.ne.s32.totalorder %s269, %s271
      %p275 = scmp.eq.s32.totalorder %s43, 0
      %p276 = por %p274, %p275
      %p277 = scmp.ne.s32.totalorder %s269, %s271
      %p278 = scmp.eq.s32.totalorder %s48, 1
      %p279 = por %p277, %p278
      %p280 = scmp.ne.s32.totalorder %s271, %s272
      %p281 = scmp.eq.s32.totalorder %s48, 0
      %p282 = por %p280, %p281
      %p283 = scmp.ne.s32.totalorder %s271, %s272
      %p284 = scmp.eq.s32.totalorder %s49, 1
      %p285 = por %p283, %p284
      %p287 = scmp.ne.s32.totalorder %s272, %s286
      %p288 = scmp.eq.s32.totalorder %s49, 0
      %p289 = por %p287, %p288
      %s291 = sadd.s32 %s290, 1
      %p294 = scmp.eq.s32.totalorder %s43, 1
      %p295 = scmp.ne.s32.totalorder %s290, %s292
      %p296 = scmp.eq.s32.totalorder %s43, 0
      %p297 = por %p295, %p296
      %p298 = scmp.ne.s32.totalorder %s290, %s292
      %p299 = scmp.eq.s32.totalorder %s48, 1
      %p300 = por %p298, %p299
      %p301 = scmp.ne.s32.totalorder %s292, %s293
      %p302 = scmp.eq.s32.totalorder %s48, 0
      %p303 = por %p301, %p302
      %p304 = scmp.ne.s32.totalorder %s292, %s293
      %p305 = scmp.eq.s32.totalorder %s49, 1
      %p306 = por %p304, %p305
      %p308 = scmp.ne.s32.totalorder %s293, %s307
      %p309 = scmp.eq.s32.totalorder %s49, 0
      %p310 = por %p308, %p309
      %s312 = sadd.s32 %s311, 1
      %p315 = scmp.eq.s32.totalorder %s43, 1
      %p316 = scmp.ne.s32.totalorder %s311, %s313
      %p317 = scmp.eq.s32.totalorder %s43, 0
      %p318 = por %p316, %p317
      %p319 = scmp.ne.s32.totalorder %s311, %s313
      %p320 = scmp.eq.s32.totalorder %s48, 1
      %p321 = por %p319, %p320
      %p322 = scmp.ne.s32.totalorder %s313, %s314
      %p323 = scmp.eq.s32.totalorder %s48, 0
      %p324 = por %p322, %p323
      %p325 = scmp.ne.s32.totalorder %s313, %s314
      %p326 = scmp.eq.s32.totalorder %s49, 1
      %p327 = por %p325, %p326
      %p329 = scmp.ne.s32.totalorder %s314, %s328
      %p330 = scmp.eq.s32.totalorder %s49, 0
      %p331 = por %p329, %p330
      %s333 = sadd.s32 %s332, 1
      %p336 = scmp.eq.s32.totalorder %s43, 1
      %p337 = scmp.ne.s32.totalorder %s332, %s334
      %p338 = scmp.eq.s32.totalorder %s43, 0
      %p339 = por %p337, %p338
      %p340 = scmp.ne.s32.totalorder %s332, %s334
      %p341 = scmp.eq.s32.totalorder %s48, 1
      %p342 = por %p340, %p341
      %p343 = scmp.ne.s32.totalorder %s334, %s335
      %p344 = scmp.eq.s32.totalorder %s48, 0
      %p345 = por %p343, %p344
      %p346 = scmp.ne.s32.totalorder %s334, %s335
      %p347 = scmp.eq.s32.totalorder %s49, 1
      %p348 = por %p346, %p347
      %p350 = scmp.ne.s32.totalorder %s335, %s349
      %p351 = scmp.eq.s32.totalorder %s49, 0
      %p352 = por %p350, %p351
      %s354 = sadd.s32 %s353, 1
      %p357 = scmp.eq.s32.totalorder %s43, 1
      %p358 = scmp.ne.s32.totalorder %s353, %s355
      %p359 = scmp.eq.s32.totalorder %s43, 0
      %p360 = por %p358, %p359
      %p361 = scmp.ne.s32.totalorder %s353, %s355
      %p362 = scmp.eq.s32.totalorder %s48, 1
      %p363 = por %p361, %p362
      %p364 = scmp.ne.s32.totalorder %s355, %s356
      %p365 = scmp.eq.s32.totalorder %s48, 0
      %p366 = por %p364, %p365
      %p367 = scmp.ne.s32.totalorder %s355, %s356
      %p368 = scmp.eq.s32.totalorder %s49, 1
      %p369 = por %p367, %p368
      %p371 = scmp.ne.s32.totalorder %s356, %s370
      %p372 = scmp.eq.s32.totalorder %s49, 0
      %p373 = por %p371, %p372
      %s375 = sadd.s32 %s374, 1
      %p378 = scmp.eq.s32.totalorder %s43, 1
      %p379 = scmp.ne.s32.totalorder %s374, %s376
      %p380 = scmp.eq.s32.totalorder %s43, 0
      %p381 = por %p379, %p380
      %p382 = scmp.ne.s32.totalorder %s374, %s376
      %p383 = scmp.eq.s32.totalorder %s48, 1
      %p384 = por %p382, %p383
      %p385 = scmp.ne.s32.totalorder %s376, %s377
      %p386 = scmp.eq.s32.totalorder %s48, 0
      %p387 = por %p385, %p386
      %p388 = scmp.ne.s32.totalorder %s376, %s377
      %p389 = scmp.eq.s32.totalorder %s49, 1
      %p390 = por %p388, %p389
      %p392 = scmp.ne.s32.totalorder %s377, %s391
      %p393 = scmp.eq.s32.totalorder %s49, 0
      %p394 = por %p392, %p393
      %s396 = sadd.s32 %s395, 1
      %p399 = scmp.eq.s32.totalorder %s43, 1
      %p400 = scmp.ne.s32.totalorder %s395, %s397
      %p401 = scmp.eq.s32.totalorder %s43, 0
      %p402 = por %p400, %p401
      %p403 = scmp.ne.s32.totalorder %s395, %s397
      %p404 = scmp.eq.s32.totalorder %s48, 1
      %p405 = por %p403, %p404
      %p406 = scmp.ne.s32.totalorder %s397, %s398
      %p407 = scmp.eq.s32.totalorder %s48, 0
      %p408 = por %p406, %p407
      %p409 = scmp.ne.s32.totalorder %s397, %s398
      %p410 = scmp.eq.s32.totalorder %s49, 1
      %p411 = por %p409, %p410
      %p413 = scmp.ne.s32.totalorder %s398, %s412
      %p414 = scmp.eq.s32.totalorder %s49, 0
      %p415 = por %p413, %p414
      %s417 = sadd.s32 %s416, 1
      %p420 = scmp.eq.s32.totalorder %s43, 1
      %p421 = scmp.ne.s32.totalorder %s416, %s418
      %p422 = scmp.eq.s32.totalorder %s43, 0
      %p423 = por %p421, %p422
      %p424 = scmp.ne.s32.totalorder %s416, %s418
      %p425 = scmp.eq.s32.totalorder %s48, 1
      %p426 = por %p424, %p425
      %p427 = scmp.ne.s32.totalorder %s418, %s419
      %p428 = scmp.eq.s32.totalorder %s48, 0
      %p429 = por %p427, %p428
      %p430 = scmp.ne.s32.totalorder %s418, %s419
      %p431 = scmp.eq.s32.totalorder %s49, 1
      %p432 = por %p430, %p431
      %p434 = scmp.ne.s32.totalorder %s419, %s433
      %p435 = scmp.eq.s32.totalorder %s49, 0
      %p436 = por %p434, %p435
      %s438 = sadd.s32 %s437, 1
      %p441 = scmp.eq.s32.totalorder %s43, 1
      %p442 = scmp.ne.s32.totalorder %s437, %s439
      %p443 = scmp.eq.s32.totalorder %s43, 0
      %p444 = por %p442, %p443
      %p445 = scmp.ne.s32.totalorder %s437, %s439
      %p446 = scmp.eq.s32.totalorder %s48, 1
      %p447 = por %p445, %p446
      %p448 = scmp.ne.s32.totalorder %s439, %s440
      %p449 = scmp.eq.s32.totalorder %s48, 0
      %p450 = por %p448, %p449
      %p451 = scmp.ne.s32.totalorder %s439, %s440
      %p452 = scmp.eq.s32.totalorder %s49, 1
      %p453 = por %p451, %p452
      %p455 = scmp.ne.s32.totalorder %s440, %s454
      %p456 = scmp.eq.s32.totalorder %s49, 0
      %p457 = por %p455, %p456
      %s459 = sadd.s32 %s458, 1
      %p462 = scmp.eq.s32.totalorder %s43, 1
      %p463 = scmp.ne.s32.totalorder %s458, %s460
      %p464 = scmp.eq.s32.totalorder %s43, 0
      %p465 = por %p463, %p464
      %p466 = scmp.ne.s32.totalorder %s458, %s460
      %p467 = scmp.eq.s32.totalorder %s48, 1
      %p468 = por %p466, %p467
      %p469 = scmp.ne.s32.totalorder %s460, %s461
      %p470 = scmp.eq.s32.totalorder %s48, 0
      %p471 = por %p469, %p470
      %p472 = scmp.ne.s32.totalorder %s460, %s461
      %p473 = scmp.eq.s32.totalorder %s49, 1
      %p474 = por %p472, %p473
      %p476 = scmp.ne.s32.totalorder %s461, %s475
      %p477 = scmp.eq.s32.totalorder %s49, 0
      %p478 = por %p476, %p477
      %s480 = sadd.s32 %s479, 1
      %p483 = scmp.eq.s32.totalorder %s43, 1
      %p484 = scmp.ne.s32.totalorder %s479, %s481
      %p485 = scmp.eq.s32.totalorder %s43, 0
      %p486 = por %p484, %p485
      %p487 = scmp.ne.s32.totalorder %s479, %s481
      %p488 = scmp.eq.s32.totalorder %s48, 1
      %p489 = por %p487, %p488
      %p490 = scmp.ne.s32.totalorder %s481, %s482
      %p491 = scmp.eq.s32.totalorder %s48, 0
      %p492 = por %p490, %p491
      %p493 = scmp.ne.s32.totalorder %s481, %s482
      %p494 = scmp.eq.s32.totalorder %s49, 1
      %p495 = por %p493, %p494
      %p497 = scmp.ne.s32.totalorder %s482, %s496
      %p498 = scmp.eq.s32.totalorder %s49, 0
      %p499 = por %p497, %p498
      %s501 = sadd.s32 %s500, 1
      %p504 = scmp.eq.s32.totalorder %s43, 1
      %p505 = scmp.ne.s32.totalorder %s500, %s502
      %p506 = scmp.eq.s32.totalorder %s43, 0
      %p507 = por %p505, %p506
      %p508 = scmp.ne.s32.totalorder %s500, %s502
      %p509 = scmp.eq.s32.totalorder %s48, 1
      %p510 = por %p508, %p509
      %p511 = scmp.ne.s32.totalorder %s502, %s503
      %p512 = scmp.eq.s32.totalorder %s48, 0
      %p513 = por %p511, %p512
      %p514 = scmp.ne.s32.totalorder %s502, %s503
      %p515 = scmp.eq.s32.totalorder %s49, 1
      %p516 = por %p514, %p515
      %p518 = scmp.ne.s32.totalorder %s503, %s517
      %p519 = scmp.eq.s32.totalorder %s49, 0
      %p520 = por %p518, %p519
      %s522 = sadd.s32 %s521, 1
      %p525 = scmp.eq.s32.totalorder %s43, 1
      %p526 = scmp.ne.s32.totalorder %s521, %s523
      %p527 = scmp.eq.s32.totalorder %s43, 0
      %p528 = por %p526, %p527
      %p529 = scmp.ne.s32.totalorder %s521, %s523
      %p530 = scmp.eq.s32.totalorder %s48, 1
      %p531 = por %p529, %p530
      %p532 = scmp.ne.s32.totalorder %s523, %s524
      %p533 = scmp.eq.s32.totalorder %s48, 0
      %p534 = por %p532, %p533
      %p535 = scmp.ne.s32.totalorder %s523, %s524
      %p536 = scmp.eq.s32.totalorder %s49, 1
      %p537 = por %p535, %p536
      %p539 = scmp.ne.s32.totalorder %s524, %s538
      %p540 = scmp.eq.s32.totalorder %s49, 0
      %p541 = por %p539, %p540
      %s543 = sadd.s32 %s542, 1
      %p546 = scmp.eq.s32.totalorder %s43, 1
      %p547 = scmp.ne.s32.totalorder %s542, %s544
      %p548 = scmp.eq.s32.totalorder %s43, 0
      %p549 = por %p547, %p548
      %p550 = scmp.ne.s32.totalorder %s542, %s544
      %p551 = scmp.eq.s32.totalorder %s48, 1
      %p552 = por %p550, %p551
      %p553 = scmp.ne.s32.totalorder %s544, %s545
      %p554 = scmp.eq.s32.totalorder %s48, 0
      %p555 = por %p553, %p554
      %p556 = scmp.ne.s32.totalorder %s544, %s545
      %p557 = scmp.eq.s32.totalorder %s49, 1
      %p558 = por %p556, %p557
      %p560 = scmp.ne.s32.totalorder %s545, %s559
      %p561 = scmp.eq.s32.totalorder %s49, 0
      %p562 = por %p560, %p561
      %s564 = sadd.s32 %s563, 1
      %p567 = scmp.eq.s32.totalorder %s43, 1
      %p568 = scmp.ne.s32.totalorder %s563, %s565
      %p569 = scmp.eq.s32.totalorder %s43, 0
      %p570 = por %p568, %p569
      %p571 = scmp.ne.s32.totalorder %s563, %s565
      %p572 = scmp.eq.s32.totalorder %s48, 1
      %p573 = por %p571, %p572
      %p574 = scmp.ne.s32.totalorder %s565, %s566
      %p575 = scmp.eq.s32.totalorder %s48, 0
      %p576 = por %p574, %p575
      %p577 = scmp.ne.s32.totalorder %s565, %s566
      %p578 = scmp.eq.s32.totalorder %s49, 1
      %p579 = por %p577, %p578
      %p581 = scmp.ne.s32.totalorder %s566, %s580
      %p582 = scmp.eq.s32.totalorder %s49, 0
      %p583 = por %p581, %p582
      %s585 = sadd.s32 %s584, 1
      %p588 = scmp.eq.s32.totalorder %s43, 1
      %p589 = scmp.ne.s32.totalorder %s584, %s586
      %p590 = scmp.eq.s32.totalorder %s43, 0
      %p591 = por %p589, %p590
      %p592 = scmp.ne.s32.totalorder %s584, %s586
      %p593 = scmp.eq.s32.totalorder %s48, 1
      %p594 = por %p592, %p593
      %p595 = scmp.ne.s32.totalorder %s586, %s587
      %p596 = scmp.eq.s32.totalorder %s48, 0
      %p597 = por %p595, %p596
      %p598 = scmp.ne.s32.totalorder %s586, %s587
      %p599 = scmp.eq.s32.totalorder %s49, 1
      %p600 = por %p598, %p599
      %p602 = scmp.ne.s32.totalorder %s587, %s601
      %p603 = scmp.eq.s32.totalorder %s49, 0
      %p604 = por %p602, %p603
      %s605 = ssub.s32 %s50, %s62
      %s606 = ssub.s32 %s51, %s58
      %s607 = sor.u32 %s605, %s606
      %p608 = scmp.eq.s32.totalorder %s607, 0
      %s610 = sadd.s32 %s609, 1
      %s611 = scalar_select %p608, %s609, %s610
      %p614 = pneg %p608
      %p615 = scmp.eq.s32.totalorder %s43, 1
      %p616 = por %p614, %p615
      %p617 = scmp.ne.s32.totalorder %s609, %s612
      %p618 = scmp.eq.s32.totalorder %s43, 0
      %p619 = por %p617, %p618
      %p620 = scmp.ne.s32.totalorder %s609, %s612
      %p621 = scmp.eq.s32.totalorder %s48, 1
      %p622 = por %p620, %p621
      %p623 = scmp.ne.s32.totalorder %s612, %s613
      %p624 = scmp.eq.s32.totalorder %s48, 0
      %p625 = por %p623, %p624
      %p626 = scmp.ne.s32.totalorder %s612, %s613
      %p627 = scmp.eq.s32.totalorder %s49, 1
      %p628 = por %p626, %p627
      %p630 = scmp.ne.s32.totalorder %s613, %s629
      %p631 = scmp.eq.s32.totalorder %s49, 0
      %p632 = por %p630, %p631
      %p633 = scmp.le.s32.totalorder 1, %s43
      %p634 = scmp.lt.s32.totalorder %s43, 3
      %p635 = pnand %p633, %p634
      %p636 = pneg %p635
      // Predicated region
      $region9: #{tpu_custom_call.1} parent=5 // pred_check
        _
      $region10: #{tpu_custom_call.1} parent=5 // pred_check_branch
        %638 = sbr.rel (%p635) target = $region12
      $region11: #{tpu_custom_call.1} parent=5 // pred_region
        %s639 = ssub.s32 %s43, 1
        // Predicated region
        $region13: #{tpu_custom_call.1} parent=11 // pred_check
          %p640 = pneg %p156
        $region14: #{tpu_custom_call.1} parent=11 // pred_check_branch
          %642 = sbr.rel (%p640) target = $region16
        $region15: #{tpu_custom_call.1} parent=11 // pred_region
          _
        $region16: #{tpu_custom_call.1} parent=11 // pred_fallthru
          _
        // Predicated region
        $region17: #{tpu_custom_call.1} parent=11 // pred_check
          %p643 = pneg %p177
        $region18: #{tpu_custom_call.1} parent=11 // pred_check_branch
          %645 = sbr.rel (%p643) target = $region20
        $region19: #{tpu_custom_call.1} parent=11 // pred_region
          %s647 = ssub.s32 16, 16
          %648 = vsyncadd [#allocation6], %s647
          %s650 = sshll.u32 [#allocation5], 4
          %s651 = int_to_ptr.vmem [resolvable:$true] %s650
          %653 = dma.hbm_to_vmem [thread:$0]  %s4, 16, %s651, [#allocation6]
        $region20: #{tpu_custom_call.1} parent=11 // pred_fallthru
          _
        // Predicated region
        $region21: #{tpu_custom_call.1} parent=11 // pred_check
          %p654 = pneg %p198
        $region22: #{tpu_custom_call.1} parent=11 // pred_check_branch
          %656 = sbr.rel (%p654) target = $region24
        $region23: #{tpu_custom_call.1} parent=11 // pred_region
          %s658 = ssub.s32 256, 256
          %659 = vsyncadd [#allocation6], %s658
          %s660 = sshll.u32 [#allocation7], 4
          %s661 = int_to_ptr.vmem [resolvable:$true] %s660
          %666 = dma.hbm_to_vmem [thread:$0]  %s5, 256, %s661, [#allocation6], 64, 64, 4
        $region24: #{tpu_custom_call.1} parent=11 // pred_fallthru
          _
        // Predicated region
        $region25: #{tpu_custom_call.1} parent=11 // pred_check
          %p667 = pneg %p219
        $region26: #{tpu_custom_call.1} parent=11 // pred_check_branch
          %669 = sbr.rel (%p667) target = $region28
        $region27: #{tpu_custom_call.1} parent=11 // pred_region
          %s671 = ssub.s32 16, 16
          %672 = vsyncadd [#allocation9], %s671
          %s674 = sshll.u32 [#allocation8], 4
          %s675 = int_to_ptr.vmem [resolvable:$true] %s674
          %677 = dma.hbm_to_vmem [thread:$0]  %s6, 16, %s675, [#allocation9]
        $region28: #{tpu_custom_call.1} parent=11 // pred_fallthru
          _
        // Predicated region
        $region29: #{tpu_custom_call.1} parent=11 // pred_check
          %p678 = pneg %p240
        $region30: #{tpu_custom_call.1} parent=11 // pred_check_branch
          %680 = sbr.rel (%p678) target = $region32
        $region31: #{tpu_custom_call.1} parent=11 // pred_region
          %s682 = ssub.s32 256, 256
          %683 = vsyncadd [#allocation9], %s682
          %s684 = sshll.u32 [#allocation10], 4
          %s685 = int_to_ptr.vmem [resolvable:$true] %s684
          %690 = dma.hbm_to_vmem [thread:$0]  %s7, 256, %s685, [#allocation9], 64, 64, 4
        $region32: #{tpu_custom_call.1} parent=11 // pred_fallthru
          _
        // Predicated region
        $region33: #{tpu_custom_call.1} parent=11 // pred_check
          %p691 = pneg %p261
        $region34: #{tpu_custom_call.1} parent=11 // pred_check_branch
          %693 = sbr.rel (%p691) target = $region36
        $region35: #{tpu_custom_call.1} parent=11 // pred_region
          %s695 = ssub.s32 16, 16
          %696 = vsyncadd [#allocation12], %s695
          %s698 = sshll.u32 [#allocation11], 4
          %s699 = int_to_ptr.vmem [resolvable:$true] %s698
          %701 = dma.hbm_to_vmem [thread:$0]  %s8, 16, %s699, [#allocation12]
        $region36: #{tpu_custom_call.1} parent=11 // pred_fallthru
          _
        // Predicated region
        $region37: #{tpu_custom_call.1} parent=11 // pred_check
          %p702 = pneg %p282
        $region38: #{tpu_custom_call.1} parent=11 // pred_check_branch
          %704 = sbr.rel (%p702) target = $region40
        $region39: #{tpu_custom_call.1} parent=11 // pred_region
          %s706 = ssub.s32 16, 16
          %707 = vsyncadd [#allocation12], %s706
          %s709 = sshll.u32 [#allocation13], 4
          %s710 = int_to_ptr.vmem [resolvable:$true] %s709
          %712 = dma.hbm_to_vmem [thread:$0]  %s9, 16, %s710, [#allocation12]
        $region40: #{tpu_custom_call.1} parent=11 // pred_fallthru
          _
        // Predicated region
        $region41: #{tpu_custom_call.1} parent=11 // pred_check
          %p713 = pneg %p303
        $region42: #{tpu_custom_call.1} parent=11 // pred_check_branch
          %715 = sbr.rel (%p713) target = $region44
        $region43: #{tpu_custom_call.1} parent=11 // pred_region
          %s717 = ssub.s32 16, 16
          %718 = vsyncadd [#allocation15], %s717
          %s720 = sshll.u32 [#allocation14], 4
          %s721 = int_to_ptr.vmem [resolvable:$true] %s720
          %723 = dma.hbm_to_vmem [thread:$0]  %s10, 16, %s721, [#allocation15]
        $region44: #{tpu_custom_call.1} parent=11 // pred_fallthru
          _
        // Predicated region
        $region45: #{tpu_custom_call.1} parent=11 // pred_check
          %p724 = pneg %p324
        $region46: #{tpu_custom_call.1} parent=11 // pred_check_branch
          %726 = sbr.rel (%p724) target = $region48
        $region47: #{tpu_custom_call.1} parent=11 // pred_region
          _
        $region48: #{tpu_custom_call.1} parent=11 // pred_fallthru
          _
        // Predicated region
        $region49: #{tpu_custom_call.1} parent=11 // pred_check
          %p727 = pneg %p345
        $region50: #{tpu_custom_call.1} parent=11 // pred_check_branch
          %729 = sbr.rel (%p727) target = $region52
        $region51: #{tpu_custom_call.1} parent=11 // pred_region
          %s731 = ssub.s32 16, 16
          %732 = vsyncadd [#allocation15], %s731
          %s734 = sshll.u32 [#allocation16], 4
          %s735 = int_to_ptr.vmem [resolvable:$true] %s734
          %737 = dma.hbm_to_vmem [thread:$0]  %s12, 16, %s735, [#allocation15]
        $region52: #{tpu_custom_call.1} parent=11 // pred_fallthru
          _
        // Predicated region
        $region53: #{tpu_custom_call.1} parent=11 // pred_check
          %p738 = pneg %p366
        $region54: #{tpu_custom_call.1} parent=11 // pred_check_branch
          %740 = sbr.rel (%p738) target = $region56
        $region55: #{tpu_custom_call.1} parent=11 // pred_region
          _
        $region56: #{tpu_custom_call.1} parent=11 // pred_fallthru
          _
        // Predicated region
        $region57: #{tpu_custom_call.1} parent=11 // pred_check
          %p741 = pneg %p387
        $region58: #{tpu_custom_call.1} parent=11 // pred_check_branch
          %743 = sbr.rel (%p741) target = $region60
        $region59: #{tpu_custom_call.1} parent=11 // pred_region
          %s745 = ssub.s32 16, 16
          %746 = vsyncadd [#allocation18], %s745
          %s748 = sshll.u32 [#allocation17], 4
          %s749 = int_to_ptr.vmem [resolvable:$true] %s748
          %751 = dma.hbm_to_vmem [thread:$0]  %s14, 16, %s749, [#allocation18]
        $region60: #{tpu_custom_call.1} parent=11 // pred_fallthru
          _
        // Predicated region
        $region61: #{tpu_custom_call.1} parent=11 // pred_check
          %p752 = pneg %p408
        $region62: #{tpu_custom_call.1} parent=11 // pred_check_branch
          %754 = sbr.rel (%p752) target = $region64
        $region63: #{tpu_custom_call.1} parent=11 // pred_region
          %s756 = ssub.s32 256, 256
          %757 = vsyncadd [#allocation18], %s756
          %s758 = sshll.u32 [#allocation19], 4
          %s759 = int_to_ptr.vmem [resolvable:$true] %s758
          %764 = dma.hbm_to_vmem [thread:$0]  %s15, 256, %s759, [#allocation18], 64, 64, 4
        $region64: #{tpu_custom_call.1} parent=11 // pred_fallthru
          _
        // Predicated region
        $region65: #{tpu_custom_call.1} parent=11 // pred_check
          %p765 = pneg %p429
        $region66: #{tpu_custom_call.1} parent=11 // pred_check_branch
          %767 = sbr.rel (%p765) target = $region68
        $region67: #{tpu_custom_call.1} parent=11 // pred_region
          %s769 = ssub.s32 16, 16
          %770 = vsyncadd [#allocation21], %s769
          %s772 = sshll.u32 [#allocation20], 4
          %s773 = int_to_ptr.vmem [resolvable:$true] %s772
          %775 = dma.hbm_to_vmem [thread:$0]  %s16, 16, %s773, [#allocation21]
        $region68: #{tpu_custom_call.1} parent=11 // pred_fallthru
          _
        // Predicated region
        $region69: #{tpu_custom_call.1} parent=11 // pred_check
          %p776 = pneg %p450
        $region70: #{tpu_custom_call.1} parent=11 // pred_check_branch
          %778 = sbr.rel (%p776) target = $region72
        $region71: #{tpu_custom_call.1} parent=11 // pred_region
          %s780 = ssub.s32 16, 16
          %781 = vsyncadd [#allocation21], %s780
          %s783 = sshll.u32 [#allocation22], 4
          %s784 = int_to_ptr.vmem [resolvable:$true] %s783
          %786 = dma.hbm_to_vmem [thread:$0]  %s17, 16, %s784, [#allocation21]
        $region72: #{tpu_custom_call.1} parent=11 // pred_fallthru
          _
        // Predicated region
        $region73: #{tpu_custom_call.1} parent=11 // pred_check
          %p787 = pneg %p471
        $region74: #{tpu_custom_call.1} parent=11 // pred_check_branch
          %789 = sbr.rel (%p787) target = $region76
        $region75: #{tpu_custom_call.1} parent=11 // pred_region
          _
        $region76: #{tpu_custom_call.1} parent=11 // pred_fallthru
          _
        // Predicated region
        $region77: #{tpu_custom_call.1} parent=11 // pred_check
          %p790 = pneg %p492
        $region78: #{tpu_custom_call.1} parent=11 // pred_check_branch
          %792 = sbr.rel (%p790) target = $region80
        $region79: #{tpu_custom_call.1} parent=11 // pred_region
          _
        $region80: #{tpu_custom_call.1} parent=11 // pred_fallthru
          _
        // Predicated region
        $region81: #{tpu_custom_call.1} parent=11 // pred_check
          %p793 = pneg %p513
        $region82: #{tpu_custom_call.1} parent=11 // pred_check_branch
          %795 = sbr.rel (%p793) target = $region84
        $region83: #{tpu_custom_call.1} parent=11 // pred_region
          _
        $region84: #{tpu_custom_call.1} parent=11 // pred_fallthru
          _
        // Predicated region
        $region85: #{tpu_custom_call.1} parent=11 // pred_check
          %p796 = pneg %p534
        $region86: #{tpu_custom_call.1} parent=11 // pred_check_branch
          %798 = sbr.rel (%p796) target = $region88
        $region87: #{tpu_custom_call.1} parent=11 // pred_region
          _
        $region88: #{tpu_custom_call.1} parent=11 // pred_fallthru
          _
        // Predicated region
        $region89: #{tpu_custom_call.1} parent=11 // pred_check
          %p799 = pneg %p555
        $region90: #{tpu_custom_call.1} parent=11 // pred_check_branch
          %801 = sbr.rel (%p799) target = $region92
        $region91: #{tpu_custom_call.1} parent=11 // pred_region
          _
        $region92: #{tpu_custom_call.1} parent=11 // pred_fallthru
          _
        // Predicated region
        $region93: #{tpu_custom_call.1} parent=11 // pred_check
          %p802 = pneg %p576
        $region94: #{tpu_custom_call.1} parent=11 // pred_check_branch
          %804 = sbr.rel (%p802) target = $region96
        $region95: #{tpu_custom_call.1} parent=11 // pred_region
          _
        $region96: #{tpu_custom_call.1} parent=11 // pred_fallthru
          _
        // Predicated region
        $region97: #{tpu_custom_call.1} parent=11 // pred_check
          %p805 = pneg %p597
        $region98: #{tpu_custom_call.1} parent=11 // pred_check_branch
          %807 = sbr.rel (%p805) target = $region100
        $region99: #{tpu_custom_call.1} parent=11 // pred_region
          _
        $region100: #{tpu_custom_call.1} parent=11 // pred_fallthru
          _
      $region12: #{tpu_custom_call.1} parent=5 // pred_fallthru
        _
      %p808 = scmp.lt.s32.totalorder %s43, 2
      // Predicated region
      $region101: #{tpu_custom_call.1} parent=5 // pred_check
        %p809 = pneg %p808
      $region102: #{tpu_custom_call.1} parent=5 // pred_check_branch
        %811 = sbr.rel (%p809) target = $region104
      $region103: #{tpu_custom_call.1} parent=5 // pred_region
        // Predicated region
        $region105: #{tpu_custom_call.1} parent=103 // pred_check
          %p812 = pneg %p77
        $region106: #{tpu_custom_call.1} parent=103 // pred_check_branch
          %814 = sbr.rel (%p812) target = $region108
        $region107: #{tpu_custom_call.1} parent=103 // pred_region
          %p815 = scmp.lt.s32.totalorder %s50, 1
          %s816 = scalar_select %p815, %s50, 1
          %p817 = scmp.lt.s32.totalorder %s51, 0
          %s818 = scalar_select %p817, %s51, 0
          %s819 = sadd.s32 %s818, %s816
          %s820 = smul.addr %s819, 8
          %s821 = scalar_lea.vmem %s0, %s820
        $region108: #{tpu_custom_call.1} parent=103 // pred_fallthru
          _
        // Predicated region
        $region109: #{tpu_custom_call.1} parent=103 // pred_check
          %p822 = pneg %p103
        $region110: #{tpu_custom_call.1} parent=103 // pred_check_branch
          %824 = sbr.rel (%p822) target = $region112
        $region111: #{tpu_custom_call.1} parent=103 // pred_region
          %s825 = sand.u32 %s93, 1
          %s826 = scalar_lea.sflag [#allocation3], %s825
          %s827 = sand.u32 %s93, 1
          %s828 = smul.addr %s827, 4
          %s829 = scalar_lea.vmem [#allocation2], %s828
          %s831 = ssub.s32 64, 64
          %832 = vsyncadd %s826, %s831
          %s833 = smul.addr %s50, 64
          %s834 = scalar_lea.hbm %s1, %s833
          %s836 = sshll.u32 %s829, 4
          %s837 = int_to_ptr.vmem [resolvable:$true] %s836
          %839 = dma.hbm_to_vmem [thread:$0]  %s834, 64, %s837, %s826
        $region112: #{tpu_custom_call.1} parent=103 // pred_fallthru
          _
        // Predicated region
        $region113: #{tpu_custom_call.1} parent=103 // pred_check
          %p840 = pneg %p129
        $region114: #{tpu_custom_call.1} parent=103 // pred_check_branch
          %842 = sbr.rel (%p840) target = $region116
        $region115: #{tpu_custom_call.1} parent=103 // pred_region
          %p843 = scmp.lt.s32.totalorder %s50, 1
          %s844 = scalar_select %p843, %s50, 1
          %s845 = smul.addr %s844, 2
          %s846 = smul.addr %s845, 4
          %s847 = scalar_lea.vmem %s2, %s846
        $region116: #{tpu_custom_call.1} parent=103 // pred_fallthru
          _
      $region104: #{tpu_custom_call.1} parent=5 // pred_fallthru
        _
      %p848 = scmp.le.s32.totalorder 1, %s43
      %p849 = scmp.lt.s32.totalorder %s43, 3
      %p850 = pnand %p848, %p849
      %p851 = pneg %p850
      // Predicated region
      $region117: #{tpu_custom_call.1} parent=5 // pred_check
        _
      $region118: #{tpu_custom_call.1} parent=5 // pred_check_branch
        %853 = sbr.rel (%p850) target = $region120
      $region119: #{tpu_custom_call.1} parent=5 // pred_region
        %s854 = ssub.s32 %s43, 1
        %s855 = sand.u32 %s96, 1
        %s856 = scalar_lea.sflag [#allocation3], %s855
        %s857 = sand.u32 %s96, 1
        %s858 = smul.addr %s857, 4
        %s859 = scalar_lea.vmem [#allocation2], %s858
        // Predicated region
        $region121: #{tpu_custom_call.1} parent=119 // pred_check
          %p860 = pneg %p109
        $region122: #{tpu_custom_call.1} parent=119 // pred_check_branch
          %862 = sbr.rel (%p860) target = $region124
        $region123: #{tpu_custom_call.1} parent=119 // pred_region
          %863 = dma.done %s856, 64
        $region124: #{tpu_custom_call.1} parent=119 // pred_fallthru
          _
        // Predicated region
        $region125: #{tpu_custom_call.1} parent=119 // pred_check
          %p864 = pneg %p177
        $region126: #{tpu_custom_call.1} parent=119 // pred_check_branch
          %866 = sbr.rel (%p864) target = $region128
        $region127: #{tpu_custom_call.1} parent=119 // pred_region
          %867 = dma.done [#allocation6], 16
        $region128: #{tpu_custom_call.1} parent=119 // pred_fallthru
          _
        // Predicated region
        $region129: #{tpu_custom_call.1} parent=119 // pred_check
          %p868 = pneg %p198
        $region130: #{tpu_custom_call.1} parent=119 // pred_check_branch
          %870 = sbr.rel (%p868) target = $region132
        $region131: #{tpu_custom_call.1} parent=119 // pred_region
          %871 = dma.done [#allocation6], 256
        $region132: #{tpu_custom_call.1} parent=119 // pred_fallthru
          _
        // Predicated region
        $region133: #{tpu_custom_call.1} parent=119 // pred_check
          %p872 = pneg %p219
        $region134: #{tpu_custom_call.1} parent=119 // pred_check_branch
          %874 = sbr.rel (%p872) target = $region136
        $region135: #{tpu_custom_call.1} parent=119 // pred_region
          %875 = dma.done [#allocation9], 16
        $region136: #{tpu_custom_call.1} parent=119 // pred_fallthru
          _
        // Predicated region
        $region137: #{tpu_custom_call.1} parent=119 // pred_check
          %p876 = pneg %p240
        $region138: #{tpu_custom_call.1} parent=119 // pred_check_branch
          %878 = sbr.rel (%p876) target = $region140
        $region139: #{tpu_custom_call.1} parent=119 // pred_region
          %879 = dma.done [#allocation9], 256
        $region140: #{tpu_custom_call.1} parent=119 // pred_fallthru
          _
        // Predicated region
        $region141: #{tpu_custom_call.1} parent=119 // pred_check
          %p880 = pneg %p261
        $region142: #{tpu_custom_call.1} parent=119 // pred_check_branch
          %882 = sbr.rel (%p880) target = $region144
        $region143: #{tpu_custom_call.1} parent=119 // pred_region
          %883 = dma.done [#allocation12], 16
        $region144: #{tpu_custom_call.1} parent=119 // pred_fallthru
          _
        // Predicated region
        $region145: #{tpu_custom_call.1} parent=119 // pred_check
          %p884 = pneg %p282
        $region146: #{tpu_custom_call.1} parent=119 // pred_check_branch
          %886 = sbr.rel (%p884) target = $region148
        $region147: #{tpu_custom_call.1} parent=119 // pred_region
          %887 = dma.done [#allocation12], 16
        $region148: #{tpu_custom_call.1} parent=119 // pred_fallthru
          _
        // Predicated region
        $region149: #{tpu_custom_call.1} parent=119 // pred_check
          %p888 = pneg %p303
        $region150: #{tpu_custom_call.1} parent=119 // pred_check_branch
          %890 = sbr.rel (%p888) target = $region152
        $region151: #{tpu_custom_call.1} parent=119 // pred_region
          %891 = dma.done [#allocation15], 16
        $region152: #{tpu_custom_call.1} parent=119 // pred_fallthru
          _
        // Predicated region
        $region153: #{tpu_custom_call.1} parent=119 // pred_check
          %p892 = pneg %p345
        $region154: #{tpu_custom_call.1} parent=119 // pred_check_branch
          %894 = sbr.rel (%p892) target = $region156
        $region155: #{tpu_custom_call.1} parent=119 // pred_region
          %895 = dma.done [#allocation15], 16
        $region156: #{tpu_custom_call.1} parent=119 // pred_fallthru
          _
        // Predicated region
        $region157: #{tpu_custom_call.1} parent=119 // pred_check
          %p896 = pneg %p387
        $region158: #{tpu_custom_call.1} parent=119 // pred_check_branch
          %898 = sbr.rel (%p896) target = $region160
        $region159: #{tpu_custom_call.1} parent=119 // pred_region
          %899 = dma.done [#allocation18], 16
        $region160: #{tpu_custom_call.1} parent=119 // pred_fallthru
          _
        // Predicated region
        $region161: #{tpu_custom_call.1} parent=119 // pred_check
          %p900 = pneg %p408
        $region162: #{tpu_custom_call.1} parent=119 // pred_check_branch
          %902 = sbr.rel (%p900) target = $region164
        $region163: #{tpu_custom_call.1} parent=119 // pred_region
          %903 = dma.done [#allocation18], 256
        $region164: #{tpu_custom_call.1} parent=119 // pred_fallthru
          _
        // Predicated region
        $region165: #{tpu_custom_call.1} parent=119 // pred_check
          %p904 = pneg %p429
        $region166: #{tpu_custom_call.1} parent=119 // pred_check_branch
          %906 = sbr.rel (%p904) target = $region168
        $region167: #{tpu_custom_call.1} parent=119 // pred_region
          %907 = dma.done [#allocation21], 16
        $region168: #{tpu_custom_call.1} parent=119 // pred_fallthru
          _
        // Predicated region
        $region169: #{tpu_custom_call.1} parent=119 // pred_check
          %p908 = pneg %p450
        $region170: #{tpu_custom_call.1} parent=119 // pred_check_branch
          %910 = sbr.rel (%p908) target = $region172
        $region171: #{tpu_custom_call.1} parent=119 // pred_region
          %911 = dma.done [#allocation21], 16
        $region172: #{tpu_custom_call.1} parent=119 // pred_fallthru
          _
        %p912 = scmp.lt.s32.totalorder %s52, 1
        %s913 = scalar_select %p912, %s52, 1
        %p914 = scmp.lt.s32.totalorder %s53, 0
        %s915 = scalar_select %p914, %s53, 0
        %s916 = sadd.s32 %s915, %s913
        %s917 = smul.addr %s916, 8
        %s918 = scalar_lea.vmem %s0, %s917
        %p919 = pneg %p83
        %p920 = pneg %p80
        %s921 = sand.u32 %s96, 1
        %s922 = scalar_lea.sflag [#allocation3], %s921
        %s923 = sand.u32 %s96, 1
        %s924 = smul.addr %s923, 4
        %s925 = scalar_lea.vmem [#allocation2], %s924
        %p926 = pneg %p109
        %p927 = pneg %p106
        %p928 = scmp.lt.s32.totalorder %s52, 1
        %s929 = scalar_select %p928, %s52, 1
        %s930 = smul.addr %s929, 2
        %s931 = smul.addr %s930, 4
        %s932 = scalar_lea.vmem %s2, %s931
        %p933 = pneg %p135
        %p934 = pneg %p132
        %p935 = pneg %p156
        %p936 = pneg %p153
        %p937 = pneg %p177
        %p938 = pneg %p174
        %p939 = pneg %p198
        %p940 = pneg %p195
        %p941 = pneg %p219
        %p942 = pneg %p216
        %p943 = pneg %p240
        %p944 = pneg %p237
        %p945 = pneg %p261
        %p946 = pneg %p258
        %p947 = pneg %p282
        %p948 = pneg %p279
        %p949 = pneg %p303
        %p950 = pneg %p300
        %p951 = pneg %p324
        %p952 = pneg %p321
        %p953 = pneg %p345
        %p954 = pneg %p342
        %p955 = pneg %p366
        %p956 = pneg %p363
        %p957 = pneg %p387
        %p958 = pneg %p384
        %p959 = pneg %p408
        %p960 = pneg %p405
        %p961 = pneg %p429
        %p962 = pneg %p426
        %p963 = pneg %p450
        %p964 = pneg %p447
        %p965 = pneg %p471
        %p966 = pneg %p468
        %p967 = pneg %p492
        %p968 = pneg %p489
        %p969 = pneg %p513
        %p970 = pneg %p510
        %p971 = pneg %p534
        %p972 = pneg %p531
        %p973 = pneg %p555
        %p974 = pneg %p552
        %p975 = pneg %p576
        %p976 = pneg %p573
        %p977 = pneg %p597
        %p978 = pneg %p594
        %p979 = pneg %p625
        %p980 = pneg %p622
        %s981 = sand.u32 %s612, 1
        %s982 = scalar_lea.sflag [#allocation4], %s981
        %s983 = sand.u32 %s612, 1
        %s984 = smul.addr %s983, 8
        %s985 = scalar_lea.vmem [#allocation23], %s984
        %p986 = scmp.lt.s32.totalorder %s52, 1
        %s987 = scalar_select %p986, %s52, 1
        %p988 = scmp.lt.s32.totalorder %s53, 0
        %s989 = scalar_select %p988, %s53, 0
        %s990 = sadd.s32 %s989, %s987
        %s991 = smul.addr %s990, 8
        %s992 = scalar_lea.vmem %s0, %s991
        %p993 = scmp.lt.s32.totalorder %s52, 1
        %s994 = scalar_select %p993, %s52, 1
        %s995 = smul.addr %s994, 2
        %s996 = smul.addr %s995, 4
        %s997 = scalar_lea.vmem %s2, %s996
        %v999 = vld [vmem:[%s992] sm:$0xff]
        %v1000 = vld [vmem:[%s859] sm:$0xf]
        %v1001 = vld [vmem:[%s997] sm:$0xf]
        %v1002 = vld [vmem:[%s997 + $0x4] sm:$0xf]
        %v1003 = vpack.c.bf16 %v999, %v999
        %v1004 = vld [vmem:[%s3] sm:$0xf]
        %v1005 = vld [vmem:[%s3 + $0x4] sm:$0xf]
        %v1006 = vld [vmem:[%s3 + $0x8] sm:$0xf]
        %v1007 = vld [vmem:[%s3 + $0xc] sm:$0xf]
        %v1008 = vld [vmem:[#allocation5] sm:$0x1]
        %v1010 = vlaneseq
        %v1011 = vshrl.u32 %v1010, 7
        %v1012 = vsub.s32 0, %v1011
        %v1013 = vrot.slane %v1008, %v1012
        %v1019 = vunpack.c.l.b16 %v1004
        %v1020 = vunpack.c.l.b16 %v1005
        %v1021 = vunpack.c.l.b16 %v1006
        %v1022 = vunpack.c.l.b16 %v1007
        %v1023 = vpack.c.b16 %v1020, %v1019
        %v1024 = vpack.c.b16 %v1022, %v1021
        %vm1027 = vcmask 261120
        %v1029 = vsel %vm1027, %v1003, 0
        %1031 = vmatprep.subr.bf16.mxu0 0
        %1032 = vmatpush1.bf16.msra.mxu0 %v1023
        %1033 = vmatprep.subr.bf16.mxu0 0
        %1034 = vmatpush1.bf16.msra.mxu0 %v1024
        %1035 = vmatprep.subr.bf16.mxu0 0
        %1036 = vmatpush1.bf16.msra.mxu0 0
        %1037 = vmatprep.subr.bf16.mxu0 0
        %1038 = vmatpush1.bf16.msra.mxu0 0
        %1039 = vmatprep.subr.bf16.mxu0 0
        %1040 = vmatpush1.bf16.msra.mxu0 0
        %1041 = vmatprep.subr.bf16.mxu0 0
        %1042 = vmatpush1.bf16.msra.mxu0 0
        %1043 = vmatprep.subr.bf16.mxu0 0
        %1044 = vmatpush1.bf16.msra.mxu0 0
        %1045 = vmatprep.subr.bf16.mxu0 0
        %1046 = vmatpush1.bf16.msra.mxu0 0
        %1047 = vmatprep.subr.bf16.mxu0 0
        %1048 = vmatpush1.bf16.msra.mxu0 0
        %1049 = vmatprep.subr.bf16.mxu0 0
        %1050 = vmatpush1.bf16.msra.mxu0 0
        %1051 = vmatprep.subr.bf16.mxu0 0
        %1052 = vmatpush1.bf16.msra.mxu0 0
        %1053 = vmatprep.subr.bf16.mxu0 0
        %1054 = vmatpush1.bf16.msra.mxu0 0
        %1055 = vmatprep.subr.bf16.mxu0 0
        %1056 = vmatpush1.bf16.msra.mxu0 0
        %1057 = vmatprep.subr.bf16.mxu0 0
        %1058 = vmatpush1.bf16.msra.mxu0 0
        %1059 = vmatprep.subr.bf16.mxu0 0
        %1060 = vmatpush1.bf16.msra.mxu0 0
        %1061 = vmatprep.subr.bf16.mxu0 0
        %1062 = vmatpush1.bf16.msra.mxu0 0
        %1063 = vmatprep.mubr.bf16.mxu0 0
        %1064 = vmatmul.mubr.bf16.gmra.mrb[0].mxu0 %v1029
        %v1065 = vpop.f32.mrb[0].mxu0
        %v1066 = vadd.f32 %v1013, %v1065
        %v1067 = vpop.f32.mrb[0].mxu0
        %v1068 = vpop.f32.mrb[0].mxu0
        %v1069 = vpop.f32.mrb[0].mxu0
        %1070 = vdwg.mxu0
        %v1071 = vmul.f32 %v1066, 0.35355338
        %v1072 = vld [vmem:[#allocation7] sm:$0xf]
        %v1073 = vld [vmem:[#allocation7 + $0x4] sm:$0xf]
        %v1074 = vld [vmem:[#allocation7 + $0x8] sm:$0xf]
        %v1075 = vld [vmem:[#allocation7 + $0xc] sm:$0xf]
        %v1076 = vld [vmem:[#allocation8] sm:$0x1]
        %v1078 = vlaneseq
        %v1079 = vshrl.u32 %v1078, 7
        %v1080 = vsub.s32 0, %v1079
        %v1081 = vrot.slane %v1076, %v1080
        %v1087 = vunpack.c.l.b16 %v1072
        %v1088 = vunpack.c.l.b16 %v1073
        %v1089 = vunpack.c.l.b16 %v1074
        %v1090 = vunpack.c.l.b16 %v1075
        %v1091 = vpack.c.b16 %v1088, %v1087
        %v1092 = vpack.c.b16 %v1090, %v1089
        %v1096 = vsel %vm1027, %v1000, 0
        %1098 = vmatprep.subr.bf16.mxu0 0
        %1099 = vmatpush1.bf16.msra.mxu0 %v1091
        %1100 = vmatprep.subr.bf16.mxu0 0
        %1101 = vmatpush1.bf16.msra.mxu0 %v1092
        %1102 = vmatprep.subr.bf16.mxu0 0
        %1103 = vmatpush1.bf16.msra.mxu0 0
        %1104 = vmatprep.subr.bf16.mxu0 0
        %1105 = vmatpush1.bf16.msra.mxu0 0
        %1106 = vmatprep.subr.bf16.mxu0 0
        %1107 = vmatpush1.bf16.msra.mxu0 0
        %1108 = vmatprep.subr.bf16.mxu0 0
        %1109 = vmatpush1.bf16.msra.mxu0 0
        %1110 = vmatprep.subr.bf16.mxu0 0
        %1111 = vmatpush1.bf16.msra.mxu0 0
        %1112 = vmatprep.subr.bf16.mxu0 0
        %1113 = vmatpush1.bf16.msra.mxu0 0
        %1114 = vmatprep.subr.bf16.mxu0 0
        %1115 = vmatpush1.bf16.msra.mxu0 0
        %1116 = vmatprep.subr.bf16.mxu0 0
        %1117 = vmatpush1.bf16.msra.mxu0 0
        %1118 = vmatprep.subr.bf16.mxu0 0
        %1119 = vmatpush1.bf16.msra.mxu0 0
        %1120 = vmatprep.subr.bf16.mxu0 0
        %1121 = vmatpush1.bf16.msra.mxu0 0
        %1122 = vmatprep.subr.bf16.mxu0 0
        %1123 = vmatpush1.bf16.msra.mxu0 0
        %1124 = vmatprep.subr.bf16.mxu0 0
        %1125 = vmatpush1.bf16.msra.mxu0 0
        %1126 = vmatprep.subr.bf16.mxu0 0
        %1127 = vmatpush1.bf16.msra.mxu0 0
        %1128 = vmatprep.subr.bf16.mxu0 0
        %1129 = vmatpush1.bf16.msra.mxu0 0
        %1130 = vmatprep.mubr.bf16.mxu0 0
        %1131 = vmatmul.mubr.bf16.gmra.mrb[0].mxu0 %v1096
        %v1132 = vpop.f32.mrb[0].mxu0
        %v1133 = vadd.f32 %v1081, %v1132
        %v1134 = vpop.f32.mrb[0].mxu0
        %v1135 = vpop.f32.mrb[0].mxu0
        %v1136 = vpop.f32.mrb[0].mxu0
        %1137 = vdwg.mxu0
        %1138 = vxpose.xlu0.b32.start [1/16] %v1133, 128
        %1139 = vxpose.xlu0.b32.cont [2/16] 0.0, 128
        %1140 = vxpose.xlu0.b32.cont [3/16] 0.0, 128
        %1141 = vxpose.xlu0.b32.cont [4/16] 0.0, 128
        %1142 = vxpose.xlu0.b32.cont [5/16] 0.0, 128
        %1143 = vxpose.xlu0.b32.cont [6/16] 0.0, 128
        %1144 = vxpose.xlu0.b32.cont [7/16] 0.0, 128
        %1145 = vxpose.xlu0.b32.cont [8/16] 0.0, 128
        %1146 = vxpose.xlu0.b32.cont [9/16] 0.0, 128
        %1147 = vxpose.xlu0.b32.cont [10/16] 0.0, 128
        %1148 = vxpose.xlu0.b32.cont [11/16] 0.0, 128
        %1149 = vxpose.xlu0.b32.cont [12/16] 0.0, 128
        %1150 = vxpose.xlu0.b32.cont [13/16] 0.0, 128
        %1151 = vxpose.xlu0.b32.cont [14/16] 0.0, 128
        %1152 = vxpose.xlu0.b32.cont [15/16] 0.0, 128
        %1153 = vxpose.xlu0.b32.end [16/16] 0.0, 128
        %v1154 = vpop.trf.xlu0
        %v1155 = vpop.trf.xlu0
        %v1156 = vpop.trf.xlu0
        %v1157 = vpop.trf.xlu0
        %v1158 = vpop.trf.xlu0
        %v1159 = vpop.trf.xlu0
        %v1160 = vpop.trf.xlu0
        %v1161 = vpop.trf.xlu0
        %v1162 = vpop.trf.xlu0
        %v1163 = vpop.trf.xlu0
        %v1164 = vpop.trf.xlu0
        %v1165 = vpop.trf.xlu0
        %v1166 = vpop.trf.xlu0
        %v1167 = vpop.trf.xlu0
        %v1168 = vpop.trf.xlu0
        %v1169 = vpop.trf.xlu0
        %v1170 = vpack.c.bf16 %v1071, %v1071
        %v1171 = vpack.c.bf16 %v1154, %v1154
        %vm1172 = vcmask 64512
        %v1174 = vsel %vm1172, %v1170, 0
        %vm1176 = vcmask 1043456
        %v1178 = vsel %vm1176, %v1171, 0
        %1180 = vmatprep.subr.bf16.mxu0 0
        %1181 = vmatpush1.bf16.msra.mxu0 %v1178
        %1182 = vmatprep.subr.bf16.mxu0 0
        %1183 = vmatpush1.bf16.msra.mxu0 0
        %1184 = vmatprep.subr.bf16.mxu0 0
        %1185 = vmatpush1.bf16.msra.mxu0 0
        %1186 = vmatprep.subr.bf16.mxu0 0
        %1187 = vmatpush1.bf16.msra.mxu0 0
        %1188 = vmatprep.subr.bf16.mxu0 0
        %1189 = vmatpush1.bf16.msra.mxu0 0
        %1190 = vmatprep.subr.bf16.mxu0 0
        %1191 = vmatpush1.bf16.msra.mxu0 0
        %1192 = vmatprep.subr.bf16.mxu0 0
        %1193 = vmatpush1.bf16.msra.mxu0 0
        %1194 = vmatprep.subr.bf16.mxu0 0
        %1195 = vmatpush1.bf16.msra.mxu0 0
        %1196 = vmatprep.subr.bf16.mxu0 0
        %1197 = vmatpush1.bf16.msra.mxu0 0
        %1198 = vmatprep.subr.bf16.mxu0 0
        %1199 = vmatpush1.bf16.msra.mxu0 0
        %1200 = vmatprep.subr.bf16.mxu0 0
        %1201 = vmatpush1.bf16.msra.mxu0 0
        %1202 = vmatprep.subr.bf16.mxu0 0
        %1203 = vmatpush1.bf16.msra.mxu0 0
        %1204 = vmatprep.subr.bf16.mxu0 0
        %1205 = vmatpush1.bf16.msra.mxu0 0
        %1206 = vmatprep.subr.bf16.mxu0 0
        %1207 = vmatpush1.bf16.msra.mxu0 0
        %1208 = vmatprep.subr.bf16.mxu0 0
        %1209 = vmatpush1.bf16.msra.mxu0 0
        %1210 = vmatprep.subr.bf16.mxu0 0
        %1211 = vmatpush1.bf16.msra.mxu0 0
        %1212 = vmatprep.mubr.bf16.mxu0 0
        %1213 = vmatmul.mubr.bf16.gmra.mrb[0].mxu0 %v1174
        %v1214 = vpop.f32.mrb[0].mxu0
        %v1215 = vadd.f32 0.0, %v1214
        %v1216 = vpop.f32.mrb[0].mxu0
        %v1217 = vpop.f32.mrb[0].mxu0
        %v1218 = vpop.f32.mrb[0].mxu0
        %1219 = vdwg.mxu0
        %v1220 = vsel %vm1172, %v1215, -inf
        %1221 = vmax.xlane.f32.xlu0 %v1220
        %v1222 = vpop.xlane.xlu0 %1221
        %v1223 = vsub.f32 %v1215, %v1222
        %v1224 = vmul.f32 %v1223, 1.442695
        %v1225 = vpow.pop %v1224
        %v1226 = vsel %vm1172, %v1225, 0.0
        %1227 = vadd.xlane.f32.xlu0 %v1226
        %v1228 = vpop.xlane.xlu0 %1227
        %v1229 = vrcp.pop %v1228
        %v1230 = vmul.f32 %v1228, %v1229
        %v1231 = vsub.f32 2.0, %v1230
        %v1232 = vmul.f32 %v1229, %v1231
        %v1233 = vmul.f32 %v1225, %v1232
        %v1234 = vpack.c.bf16 %v1233, %v1233
        %v1235 = vpack.c.bf16 %v1133, %v1133
        %1237 = vrot.lane.b32.xlu0 %v1235, 96
        %v1238 = vpop.permute.xlu0 %1237
        %v1240 = vsel %vm1172, %v1234, 0
        %v1243 = vsel %vm1176, %v1238, 0
        %1245 = vmatprep.subr.bf16.mxu0 0
        %1246 = vmatpush1.bf16.msra.mxu0 %v1243
        %1247 = vmatprep.subr.bf16.mxu0 0
        %1248 = vmatpush1.bf16.msra.mxu0 0
        %1249 = vmatprep.subr.bf16.mxu0 0
        %1250 = vmatpush1.bf16.msra.mxu0 0
        %1251 = vmatprep.subr.bf16.mxu0 0
        %1252 = vmatpush1.bf16.msra.mxu0 0
        %1253 = vmatprep.subr.bf16.mxu0 0
        %1254 = vmatpush1.bf16.msra.mxu0 0
        %1255 = vmatprep.subr.bf16.mxu0 0
        %1256 = vmatpush1.bf16.msra.mxu0 0
        %1257 = vmatprep.subr.bf16.mxu0 0
        %1258 = vmatpush1.bf16.msra.mxu0 0
        %1259 = vmatprep.subr.bf16.mxu0 0
        %1260 = vmatpush1.bf16.msra.mxu0 0
        %1261 = vmatprep.subr.bf16.mxu0 0
        %1262 = vmatpush1.bf16.msra.mxu0 0
        %1263 = vmatprep.subr.bf16.mxu0 0
        %1264 = vmatpush1.bf16.msra.mxu0 0
        %1265 = vmatprep.subr.bf16.mxu0 0
        %1266 = vmatpush1.bf16.msra.mxu0 0
        %1267 = vmatprep.subr.bf16.mxu0 0
        %1268 = vmatpush1.bf16.msra.mxu0 0
        %1269 = vmatprep.subr.bf16.mxu0 0
        %1270 = vmatpush1.bf16.msra.mxu0 0
        %1271 = vmatprep.subr.bf16.mxu0 0
        %1272 = vmatpush1.bf16.msra.mxu0 0
        %1273 = vmatprep.subr.bf16.mxu0 0
        %1274 = vmatpush1.bf16.msra.mxu0 0
        %1275 = vmatprep.subr.bf16.mxu0 0
        %1276 = vmatpush1.bf16.msra.mxu0 0
        %1277 = vmatprep.mubr.bf16.mxu0 0
        %1278 = vmatmul.mubr.bf16.gmra.mrb[0].mxu0 %v1240
        %v1279 = vpop.f32.mrb[0].mxu0
        %v1280 = vadd.f32 0.0, %v1279
        %v1281 = vpop.f32.mrb[0].mxu0
        %v1282 = vpop.f32.mrb[0].mxu0
        %v1283 = vpop.f32.mrb[0].mxu0
        %1284 = vdwg.mxu0
        %v1285 = vpack.c.bf16 %v1280, %v1280
        %v1286 = vld [vmem:[#allocation10] sm:$0xf]
        %v1287 = vpack.c.bf16 %v1155, %v1155
        %1289 = vrot.lane.b32.xlu0 %v1170, 120
        %v1290 = vpop.permute.xlu0 %1289
        %v1292 = vsel %vm1172, %v1290, 0
        %v1295 = vsel %vm1176, %v1287, 0
        %1297 = vmatprep.subr.bf16.mxu0 0
        %1298 = vmatpush1.bf16.msra.mxu0 %v1295
        %1299 = vmatprep.subr.bf16.mxu0 0
        %1300 = vmatpush1.bf16.msra.mxu0 0
        %1301 = vmatprep.subr.bf16.mxu0 0
        %1302 = vmatpush1.bf16.msra.mxu0 0
        %1303 = vmatprep.subr.bf16.mxu0 0
        %1304 = vmatpush1.bf16.msra.mxu0 0
        %1305 = vmatprep.subr.bf16.mxu0 0
        %1306 = vmatpush1.bf16.msra.mxu0 0
        %1307 = vmatprep.subr.bf16.mxu0 0
        %1308 = vmatpush1.bf16.msra.mxu0 0
        %1309 = vmatprep.subr.bf16.mxu0 0
        %1310 = vmatpush1.bf16.msra.mxu0 0
        %1311 = vmatprep.subr.bf16.mxu0 0
        %1312 = vmatpush1.bf16.msra.mxu0 0
        %1313 = vmatprep.subr.bf16.mxu0 0
        %1314 = vmatpush1.bf16.msra.mxu0 0
        %1315 = vmatprep.subr.bf16.mxu0 0
        %1316 = vmatpush1.bf16.msra.mxu0 0
        %1317 = vmatprep.subr.bf16.mxu0 0
        %1318 = vmatpush1.bf16.msra.mxu0 0
        %1319 = vmatprep.subr.bf16.mxu0 0
        %1320 = vmatpush1.bf16.msra.mxu0 0
        %1321 = vmatprep.subr.bf16.mxu0 0
        %1322 = vmatpush1.bf16.msra.mxu0 0
        %1323 = vmatprep.subr.bf16.mxu0 0
        %1324 = vmatpush1.bf16.msra.mxu0 0
        %1325 = vmatprep.subr.bf16.mxu0 0
        %1326 = vmatpush1.bf16.msra.mxu0 0
        %1327 = vmatprep.subr.bf16.mxu0 0
        %1328 = vmatpush1.bf16.msra.mxu0 0
        %1329 = vmatprep.mubr.bf16.mxu0 0
        %1330 = vmatmul.mubr.bf16.gmra.mrb[0].mxu0 %v1292
        %v1331 = vpop.f32.mrb[0].mxu0
        %v1332 = vadd.f32 0.0, %v1331
        %v1333 = vpop.f32.mrb[0].mxu0
        %v1334 = vpop.f32.mrb[0].mxu0
        %v1335 = vpop.f32.mrb[0].mxu0
        %1336 = vdwg.mxu0
        %v1337 = vsel %vm1172, %v1332, -inf
        %1338 = vmax.xlane.f32.xlu0 %v1337
        %v1339 = vpop.xlane.xlu0 %1338
        %v1340 = vsub.f32 %v1332, %v1339
        %v1341 = vmul.f32 %v1340, 1.442695
        %v1342 = vpow.pop %v1341
        %v1343 = vsel %vm1172, %v1342, 0.0
        %1344 = vadd.xlane.f32.xlu0 %v1343
        %v1345 = vpop.xlane.xlu0 %1344
        %v1346 = vrcp.pop %v1345
        %v1347 = vmul.f32 %v1345, %v1346
        %v1348 = vsub.f32 2.0, %v1347
        %v1349 = vmul.f32 %v1346, %v1348
        %v1350 = vmul.f32 %v1342, %v1349
        %v1351 = vpack.c.bf16 %v1350, %v1350
        %1352 = vrot.lane.b32.xlu0 %v1235, 88
        %v1353 = vpop.permute.xlu0 %1352
        %v1355 = vsel %vm1172, %v1351, 0
        %v1358 = vsel %vm1176, %v1353, 0
        %1360 = vmatprep.subr.bf16.mxu0 0
        %1361 = vmatpush1.bf16.msra.mxu0 %v1358
        %1362 = vmatprep.subr.bf16.mxu0 0
        %1363 = vmatpush1.bf16.msra.mxu0 0
        %1364 = vmatprep.subr.bf16.mxu0 0
        %1365 = vmatpush1.bf16.msra.mxu0 0
        %1366 = vmatprep.subr.bf16.mxu0 0
        %1367 = vmatpush1.bf16.msra.mxu0 0
        %1368 = vmatprep.subr.bf16.mxu0 0
        %1369 = vmatpush1.bf16.msra.mxu0 0
        %1370 = vmatprep.subr.bf16.mxu0 0
        %1371 = vmatpush1.bf16.msra.mxu0 0
        %1372 = vmatprep.subr.bf16.mxu0 0
        %1373 = vmatpush1.bf16.msra.mxu0 0
        %1374 = vmatprep.subr.bf16.mxu0 0
        %1375 = vmatpush1.bf16.msra.mxu0 0
        %1376 = vmatprep.subr.bf16.mxu0 0
        %1377 = vmatpush1.bf16.msra.mxu0 0
        %1378 = vmatprep.subr.bf16.mxu0 0
        %1379 = vmatpush1.bf16.msra.mxu0 0
        %1380 = vmatprep.subr.bf16.mxu0 0
        %1381 = vmatpush1.bf16.msra.mxu0 0
        %1382 = vmatprep.subr.bf16.mxu0 0
        %1383 = vmatpush1.bf16.msra.mxu0 0
        %1384 = vmatprep.subr.bf16.mxu0 0
        %1385 = vmatpush1.bf16.msra.mxu0 0
        %1386 = vmatprep.subr.bf16.mxu0 0
        %1387 = vmatpush1.bf16.msra.mxu0 0
        %1388 = vmatprep.subr.bf16.mxu0 0
        %1389 = vmatpush1.bf16.msra.mxu0 0
        %1390 = vmatprep.subr.bf16.mxu0 0
        %1391 = vmatpush1.bf16.msra.mxu0 0
        %1392 = vmatprep.mubr.bf16.mxu0 0
        %1393 = vmatmul.mubr.bf16.gmra.mrb[0].mxu0 %v1355
        %v1394 = vpop.f32.mrb[0].mxu0
        %v1395 = vadd.f32 0.0, %v1394
        %v1396 = vpop.f32.mrb[0].mxu0
        %v1397 = vpop.f32.mrb[0].mxu0
        %v1398 = vpop.f32.mrb[0].mxu0
        %1399 = vdwg.mxu0
        %v1400 = vpack.c.bf16 %v1395, %v1395
        %s1401 = scalar_lea.vmem [#allocation10], 4
        %v1402 = vld [vmem:[%s1401] sm:$0xf]
        %v1404 = vsel %vm1172, %v1400, 0
        %v1407 = vsel %vm1176, %v1402, 0
        %1409 = vmatprep.subr.bf16.mxu0 0
        %1410 = vmatpush1.bf16.msra.mxu0 %v1407
        %1411 = vmatprep.subr.bf16.mxu0 0
        %1412 = vmatpush1.bf16.msra.mxu0 0
        %1413 = vmatprep.subr.bf16.mxu0 0
        %1414 = vmatpush1.bf16.msra.mxu0 0
        %1415 = vmatprep.subr.bf16.mxu0 0
        %1416 = vmatpush1.bf16.msra.mxu0 0
        %1417 = vmatprep.subr.bf16.mxu0 0
        %1418 = vmatpush1.bf16.msra.mxu0 0
        %1419 = vmatprep.subr.bf16.mxu0 0
        %1420 = vmatpush1.bf16.msra.mxu0 0
        %1421 = vmatprep.subr.bf16.mxu0 0
        %1422 = vmatpush1.bf16.msra.mxu0 0
        %1423 = vmatprep.subr.bf16.mxu0 0
        %1424 = vmatpush1.bf16.msra.mxu0 0
        %1425 = vmatprep.subr.bf16.mxu0 0
        %1426 = vmatpush1.bf16.msra.mxu0 0
        %1427 = vmatprep.subr.bf16.mxu0 0
        %1428 = vmatpush1.bf16.msra.mxu0 0
        %1429 = vmatprep.subr.bf16.mxu0 0
        %1430 = vmatpush1.bf16.msra.mxu0 0
        %1431 = vmatprep.subr.bf16.mxu0 0
        %1432 = vmatpush1.bf16.msra.mxu0 0
        %1433 = vmatprep.subr.bf16.mxu0 0
        %1434 = vmatpush1.bf16.msra.mxu0 0
        %1435 = vmatprep.subr.bf16.mxu0 0
        %1436 = vmatpush1.bf16.msra.mxu0 0
        %1437 = vmatprep.subr.bf16.mxu0 0
        %1438 = vmatpush1.bf16.msra.mxu0 0
        %1439 = vmatprep.subr.bf16.mxu0 0
        %1440 = vmatpush1.bf16.msra.mxu0 0
        %1441 = vmatprep.mubr.bf16.mxu0 0
        %1442 = vmatmul.mubr.bf16.gmra.mrb[0].mxu0 %v1404
        %v1443 = vpop.f32.mrb[0].mxu0
        %v1444 = vadd.f32 0.0, %v1443
        %v1445 = vpop.f32.mrb[0].mxu0
        %v1446 = vpop.f32.mrb[0].mxu0
        %v1447 = vpop.f32.mrb[0].mxu0
        %1448 = vdwg.mxu0
        %v1450 = vsel %vm1172, %v1285, 0
        %v1453 = vsel %vm1176, %v1286, 0
        %1455 = vmatprep.subr.bf16.mxu0 0
        %1456 = vmatpush1.bf16.msra.mxu0 %v1453
        %1457 = vmatprep.subr.bf16.mxu0 0
        %1458 = vmatpush1.bf16.msra.mxu0 0
        %1459 = vmatprep.subr.bf16.mxu0 0
        %1460 = vmatpush1.bf16.msra.mxu0 0
        %1461 = vmatprep.subr.bf16.mxu0 0
        %1462 = vmatpush1.bf16.msra.mxu0 0
        %1463 = vmatprep.subr.bf16.mxu0 0
        %1464 = vmatpush1.bf16.msra.mxu0 0
        %1465 = vmatprep.subr.bf16.mxu0 0
        %1466 = vmatpush1.bf16.msra.mxu0 0
        %1467 = vmatprep.subr.bf16.mxu0 0
        %1468 = vmatpush1.bf16.msra.mxu0 0
        %1469 = vmatprep.subr.bf16.mxu0 0
        %1470 = vmatpush1.bf16.msra.mxu0 0
        %1471 = vmatprep.subr.bf16.mxu0 0
        %1472 = vmatpush1.bf16.msra.mxu0 0
        %1473 = vmatprep.subr.bf16.mxu0 0
        %1474 = vmatpush1.bf16.msra.mxu0 0
        %1475 = vmatprep.subr.bf16.mxu0 0
        %1476 = vmatpush1.bf16.msra.mxu0 0
        %1477 = vmatprep.subr.bf16.mxu0 0
        %1478 = vmatpush1.bf16.msra.mxu0 0
        %1479 = vmatprep.subr.bf16.mxu0 0
        %1480 = vmatpush1.bf16.msra.mxu0 0
        %1481 = vmatprep.subr.bf16.mxu0 0
        %1482 = vmatpush1.bf16.msra.mxu0 0
        %1483 = vmatprep.subr.bf16.mxu0 0
        %1484 = vmatpush1.bf16.msra.mxu0 0
        %1485 = vmatprep.subr.bf16.mxu0 0
        %1486 = vmatpush1.bf16.msra.mxu0 0
        %1487 = vmatprep.mubr.bf16.mxu0 0
        %1488 = vmatmul.mubr.bf16.gmra.mrb[0].mxu0 %v1450
        %v1489 = vpop.f32.mrb[0].mxu0
        %v1490 = vadd.f32 %v1444, %v1489
        %v1491 = vpop.f32.mrb[0].mxu0
        %v1492 = vpop.f32.mrb[0].mxu0
        %v1493 = vpop.f32.mrb[0].mxu0
        %1494 = vdwg.mxu0
        %v1495 = vpack.c.bf16 %v1156, %v1156
        %1496 = vrot.lane.b32.xlu0 %v1170, 112
        %v1497 = vpop.permute.xlu0 %1496
        %v1499 = vsel %vm1172, %v1497, 0
        %v1502 = vsel %vm1176, %v1495, 0
        %1504 = vmatprep.subr.bf16.mxu0 0
        %1505 = vmatpush1.bf16.msra.mxu0 %v1502
        %1506 = vmatprep.subr.bf16.mxu0 0
        %1507 = vmatpush1.bf16.msra.mxu0 0
        %1508 = vmatprep.subr.bf16.mxu0 0
        %1509 = vmatpush1.bf16.msra.mxu0 0
        %1510 = vmatprep.subr.bf16.mxu0 0
        %1511 = vmatpush1.bf16.msra.mxu0 0
        %1512 = vmatprep.subr.bf16.mxu0 0
        %1513 = vmatpush1.bf16.msra.mxu0 0
        %1514 = vmatprep.subr.bf16.mxu0 0
        %1515 = vmatpush1.bf16.msra.mxu0 0
        %1516 = vmatprep.subr.bf16.mxu0 0
        %1517 = vmatpush1.bf16.msra.mxu0 0
        %1518 = vmatprep.subr.bf16.mxu0 0
        %1519 = vmatpush1.bf16.msra.mxu0 0
        %1520 = vmatprep.subr.bf16.mxu0 0
        %1521 = vmatpush1.bf16.msra.mxu0 0
        %1522 = vmatprep.subr.bf16.mxu0 0
        %1523 = vmatpush1.bf16.msra.mxu0 0
        %1524 = vmatprep.subr.bf16.mxu0 0
        %1525 = vmatpush1.bf16.msra.mxu0 0
        %1526 = vmatprep.subr.bf16.mxu0 0
        %1527 = vmatpush1.bf16.msra.mxu0 0
        %1528 = vmatprep.subr.bf16.mxu0 0
        %1529 = vmatpush1.bf16.msra.mxu0 0
        %1530 = vmatprep.subr.bf16.mxu0 0
        %1531 = vmatpush1.bf16.msra.mxu0 0
        %1532 = vmatprep.subr.bf16.mxu0 0
        %1533 = vmatpush1.bf16.msra.mxu0 0
        %1534 = vmatprep.subr.bf16.mxu0 0
        %1535 = vmatpush1.bf16.msra.mxu0 0
        %1536 = vmatprep.mubr.bf16.mxu0 0
        %1537 = vmatmul.mubr.bf16.gmra.mrb[0].mxu0 %v1499
        %v1538 = vpop.f32.mrb[0].mxu0
        %v1539 = vadd.f32 0.0, %v1538
        %v1540 = vpop.f32.mrb[0].mxu0
        %v1541 = vpop.f32.mrb[0].mxu0
        %v1542 = vpop.f32.mrb[0].mxu0
        %1543 = vdwg.mxu0
        %v1544 = vsel %vm1172, %v1539, -inf
        %1545 = vmax.xlane.f32.xlu0 %v1544
        %v1546 = vpop.xlane.xlu0 %1545
        %v1547 = vsub.f32 %v1539, %v1546
        %v1548 = vmul.f32 %v1547, 1.442695
        %v1549 = vpow.pop %v1548
        %v1550 = vsel %vm1172, %v1549, 0.0
        %1551 = vadd.xlane.f32.xlu0 %v1550
        %v1552 = vpop.xlane.xlu0 %1551
        %v1553 = vrcp.pop %v1552
        %v1554 = vmul.f32 %v1552, %v1553
        %v1555 = vsub.f32 2.0, %v1554
        %v1556 = vmul.f32 %v1553, %v1555
        %v1557 = vmul.f32 %v1549, %v1556
        %v1558 = vpack.c.bf16 %v1557, %v1557
        %1559 = vrot.lane.b32.xlu0 %v1235, 80
        %v1560 = vpop.permute.xlu0 %1559
        %v1562 = vsel %vm1172, %v1558, 0
        %v1565 = vsel %vm1176, %v1560, 0
        %1567 = vmatprep.subr.bf16.mxu0 0
        %1568 = vmatpush1.bf16.msra.mxu0 %v1565
        %1569 = vmatprep.subr.bf16.mxu0 0
        %1570 = vmatpush1.bf16.msra.mxu0 0
        %1571 = vmatprep.subr.bf16.mxu0 0
        %1572 = vmatpush1.bf16.msra.mxu0 0
        %1573 = vmatprep.subr.bf16.mxu0 0
        %1574 = vmatpush1.bf16.msra.mxu0 0
        %1575 = vmatprep.subr.bf16.mxu0 0
        %1576 = vmatpush1.bf16.msra.mxu0 0
        %1577 = vmatprep.subr.bf16.mxu0 0
        %1578 = vmatpush1.bf16.msra.mxu0 0
        %1579 = vmatprep.subr.bf16.mxu0 0
        %1580 = vmatpush1.bf16.msra.mxu0 0
        %1581 = vmatprep.subr.bf16.mxu0 0
        %1582 = vmatpush1.bf16.msra.mxu0 0
        %1583 = vmatprep.subr.bf16.mxu0 0
        %1584 = vmatpush1.bf16.msra.mxu0 0
        %1585 = vmatprep.subr.bf16.mxu0 0
        %1586 = vmatpush1.bf16.msra.mxu0 0
        %1587 = vmatprep.subr.bf16.mxu0 0
        %1588 = vmatpush1.bf16.msra.mxu0 0
        %1589 = vmatprep.subr.bf16.mxu0 0
        %1590 = vmatpush1.bf16.msra.mxu0 0
        %1591 = vmatprep.subr.bf16.mxu0 0
        %1592 = vmatpush1.bf16.msra.mxu0 0
        %1593 = vmatprep.subr.bf16.mxu0 0
        %1594 = vmatpush1.bf16.msra.mxu0 0
        %1595 = vmatprep.subr.bf16.mxu0 0
        %1596 = vmatpush1.bf16.msra.mxu0 0
        %1597 = vmatprep.subr.bf16.mxu0 0
        %1598 = vmatpush1.bf16.msra.mxu0 0
        %1599 = vmatprep.mubr.bf16.mxu0 0
        %1600 = vmatmul.mubr.bf16.gmra.mrb[0].mxu0 %v1562
        %v1601 = vpop.f32.mrb[0].mxu0
        %v1602 = vadd.f32 0.0, %v1601
        %v1603 = vpop.f32.mrb[0].mxu0
        %v1604 = vpop.f32.mrb[0].mxu0
        %v1605 = vpop.f32.mrb[0].mxu0
        %1606 = vdwg.mxu0
        %v1607 = vpack.c.bf16 %v1602, %v1602
        %s1608 = scalar_lea.vmem [#allocation10], 8
        %v1609 = vld [vmem:[%s1608] sm:$0xf]
        %v1611 = vsel %vm1172, %v1607, 0
        %v1614 = vsel %vm1176, %v1609, 0
        %1616 = vmatprep.subr.bf16.mxu0 0
        %1617 = vmatpush1.bf16.msra.mxu0 %v1614
        %1618 = vmatprep.subr.bf16.mxu0 0
        %1619 = vmatpush1.bf16.msra.mxu0 0
        %1620 = vmatprep.subr.bf16.mxu0 0
        %1621 = vmatpush1.bf16.msra.mxu0 0
        %1622 = vmatprep.subr.bf16.mxu0 0
        %1623 = vmatpush1.bf16.msra.mxu0 0
        %1624 = vmatprep.subr.bf16.mxu0 0
        %1625 = vmatpush1.bf16.msra.mxu0 0
        %1626 = vmatprep.subr.bf16.mxu0 0
        %1627 = vmatpush1.bf16.msra.mxu0 0
        %1628 = vmatprep.subr.bf16.mxu0 0
        %1629 = vmatpush1.bf16.msra.mxu0 0
        %1630 = vmatprep.subr.bf16.mxu0 0
        %1631 = vmatpush1.bf16.msra.mxu0 0
        %1632 = vmatprep.subr.bf16.mxu0 0
        %1633 = vmatpush1.bf16.msra.mxu0 0
        %1634 = vmatprep.subr.bf16.mxu0 0
        %1635 = vmatpush1.bf16.msra.mxu0 0
        %1636 = vmatprep.subr.bf16.mxu0 0
        %1637 = vmatpush1.bf16.msra.mxu0 0
        %1638 = vmatprep.subr.bf16.mxu0 0
        %1639 = vmatpush1.bf16.msra.mxu0 0
        %1640 = vmatprep.subr.bf16.mxu0 0
        %1641 = vmatpush1.bf16.msra.mxu0 0
        %1642 = vmatprep.subr.bf16.mxu0 0
        %1643 = vmatpush1.bf16.msra.mxu0 0
        %1644 = vmatprep.subr.bf16.mxu0 0
        %1645 = vmatpush1.bf16.msra.mxu0 0
        %1646 = vmatprep.subr.bf16.mxu0 0
        %1647 = vmatpush1.bf16.msra.mxu0 0
        %1648 = vmatprep.mubr.bf16.mxu0 0
        %1649 = vmatmul.mubr.bf16.gmra.mrb[0].mxu0 %v1611
        %v1650 = vpop.f32.mrb[0].mxu0
        %v1651 = vadd.f32 0.0, %v1650
        %v1652 = vpop.f32.mrb[0].mxu0
        %v1653 = vpop.f32.mrb[0].mxu0
        %v1654 = vpop.f32.mrb[0].mxu0
        %1655 = vdwg.mxu0
        %v1656 = vadd.f32 %v1490, %v1651
        %v1657 = vpack.c.bf16 %v1157, %v1157
        %1658 = vrot.lane.b32.xlu0 %v1170, 104
        %v1659 = vpop.permute.xlu0 %1658
        %v1661 = vsel %vm1172, %v1659, 0
        %v1664 = vsel %vm1176, %v1657, 0
        %1666 = vmatprep.subr.bf16.mxu0 0
        %1667 = vmatpush1.bf16.msra.mxu0 %v1664
        %1668 = vmatprep.subr.bf16.mxu0 0
        %1669 = vmatpush1.bf16.msra.mxu0 0
        %1670 = vmatprep.subr.bf16.mxu0 0
        %1671 = vmatpush1.bf16.msra.mxu0 0
        %1672 = vmatprep.subr.bf16.mxu0 0
        %1673 = vmatpush1.bf16.msra.mxu0 0
        %1674 = vmatprep.subr.bf16.mxu0 0
        %1675 = vmatpush1.bf16.msra.mxu0 0
        %1676 = vmatprep.subr.bf16.mxu0 0
        %1677 = vmatpush1.bf16.msra.mxu0 0
        %1678 = vmatprep.subr.bf16.mxu0 0
        %1679 = vmatpush1.bf16.msra.mxu0 0
        %1680 = vmatprep.subr.bf16.mxu0 0
        %1681 = vmatpush1.bf16.msra.mxu0 0
        %1682 = vmatprep.subr.bf16.mxu0 0
        %1683 = vmatpush1.bf16.msra.mxu0 0
        %1684 = vmatprep.subr.bf16.mxu0 0
        %1685 = vmatpush1.bf16.msra.mxu0 0
        %1686 = vmatprep.subr.bf16.mxu0 0
        %1687 = vmatpush1.bf16.msra.mxu0 0
        %1688 = vmatprep.subr.bf16.mxu0 0
        %1689 = vmatpush1.bf16.msra.mxu0 0
        %1690 = vmatprep.subr.bf16.mxu0 0
        %1691 = vmatpush1.bf16.msra.mxu0 0
        %1692 = vmatprep.subr.bf16.mxu0 0
        %1693 = vmatpush1.bf16.msra.mxu0 0
        %1694 = vmatprep.subr.bf16.mxu0 0
        %1695 = vmatpush1.bf16.msra.mxu0 0
        %1696 = vmatprep.subr.bf16.mxu0 0
        %1697 = vmatpush1.bf16.msra.mxu0 0
        %1698 = vmatprep.mubr.bf16.mxu0 0
        %1699 = vmatmul.mubr.bf16.gmra.mrb[0].mxu0 %v1661
        %v1700 = vpop.f32.mrb[0].mxu0
        %v1701 = vadd.f32 0.0, %v1700
        %v1702 = vpop.f32.mrb[0].mxu0
        %v1703 = vpop.f32.mrb[0].mxu0
        %v1704 = vpop.f32.mrb[0].mxu0
        %1705 = vdwg.mxu0
        %v1706 = vsel %vm1172, %v1701, -inf
        %1707 = vmax.xlane.f32.xlu0 %v1706
        %v1708 = vpop.xlane.xlu0 %1707
        %v1709 = vsub.f32 %v1701, %v1708
        %v1710 = vmul.f32 %v1709, 1.442695
        %v1711 = vpow.pop %v1710
        %v1712 = vsel %vm1172, %v1711, 0.0
        %1713 = vadd.xlane.f32.xlu0 %v1712
        %v1714 = vpop.xlane.xlu0 %1713
        %v1715 = vrcp.pop %v1714
        %v1716 = vmul.f32 %v1714, %v1715
        %v1717 = vsub.f32 2.0, %v1716
        %v1718 = vmul.f32 %v1715, %v1717
        %v1719 = vmul.f32 %v1711, %v1718
        %v1720 = vpack.c.bf16 %v1719, %v1719
        %1721 = vrot.lane.b32.xlu0 %v1235, 72
        %v1722 = vpop.permute.xlu0 %1721
        %v1724 = vsel %vm1172, %v1720, 0
        %v1727 = vsel %vm1176, %v1722, 0
        %1729 = vmatprep.subr.bf16.mxu0 0
        %1730 = vmatpush1.bf16.msra.mxu0 %v1727
        %1731 = vmatprep.subr.bf16.mxu0 0
        %1732 = vmatpush1.bf16.msra.mxu0 0
        %1733 = vmatprep.subr.bf16.mxu0 0
        %1734 = vmatpush1.bf16.msra.mxu0 0
        %1735 = vmatprep.subr.bf16.mxu0 0
        %1736 = vmatpush1.bf16.msra.mxu0 0
        %1737 = vmatprep.subr.bf16.mxu0 0
        %1738 = vmatpush1.bf16.msra.mxu0 0
        %1739 = vmatprep.subr.bf16.mxu0 0
        %1740 = vmatpush1.bf16.msra.mxu0 0
        %1741 = vmatprep.subr.bf16.mxu0 0
        %1742 = vmatpush1.bf16.msra.mxu0 0
        %1743 = vmatprep.subr.bf16.mxu0 0
        %1744 = vmatpush1.bf16.msra.mxu0 0
        %1745 = vmatprep.subr.bf16.mxu0 0
        %1746 = vmatpush1.bf16.msra.mxu0 0
        %1747 = vmatprep.subr.bf16.mxu0 0
        %1748 = vmatpush1.bf16.msra.mxu0 0
        %1749 = vmatprep.subr.bf16.mxu0 0
        %1750 = vmatpush1.bf16.msra.mxu0 0
        %1751 = vmatprep.subr.bf16.mxu0 0
        %1752 = vmatpush1.bf16.msra.mxu0 0
        %1753 = vmatprep.subr.bf16.mxu0 0
        %1754 = vmatpush1.bf16.msra.mxu0 0
        %1755 = vmatprep.subr.bf16.mxu0 0
        %1756 = vmatpush1.bf16.msra.mxu0 0
        %1757 = vmatprep.subr.bf16.mxu0 0
        %1758 = vmatpush1.bf16.msra.mxu0 0
        %1759 = vmatprep.subr.bf16.mxu0 0
        %1760 = vmatpush1.bf16.msra.mxu0 0
        %1761 = vmatprep.mubr.bf16.mxu0 0
        %1762 = vmatmul.mubr.bf16.gmra.mrb[0].mxu0 %v1724
        %v1763 = vpop.f32.mrb[0].mxu0
        %v1764 = vadd.f32 0.0, %v1763
        %v1765 = vpop.f32.mrb[0].mxu0
        %v1766 = vpop.f32.mrb[0].mxu0
        %v1767 = vpop.f32.mrb[0].mxu0
        %1768 = vdwg.mxu0
        %v1769 = vpack.c.bf16 %v1764, %v1764
        %s1770 = scalar_lea.vmem [#allocation10], 12
        %v1771 = vld [vmem:[%s1770] sm:$0xf]
        %v1773 = vsel %vm1172, %v1769, 0
        %v1776 = vsel %vm1176, %v1771, 0
        %1778 = vmatprep.subr.bf16.mxu0 0
        %1779 = vmatpush1.bf16.msra.mxu0 %v1776
        %1780 = vmatprep.subr.bf16.mxu0 0
        %1781 = vmatpush1.bf16.msra.mxu0 0
        %1782 = vmatprep.subr.bf16.mxu0 0
        %1783 = vmatpush1.bf16.msra.mxu0 0
        %1784 = vmatprep.subr.bf16.mxu0 0
        %1785 = vmatpush1.bf16.msra.mxu0 0
        %1786 = vmatprep.subr.bf16.mxu0 0
        %1787 = vmatpush1.bf16.msra.mxu0 0
        %1788 = vmatprep.subr.bf16.mxu0 0
        %1789 = vmatpush1.bf16.msra.mxu0 0
        %1790 = vmatprep.subr.bf16.mxu0 0
        %1791 = vmatpush1.bf16.msra.mxu0 0
        %1792 = vmatprep.subr.bf16.mxu0 0
        %1793 = vmatpush1.bf16.msra.mxu0 0
        %1794 = vmatprep.subr.bf16.mxu0 0
        %1795 = vmatpush1.bf16.msra.mxu0 0
        %1796 = vmatprep.subr.bf16.mxu0 0
        %1797 = vmatpush1.bf16.msra.mxu0 0
        %1798 = vmatprep.subr.bf16.mxu0 0
        %1799 = vmatpush1.bf16.msra.mxu0 0
        %1800 = vmatprep.subr.bf16.mxu0 0
        %1801 = vmatpush1.bf16.msra.mxu0 0
        %1802 = vmatprep.subr.bf16.mxu0 0
        %1803 = vmatpush1.bf16.msra.mxu0 0
        %1804 = vmatprep.subr.bf16.mxu0 0
        %1805 = vmatpush1.bf16.msra.mxu0 0
        %1806 = vmatprep.subr.bf16.mxu0 0
        %1807 = vmatpush1.bf16.msra.mxu0 0
        %1808 = vmatprep.subr.bf16.mxu0 0
        %1809 = vmatpush1.bf16.msra.mxu0 0
        %1810 = vmatprep.mubr.bf16.mxu0 0
        %1811 = vmatmul.mubr.bf16.gmra.mrb[0].mxu0 %v1773
        %v1812 = vpop.f32.mrb[0].mxu0
        %v1813 = vadd.f32 0.0, %v1812
        %v1814 = vpop.f32.mrb[0].mxu0
        %v1815 = vpop.f32.mrb[0].mxu0
        %v1816 = vpop.f32.mrb[0].mxu0
        %1817 = vdwg.mxu0
        %v1818 = vadd.f32 %v1656, %v1813
        %v1819 = vld [vmem:[#allocation11] sm:$0x1]
        %v1821 = vlaneseq
        %v1822 = vshrl.u32 %v1821, 7
        %v1823 = vsub.s32 0, %v1822
        %v1824 = vrot.slane %v1819, %v1823
        %v1826 = vadd.f32 %v1818, %v1824
        %v1827 = vadd.f32 %v1826, %v999
        %v1828 = vld [vmem:[#allocation13] sm:$0x1]
        %v1829 = vld [vmem:[#allocation14] sm:$0x1]
        %v1830 = vsel %vm1027, %v1827, 0.0
        %1831 = vadd.xlane.f32.xlu0 %v1830
        %v1832 = vpop.xlane.xlu0 %1831
        %v1833 = vrcp.pop 32.0
        %v1834 = vmul.f32 %v1832, %v1833
        %v1835 = vmul.f32 %v1827, %v1827
        %v1836 = vsel %vm1027, %v1835, 0.0
        %1837 = vadd.xlane.f32.xlu0 %v1836
        %v1838 = vpop.xlane.xlu0 %1837
        %v1839 = vmul.f32 %v1838, %v1833
        %v1840 = vmul.f32 %v1834, %v1834
        %v1841 = vsub.f32 %v1839, %v1840
        %v1842 = vmax.f32 %v1841, 0.0
        %v1843 = vsub.f32 %v1827, %v1834
        %v1844 = vadd.f32 %v1842, 1e-05
        %v1845 = vrsqrt.pop %v1844
        %v1846 = vmul.f32 %v1843, %v1845
        %v1848 = vlaneseq
        %v1849 = vshrl.u32 %v1848, 7
        %v1850 = vsub.s32 0, %v1849
        %v1851 = vrot.slane %v1828, %v1850
        %v1853 = vmul.f32 %v1846, %v1851
        %v1855 = vlaneseq
        %v1856 = vshrl.u32 %v1855, 7
        %v1857 = vsub.s32 0, %v1856
        %v1858 = vrot.slane %v1829, %v1857
        %v1860 = vadd.f32 %v1853, %v1858
        %v1861 = vpack.c.bf16 %v1860, %v1860
        %v1862 = vld [vmem:[%s11] sm:$0xf]
        %v1863 = vld [vmem:[%s11 + $0x4] sm:$0xf]
        %v1864 = vld [vmem:[%s11 + $0x8] sm:$0xf]
        %v1865 = vld [vmem:[%s11 + $0xc] sm:$0xf]
        %v1866 = vld [vmem:[#allocation16] sm:$0x1]
        %v1868 = vlaneseq
        %v1869 = vshrl.u32 %v1868, 7
        %v1870 = vsub.s32 0, %v1869
        %v1871 = vrot.slane %v1866, %v1870
        %v1877 = vunpack.c.l.b16 %v1862
        %v1878 = vunpack.c.l.b16 %v1863
        %v1879 = vunpack.c.l.b16 %v1864
        %v1880 = vunpack.c.l.b16 %v1865
        %v1881 = vpack.c.b16 %v1878, %v1877
        %v1882 = vpack.c.b16 %v1880, %v1879
        %v1886 = vsel %vm1027, %v1861, 0
        %1888 = vmatprep.subr.bf16.mxu0 0
        %1889 = vmatpush1.bf16.msra.mxu0 %v1881
        %1890 = vmatprep.subr.bf16.mxu0 0
        %1891 = vmatpush1.bf16.msra.mxu0 %v1882
        %1892 = vmatprep.subr.bf16.mxu0 0
        %1893 = vmatpush1.bf16.msra.mxu0 0
        %1894 = vmatprep.subr.bf16.mxu0 0
        %1895 = vmatpush1.bf16.msra.mxu0 0
        %1896 = vmatprep.subr.bf16.mxu0 0
        %1897 = vmatpush1.bf16.msra.mxu0 0
        %1898 = vmatprep.subr.bf16.mxu0 0
        %1899 = vmatpush1.bf16.msra.mxu0 0
        %1900 = vmatprep.subr.bf16.mxu0 0
        %1901 = vmatpush1.bf16.msra.mxu0 0
        %1902 = vmatprep.subr.bf16.mxu0 0
        %1903 = vmatpush1.bf16.msra.mxu0 0
        %1904 = vmatprep.subr.bf16.mxu0 0
        %1905 = vmatpush1.bf16.msra.mxu0 0
        %1906 = vmatprep.subr.bf16.mxu0 0
        %1907 = vmatpush1.bf16.msra.mxu0 0
        %1908 = vmatprep.subr.bf16.mxu0 0
        %1909 = vmatpush1.bf16.msra.mxu0 0
        %1910 = vmatprep.subr.bf16.mxu0 0
        %1911 = vmatpush1.bf16.msra.mxu0 0
        %1912 = vmatprep.subr.bf16.mxu0 0
        %1913 = vmatpush1.bf16.msra.mxu0 0
        %1914 = vmatprep.subr.bf16.mxu0 0
        %1915 = vmatpush1.bf16.msra.mxu0 0
        %1916 = vmatprep.subr.bf16.mxu0 0
        %1917 = vmatpush1.bf16.msra.mxu0 0
        %1918 = vmatprep.subr.bf16.mxu0 0
        %1919 = vmatpush1.bf16.msra.mxu0 0
        %1920 = vmatprep.mubr.bf16.mxu0 0
        %1921 = vmatmul.mubr.bf16.gmra.mrb[0].mxu0 %v1886
        %v1922 = vpop.f32.mrb[0].mxu0
        %v1923 = vadd.f32 %v1871, %v1922
        %v1924 = vpop.f32.mrb[0].mxu0
        %v1925 = vpop.f32.mrb[0].mxu0
        %v1926 = vpop.f32.mrb[0].mxu0
        %1927 = vdwg.mxu0
        %v1928 = vmul.f32 %v1923, 0.35355338
        %v1929 = vld [vmem:[%s13] sm:$0xf]
        %v1930 = vld [vmem:[%s13 + $0x4] sm:$0xf]
        %v1931 = vld [vmem:[%s13 + $0x8] sm:$0xf]
        %v1932 = vld [vmem:[%s13 + $0xc] sm:$0xf]
        %v1933 = vld [vmem:[#allocation17] sm:$0x1]
        %v1935 = vlaneseq
        %v1936 = vshrl.u32 %v1935, 7
        %v1937 = vsub.s32 0, %v1936
        %v1938 = vrot.slane %v1933, %v1937
        %v1942 = vunpack.c.l.b16 %v1001
        %v1943 = vunpack.c.l.b16 %v1002
        %v1944 = vpack.c.b16 %v1943, %v1942
        %v1949 = vunpack.c.l.b16 %v1929
        %v1950 = vunpack.c.l.b16 %v1930
        %v1951 = vunpack.c.l.b16 %v1931
        %v1952 = vunpack.c.l.b16 %v1932
        %v1953 = vpack.c.b16 %v1950, %v1949
        %v1954 = vpack.c.b16 %v1952, %v1951
        %v1958 = vsel %vm1027, %v1944, 0
        %1960 = vmatprep.subr.bf16.mxu0 0
        %1961 = vmatpush1.bf16.msra.mxu0 %v1953
        %1962 = vmatprep.subr.bf16.mxu0 0
        %1963 = vmatpush1.bf16.msra.mxu0 %v1954
        %1964 = vmatprep.subr.bf16.mxu0 0
        %1965 = vmatpush1.bf16.msra.mxu0 0
        %1966 = vmatprep.subr.bf16.mxu0 0
        %1967 = vmatpush1.bf16.msra.mxu0 0
        %1968 = vmatprep.subr.bf16.mxu0 0
        %1969 = vmatpush1.bf16.msra.mxu0 0
        %1970 = vmatprep.subr.bf16.mxu0 0
        %1971 = vmatpush1.bf16.msra.mxu0 0
        %1972 = vmatprep.subr.bf16.mxu0 0
        %1973 = vmatpush1.bf16.msra.mxu0 0
        %1974 = vmatprep.subr.bf16.mxu0 0
        %1975 = vmatpush1.bf16.msra.mxu0 0
        %1976 = vmatprep.subr.bf16.mxu0 0
        %1977 = vmatpush1.bf16.msra.mxu0 0
        %1978 = vmatprep.subr.bf16.mxu0 0
        %1979 = vmatpush1.bf16.msra.mxu0 0
        %1980 = vmatprep.subr.bf16.mxu0 0
        %1981 = vmatpush1.bf16.msra.mxu0 0
        %1982 = vmatprep.subr.bf16.mxu0 0
        %1983 = vmatpush1.bf16.msra.mxu0 0
        %1984 = vmatprep.subr.bf16.mxu0 0
        %1985 = vmatpush1.bf16.msra.mxu0 0
        %1986 = vmatprep.subr.bf16.mxu0 0
        %1987 = vmatpush1.bf16.msra.mxu0 0
        %1988 = vmatprep.subr.bf16.mxu0 0
        %1989 = vmatpush1.bf16.msra.mxu0 0
        %1990 = vmatprep.subr.bf16.mxu0 0
        %1991 = vmatpush1.bf16.msra.mxu0 0
        %1992 = vmatprep.mubr.bf16.mxu0 0
        %1993 = vmatmul.mubr.bf16.gmra.mrb[0].mxu0 %v1958
        %v1994 = vpop.f32.mrb[0].mxu0
        %v1995 = vadd.f32 %v1938, %v1994
        %v1996 = vpop.f32.mrb[0].mxu0
        %v1997 = vpop.f32.mrb[0].mxu0
        %v1998 = vadd.f32 %v1938, %v1997
        %v1999 = vpop.f32.mrb[0].mxu0
        %2000 = vdwg.mxu0
        %2001 = vxpose.xlu0.b32.start [1/16] %v1995, 128
        %2002 = vxpose.xlu0.b32.cont [2/16] %v1998, 128
        %2003 = vxpose.xlu0.b32.cont [3/16] 0.0, 128
        %2004 = vxpose.xlu0.b32.cont [4/16] 0.0, 128
        %2005 = vxpose.xlu0.b32.cont [5/16] 0.0, 128
        %2006 = vxpose.xlu0.b32.cont [6/16] 0.0, 128
        %2007 = vxpose.xlu0.b32.cont [7/16] 0.0, 128
        %2008 = vxpose.xlu0.b32.cont [8/16] 0.0, 128
        %2009 = vxpose.xlu0.b32.cont [9/16] 0.0, 128
        %2010 = vxpose.xlu0.b32.cont [10/16] 0.0, 128
        %2011 = vxpose.xlu0.b32.cont [11/16] 0.0, 128
        %2012 = vxpose.xlu0.b32.cont [12/16] 0.0, 128
        %2013 = vxpose.xlu0.b32.cont [13/16] 0.0, 128
        %2014 = vxpose.xlu0.b32.cont [14/16] 0.0, 128
        %2015 = vxpose.xlu0.b32.cont [15/16] 0.0, 128
        %2016 = vxpose.xlu0.b32.end [16/16] 0.0, 128
        %v2017 = vpop.trf.xlu0
        %v2018 = vpop.trf.xlu0
        %v2019 = vpop.trf.xlu0
        %v2020 = vpop.trf.xlu0
        %v2021 = vpop.trf.xlu0
        %v2022 = vpop.trf.xlu0
        %v2023 = vpop.trf.xlu0
        %v2024 = vpop.trf.xlu0
        %v2025 = vpop.trf.xlu0
        %v2026 = vpop.trf.xlu0
        %v2027 = vpop.trf.xlu0
        %v2028 = vpop.trf.xlu0
        %v2029 = vpop.trf.xlu0
        %v2030 = vpop.trf.xlu0
        %v2031 = vpop.trf.xlu0
        %v2032 = vpop.trf.xlu0
        %v2033 = vpack.c.bf16 %v1928, %v1928
        %v2034 = vpack.c.bf16 %v2017, %v2017
        %v2036 = vsel %vm1172, %v2033, 0
        %v2039 = vsel %vm1176, %v2034, 0
        %2041 = vmatprep.subr.bf16.mxu0 0
        %2042 = vmatpush1.bf16.msra.mxu0 %v2039
        %2043 = vmatprep.subr.bf16.mxu0 0
        %2044 = vmatpush1.bf16.msra.mxu0 0
        %2045 = vmatprep.subr.bf16.mxu0 0
        %2046 = vmatpush1.bf16.msra.mxu0 0
        %2047 = vmatprep.subr.bf16.mxu0 0
        %2048 = vmatpush1.bf16.msra.mxu0 0
        %2049 = vmatprep.subr.bf16.mxu0 0
        %2050 = vmatpush1.bf16.msra.mxu0 0
        %2051 = vmatprep.subr.bf16.mxu0 0
        %2052 = vmatpush1.bf16.msra.mxu0 0
        %2053 = vmatprep.subr.bf16.mxu0 0
        %2054 = vmatpush1.bf16.msra.mxu0 0
        %2055 = vmatprep.subr.bf16.mxu0 0
        %2056 = vmatpush1.bf16.msra.mxu0 0
        %2057 = vmatprep.subr.bf16.mxu0 0
        %2058 = vmatpush1.bf16.msra.mxu0 0
        %2059 = vmatprep.subr.bf16.mxu0 0
        %2060 = vmatpush1.bf16.msra.mxu0 0
        %2061 = vmatprep.subr.bf16.mxu0 0
        %2062 = vmatpush1.bf16.msra.mxu0 0
        %2063 = vmatprep.subr.bf16.mxu0 0
        %2064 = vmatpush1.bf16.msra.mxu0 0
        %2065 = vmatprep.subr.bf16.mxu0 0
        %2066 = vmatpush1.bf16.msra.mxu0 0
        %2067 = vmatprep.subr.bf16.mxu0 0
        %2068 = vmatpush1.bf16.msra.mxu0 0
        %2069 = vmatprep.subr.bf16.mxu0 0
        %2070 = vmatpush1.bf16.msra.mxu0 0
        %2071 = vmatprep.subr.bf16.mxu0 0
        %2072 = vmatpush1.bf16.msra.mxu0 0
        %2073 = vmatprep.mubr.bf16.mxu0 0
        %2074 = vmatmul.mubr.bf16.gmra.mrb[0].mxu0 %v2036
        %v2075 = vpop.f32.mrb[0].mxu0
        %v2076 = vadd.f32 0.0, %v2075
        %v2077 = vpop.f32.mrb[0].mxu0
        %v2078 = vpop.f32.mrb[0].mxu0
        %v2079 = vpop.f32.mrb[0].mxu0
        %2080 = vdwg.mxu0
        %vm2081 = vcmask 130048
        %v2082 = vsel %vm2081, %v2076, -inf
        %2083 = vmax.xlane.f32.xlu0 %v2082
        %v2084 = vpop.xlane.xlu0 %2083
        %v2085 = vsub.f32 %v2076, %v2084
        %v2086 = vmul.f32 %v2085, 1.442695
        %v2087 = vpow.pop %v2086
        %v2088 = vsel %vm2081, %v2087, 0.0
        %2089 = vadd.xlane.f32.xlu0 %v2088
        %v2090 = vpop.xlane.xlu0 %2089
        %v2091 = vrcp.pop %v2090
        %v2092 = vmul.f32 %v2090, %v2091
        %v2093 = vsub.f32 2.0, %v2092
        %v2094 = vmul.f32 %v2091, %v2093
        %v2095 = vmul.f32 %v2087, %v2094
        %v2096 = vpack.c.bf16 %v2095, %v2095
        %v2097 = vpack.c.bf16 %v1998, %v1995
        %2099 = vrot.lane.b32.xlu0 %v2097, 96
        %v2100 = vpop.permute.xlu0 %2099
        %v2103 = vsel %vm2081, %v2096, 0
        %2105 = vmatprep.subr.bf16.mxu0 0
        %2106 = vmatpush1.bf16.msra.mxu0 %v2100
        %2107 = vmatprep.subr.bf16.mxu0 0
        %2108 = vmatpush1.bf16.msra.mxu0 0
        %2109 = vmatprep.subr.bf16.mxu0 0
        %2110 = vmatpush1.bf16.msra.mxu0 0
        %2111 = vmatprep.subr.bf16.mxu0 0
        %2112 = vmatpush1.bf16.msra.mxu0 0
        %2113 = vmatprep.subr.bf16.mxu0 0
        %2114 = vmatpush1.bf16.msra.mxu0 0
        %2115 = vmatprep.subr.bf16.mxu0 0
        %2116 = vmatpush1.bf16.msra.mxu0 0
        %2117 = vmatprep.subr.bf16.mxu0 0
        %2118 = vmatpush1.bf16.msra.mxu0 0
        %2119 = vmatprep.subr.bf16.mxu0 0
        %2120 = vmatpush1.bf16.msra.mxu0 0
        %2121 = vmatprep.subr.bf16.mxu0 0
        %2122 = vmatpush1.bf16.msra.mxu0 0
        %2123 = vmatprep.subr.bf16.mxu0 0
        %2124 = vmatpush1.bf16.msra.mxu0 0
        %2125 = vmatprep.subr.bf16.mxu0 0
        %2126 = vmatpush1.bf16.msra.mxu0 0
        %2127 = vmatprep.subr.bf16.mxu0 0
        %2128 = vmatpush1.bf16.msra.mxu0 0
        %2129 = vmatprep.subr.bf16.mxu0 0
        %2130 = vmatpush1.bf16.msra.mxu0 0
        %2131 = vmatprep.subr.bf16.mxu0 0
        %2132 = vmatpush1.bf16.msra.mxu0 0
        %2133 = vmatprep.subr.bf16.mxu0 0
        %2134 = vmatpush1.bf16.msra.mxu0 0
        %2135 = vmatprep.subr.bf16.mxu0 0
        %2136 = vmatpush1.bf16.msra.mxu0 0
        %2137 = vmatprep.mubr.bf16.mxu0 0
        %2138 = vmatmul.mubr.bf16.gmra.mrb[0].mxu0 %v2103
        %v2139 = vpop.f32.mrb[0].mxu0
        %v2140 = vadd.f32 0.0, %v2139
        %v2141 = vpop.f32.mrb[0].mxu0
        %v2142 = vpop.f32.mrb[0].mxu0
        %v2143 = vpop.f32.mrb[0].mxu0
        %2144 = vdwg.mxu0
        %v2145 = vpack.c.bf16 %v2140, %v2140
        %v2146 = vld [vmem:[#allocation19] sm:$0xf]
        %v2147 = vpack.c.bf16 %v2018, %v2018
        %2149 = vrot.lane.b32.xlu0 %v2033, 120
        %v2150 = vpop.permute.xlu0 %2149
        %v2152 = vsel %vm1172, %v2150, 0
        %v2155 = vsel %vm1176, %v2147, 0
        %2157 = vmatprep.subr.bf16.mxu0 0
        %2158 = vmatpush1.bf16.msra.mxu0 %v2155
        %2159 = vmatprep.subr.bf16.mxu0 0
        %2160 = vmatpush1.bf16.msra.mxu0 0
        %2161 = vmatprep.subr.bf16.mxu0 0
        %2162 = vmatpush1.bf16.msra.mxu0 0
        %2163 = vmatprep.subr.bf16.mxu0 0
        %2164 = vmatpush1.bf16.msra.mxu0 0
        %2165 = vmatprep.subr.bf16.mxu0 0
        %2166 = vmatpush1.bf16.msra.mxu0 0
        %2167 = vmatprep.subr.bf16.mxu0 0
        %2168 = vmatpush1.bf16.msra.mxu0 0
        %2169 = vmatprep.subr.bf16.mxu0 0
        %2170 = vmatpush1.bf16.msra.mxu0 0
        %2171 = vmatprep.subr.bf16.mxu0 0
        %2172 = vmatpush1.bf16.msra.mxu0 0
        %2173 = vmatprep.subr.bf16.mxu0 0
        %2174 = vmatpush1.bf16.msra.mxu0 0
        %2175 = vmatprep.subr.bf16.mxu0 0
        %2176 = vmatpush1.bf16.msra.mxu0 0
        %2177 = vmatprep.subr.bf16.mxu0 0
        %2178 = vmatpush1.bf16.msra.mxu0 0
        %2179 = vmatprep.subr.bf16.mxu0 0
        %2180 = vmatpush1.bf16.msra.mxu0 0
        %2181 = vmatprep.subr.bf16.mxu0 0
        %2182 = vmatpush1.bf16.msra.mxu0 0
        %2183 = vmatprep.subr.bf16.mxu0 0
        %2184 = vmatpush1.bf16.msra.mxu0 0
        %2185 = vmatprep.subr.bf16.mxu0 0
        %2186 = vmatpush1.bf16.msra.mxu0 0
        %2187 = vmatprep.subr.bf16.mxu0 0
        %2188 = vmatpush1.bf16.msra.mxu0 0
        %2189 = vmatprep.mubr.bf16.mxu0 0
        %2190 = vmatmul.mubr.bf16.gmra.mrb[0].mxu0 %v2152
        %v2191 = vpop.f32.mrb[0].mxu0
        %v2192 = vadd.f32 0.0, %v2191
        %v2193 = vpop.f32.mrb[0].mxu0
        %v2194 = vpop.f32.mrb[0].mxu0
        %v2195 = vpop.f32.mrb[0].mxu0
        %2196 = vdwg.mxu0
        %v2197 = vsel %vm2081, %v2192, -inf
        %2198 = vmax.xlane.f32.xlu0 %v2197
        %v2199 = vpop.xlane.xlu0 %2198
        %v2200 = vsub.f32 %v2192, %v2199
        %v2201 = vmul.f32 %v2200, 1.442695
        %v2202 = vpow.pop %v2201
        %v2203 = vsel %vm2081, %v2202, 0.0
        %2204 = vadd.xlane.f32.xlu0 %v2203
        %v2205 = vpop.xlane.xlu0 %2204
        %v2206 = vrcp.pop %v2205
        %v2207 = vmul.f32 %v2205, %v2206
        %v2208 = vsub.f32 2.0, %v2207
        %v2209 = vmul.f32 %v2206, %v2208
        %v2210 = vmul.f32 %v2202, %v2209
        %v2211 = vpack.c.bf16 %v2210, %v2210
        %2212 = vrot.lane.b32.xlu0 %v2097, 88
        %v2213 = vpop.permute.xlu0 %2212
        %v2216 = vsel %vm2081, %v2211, 0
        %2218 = vmatprep.subr.bf16.mxu0 0
        %2219 = vmatpush1.bf16.msra.mxu0 %v2213
        %2220 = vmatprep.subr.bf16.mxu0 0
        %2221 = vmatpush1.bf16.msra.mxu0 0
        %2222 = vmatprep.subr.bf16.mxu0 0
        %2223 = vmatpush1.bf16.msra.mxu0 0
        %2224 = vmatprep.subr.bf16.mxu0 0
        %2225 = vmatpush1.bf16.msra.mxu0 0
        %2226 = vmatprep.subr.bf16.mxu0 0
        %2227 = vmatpush1.bf16.msra.mxu0 0
        %2228 = vmatprep.subr.bf16.mxu0 0
        %2229 = vmatpush1.bf16.msra.mxu0 0
        %2230 = vmatprep.subr.bf16.mxu0 0
        %2231 = vmatpush1.bf16.msra.mxu0 0
        %2232 = vmatprep.subr.bf16.mxu0 0
        %2233 = vmatpush1.bf16.msra.mxu0 0
        %2234 = vmatprep.subr.bf16.mxu0 0
        %2235 = vmatpush1.bf16.msra.mxu0 0
        %2236 = vmatprep.subr.bf16.mxu0 0
        %2237 = vmatpush1.bf16.msra.mxu0 0
        %2238 = vmatprep.subr.bf16.mxu0 0
        %2239 = vmatpush1.bf16.msra.mxu0 0
        %2240 = vmatprep.subr.bf16.mxu0 0
        %2241 = vmatpush1.bf16.msra.mxu0 0
        %2242 = vmatprep.subr.bf16.mxu0 0
        %2243 = vmatpush1.bf16.msra.mxu0 0
        %2244 = vmatprep.subr.bf16.mxu0 0
        %2245 = vmatpush1.bf16.msra.mxu0 0
        %2246 = vmatprep.subr.bf16.mxu0 0
        %2247 = vmatpush1.bf16.msra.mxu0 0
        %2248 = vmatprep.subr.bf16.mxu0 0
        %2249 = vmatpush1.bf16.msra.mxu0 0
        %2250 = vmatprep.mubr.bf16.mxu0 0
        %2251 = vmatmul.mubr.bf16.gmra.mrb[0].mxu0 %v2216
        %v2252 = vpop.f32.mrb[0].mxu0
        %v2253 = vadd.f32 0.0, %v2252
        %v2254 = vpop.f32.mrb[0].mxu0
        %v2255 = vpop.f32.mrb[0].mxu0
        %v2256 = vpop.f32.mrb[0].mxu0
        %2257 = vdwg.mxu0
        %v2258 = vpack.c.bf16 %v2253, %v2253
        %s2259 = scalar_lea.vmem [#allocation19], 4
        %v2260 = vld [vmem:[%s2259] sm:$0xf]
        %v2262 = vsel %vm1172, %v2258, 0
        %v2265 = vsel %vm1176, %v2260, 0
        %2267 = vmatprep.subr.bf16.mxu0 0
        %2268 = vmatpush1.bf16.msra.mxu0 %v2265
        %2269 = vmatprep.subr.bf16.mxu0 0
        %2270 = vmatpush1.bf16.msra.mxu0 0
        %2271 = vmatprep.subr.bf16.mxu0 0
        %2272 = vmatpush1.bf16.msra.mxu0 0
        %2273 = vmatprep.subr.bf16.mxu0 0
        %2274 = vmatpush1.bf16.msra.mxu0 0
        %2275 = vmatprep.subr.bf16.mxu0 0
        %2276 = vmatpush1.bf16.msra.mxu0 0
        %2277 = vmatprep.subr.bf16.mxu0 0
        %2278 = vmatpush1.bf16.msra.mxu0 0
        %2279 = vmatprep.subr.bf16.mxu0 0
        %2280 = vmatpush1.bf16.msra.mxu0 0
        %2281 = vmatprep.subr.bf16.mxu0 0
        %2282 = vmatpush1.bf16.msra.mxu0 0
        %2283 = vmatprep.subr.bf16.mxu0 0
        %2284 = vmatpush1.bf16.msra.mxu0 0
        %2285 = vmatprep.subr.bf16.mxu0 0
        %2286 = vmatpush1.bf16.msra.mxu0 0
        %2287 = vmatprep.subr.bf16.mxu0 0
        %2288 = vmatpush1.bf16.msra.mxu0 0
        %2289 = vmatprep.subr.bf16.mxu0 0
        %2290 = vmatpush1.bf16.msra.mxu0 0
        %2291 = vmatprep.subr.bf16.mxu0 0
        %2292 = vmatpush1.bf16.msra.mxu0 0
        %2293 = vmatprep.subr.bf16.mxu0 0
        %2294 = vmatpush1.bf16.msra.mxu0 0
        %2295 = vmatprep.subr.bf16.mxu0 0
        %2296 = vmatpush1.bf16.msra.mxu0 0
        %2297 = vmatprep.subr.bf16.mxu0 0
        %2298 = vmatpush1.bf16.msra.mxu0 0
        %2299 = vmatprep.mubr.bf16.mxu0 0
        %2300 = vmatmul.mubr.bf16.gmra.mrb[0].mxu0 %v2262
        %v2301 = vpop.f32.mrb[0].mxu0
        %v2302 = vadd.f32 0.0, %v2301
        %v2303 = vpop.f32.mrb[0].mxu0
        %v2304 = vpop.f32.mrb[0].mxu0
        %v2305 = vpop.f32.mrb[0].mxu0
        %2306 = vdwg.mxu0
        %v2308 = vsel %vm1172, %v2145, 0
        %v2311 = vsel %vm1176, %v2146, 0
        %2313 = vmatprep.subr.bf16.mxu0 0
        %2314 = vmatpush1.bf16.msra.mxu0 %v2311
        %2315 = vmatprep.subr.bf16.mxu0 0
        %2316 = vmatpush1.bf16.msra.mxu0 0
        %2317 = vmatprep.subr.bf16.mxu0 0
        %2318 = vmatpush1.bf16.msra.mxu0 0
        %2319 = vmatprep.subr.bf16.mxu0 0
        %2320 = vmatpush1.bf16.msra.mxu0 0
        %2321 = vmatprep.subr.bf16.mxu0 0
        %2322 = vmatpush1.bf16.msra.mxu0 0
        %2323 = vmatprep.subr.bf16.mxu0 0
        %2324 = vmatpush1.bf16.msra.mxu0 0
        %2325 = vmatprep.subr.bf16.mxu0 0
        %2326 = vmatpush1.bf16.msra.mxu0 0
        %2327 = vmatprep.subr.bf16.mxu0 0
        %2328 = vmatpush1.bf16.msra.mxu0 0
        %2329 = vmatprep.subr.bf16.mxu0 0
        %2330 = vmatpush1.bf16.msra.mxu0 0
        %2331 = vmatprep.subr.bf16.mxu0 0
        %2332 = vmatpush1.bf16.msra.mxu0 0
        %2333 = vmatprep.subr.bf16.mxu0 0
        %2334 = vmatpush1.bf16.msra.mxu0 0
        %2335 = vmatprep.subr.bf16.mxu0 0
        %2336 = vmatpush1.bf16.msra.mxu0 0
        %2337 = vmatprep.subr.bf16.mxu0 0
        %2338 = vmatpush1.bf16.msra.mxu0 0
        %2339 = vmatprep.subr.bf16.mxu0 0
        %2340 = vmatpush1.bf16.msra.mxu0 0
        %2341 = vmatprep.subr.bf16.mxu0 0
        %2342 = vmatpush1.bf16.msra.mxu0 0
        %2343 = vmatprep.subr.bf16.mxu0 0
        %2344 = vmatpush1.bf16.msra.mxu0 0
        %2345 = vmatprep.mubr.bf16.mxu0 0
        %2346 = vmatmul.mubr.bf16.gmra.mrb[0].mxu0 %v2308
        %v2347 = vpop.f32.mrb[0].mxu0
        %v2348 = vadd.f32 %v2302, %v2347
        %v2349 = vpop.f32.mrb[0].mxu0
        %v2350 = vpop.f32.mrb[0].mxu0
        %v2351 = vpop.f32.mrb[0].mxu0
        %2352 = vdwg.mxu0
        %v2353 = vpack.c.bf16 %v2019, %v2019
        %2354 = vrot.lane.b32.xlu0 %v2033, 112
        %v2355 = vpop.permute.xlu0 %2354
        %v2357 = vsel %vm1172, %v2355, 0
        %v2360 = vsel %vm1176, %v2353, 0
        %2362 = vmatprep.subr.bf16.mxu0 0
        %2363 = vmatpush1.bf16.msra.mxu0 %v2360
        %2364 = vmatprep.subr.bf16.mxu0 0
        %2365 = vmatpush1.bf16.msra.mxu0 0
        %2366 = vmatprep.subr.bf16.mxu0 0
        %2367 = vmatpush1.bf16.msra.mxu0 0
        %2368 = vmatprep.subr.bf16.mxu0 0
        %2369 = vmatpush1.bf16.msra.mxu0 0
        %2370 = vmatprep.subr.bf16.mxu0 0
        %2371 = vmatpush1.bf16.msra.mxu0 0
        %2372 = vmatprep.subr.bf16.mxu0 0
        %2373 = vmatpush1.bf16.msra.mxu0 0
        %2374 = vmatprep.subr.bf16.mxu0 0
        %2375 = vmatpush1.bf16.msra.mxu0 0
        %2376 = vmatprep.subr.bf16.mxu0 0
        %2377 = vmatpush1.bf16.msra.mxu0 0
        %2378 = vmatprep.subr.bf16.mxu0 0
        %2379 = vmatpush1.bf16.msra.mxu0 0
        %2380 = vmatprep.subr.bf16.mxu0 0
        %2381 = vmatpush1.bf16.msra.mxu0 0
        %2382 = vmatprep.subr.bf16.mxu0 0
        %2383 = vmatpush1.bf16.msra.mxu0 0
        %2384 = vmatprep.subr.bf16.mxu0 0
        %2385 = vmatpush1.bf16.msra.mxu0 0
        %2386 = vmatprep.subr.bf16.mxu0 0
        %2387 = vmatpush1.bf16.msra.mxu0 0
        %2388 = vmatprep.subr.bf16.mxu0 0
        %2389 = vmatpush1.bf16.msra.mxu0 0
        %2390 = vmatprep.subr.bf16.mxu0 0
        %2391 = vmatpush1.bf16.msra.mxu0 0
        %2392 = vmatprep.subr.bf16.mxu0 0
        %2393 = vmatpush1.bf16.msra.mxu0 0
        %2394 = vmatprep.mubr.bf16.mxu0 0
        %2395 = vmatmul.mubr.bf16.gmra.mrb[0].mxu0 %v2357
        %v2396 = vpop.f32.mrb[0].mxu0
        %v2397 = vadd.f32 0.0, %v2396
        %v2398 = vpop.f32.mrb[0].mxu0
        %v2399 = vpop.f32.mrb[0].mxu0
        %v2400 = vpop.f32.mrb[0].mxu0
        %2401 = vdwg.mxu0
        %v2402 = vsel %vm2081, %v2397, -inf
        %2403 = vmax.xlane.f32.xlu0 %v2402
        %v2404 = vpop.xlane.xlu0 %2403
        %v2405 = vsub.f32 %v2397, %v2404
        %v2406 = vmul.f32 %v2405, 1.442695
        %v2407 = vpow.pop %v2406
        %v2408 = vsel %vm2081, %v2407, 0.0
        %2409 = vadd.xlane.f32.xlu0 %v2408
        %v2410 = vpop.xlane.xlu0 %2409
        %v2411 = vrcp.pop %v2410
        %v2412 = vmul.f32 %v2410, %v2411
        %v2413 = vsub.f32 2.0, %v2412
        %v2414 = vmul.f32 %v2411, %v2413
        %v2415 = vmul.f32 %v2407, %v2414
        %v2416 = vpack.c.bf16 %v2415, %v2415
        %2417 = vrot.lane.b32.xlu0 %v2097, 80
        %v2418 = vpop.permute.xlu0 %2417
        %v2421 = vsel %vm2081, %v2416, 0
        %2423 = vmatprep.subr.bf16.mxu0 0
        %2424 = vmatpush1.bf16.msra.mxu0 %v2418
        %2425 = vmatprep.subr.bf16.mxu0 0
        %2426 = vmatpush1.bf16.msra.mxu0 0
        %2427 = vmatprep.subr.bf16.mxu0 0
        %2428 = vmatpush1.bf16.msra.mxu0 0
        %2429 = vmatprep.subr.bf16.mxu0 0
        %2430 = vmatpush1.bf16.msra.mxu0 0
        %2431 = vmatprep.subr.bf16.mxu0 0
        %2432 = vmatpush1.bf16.msra.mxu0 0
        %2433 = vmatprep.subr.bf16.mxu0 0
        %2434 = vmatpush1.bf16.msra.mxu0 0
        %2435 = vmatprep.subr.bf16.mxu0 0
        %2436 = vmatpush1.bf16.msra.mxu0 0
        %2437 = vmatprep.subr.bf16.mxu0 0
        %2438 = vmatpush1.bf16.msra.mxu0 0
        %2439 = vmatprep.subr.bf16.mxu0 0
        %2440 = vmatpush1.bf16.msra.mxu0 0
        %2441 = vmatprep.subr.bf16.mxu0 0
        %2442 = vmatpush1.bf16.msra.mxu0 0
        %2443 = vmatprep.subr.bf16.mxu0 0
        %2444 = vmatpush1.bf16.msra.mxu0 0
        %2445 = vmatprep.subr.bf16.mxu0 0
        %2446 = vmatpush1.bf16.msra.mxu0 0
        %2447 = vmatprep.subr.bf16.mxu0 0
        %2448 = vmatpush1.bf16.msra.mxu0 0
        %2449 = vmatprep.subr.bf16.mxu0 0
        %2450 = vmatpush1.bf16.msra.mxu0 0
        %2451 = vmatprep.subr.bf16.mxu0 0
        %2452 = vmatpush1.bf16.msra.mxu0 0
        %2453 = vmatprep.subr.bf16.mxu0 0
        %2454 = vmatpush1.bf16.msra.mxu0 0
        %2455 = vmatprep.mubr.bf16.mxu0 0
        %2456 = vmatmul.mubr.bf16.gmra.mrb[0].mxu0 %v2421
        %v2457 = vpop.f32.mrb[0].mxu0
        %v2458 = vadd.f32 0.0, %v2457
        %v2459 = vpop.f32.mrb[0].mxu0
        %v2460 = vpop.f32.mrb[0].mxu0
        %v2461 = vpop.f32.mrb[0].mxu0
        %2462 = vdwg.mxu0
        %v2463 = vpack.c.bf16 %v2458, %v2458
        %s2464 = scalar_lea.vmem [#allocation19], 8
        %v2465 = vld [vmem:[%s2464] sm:$0xf]
        %v2467 = vsel %vm1172, %v2463, 0
        %v2470 = vsel %vm1176, %v2465, 0
        %2472 = vmatprep.subr.bf16.mxu0 0
        %2473 = vmatpush1.bf16.msra.mxu0 %v2470
        %2474 = vmatprep.subr.bf16.mxu0 0
        %2475 = vmatpush1.bf16.msra.mxu0 0
        %2476 = vmatprep.subr.bf16.mxu0 0
        %2477 = vmatpush1.bf16.msra.mxu0 0
        %2478 = vmatprep.subr.bf16.mxu0 0
        %2479 = vmatpush1.bf16.msra.mxu0 0
        %2480 = vmatprep.subr.bf16.mxu0 0
        %2481 = vmatpush1.bf16.msra.mxu0 0
        %2482 = vmatprep.subr.bf16.mxu0 0
        %2483 = vmatpush1.bf16.msra.mxu0 0
        %2484 = vmatprep.subr.bf16.mxu0 0
        %2485 = vmatpush1.bf16.msra.mxu0 0
        %2486 = vmatprep.subr.bf16.mxu0 0
        %2487 = vmatpush1.bf16.msra.mxu0 0
        %2488 = vmatprep.subr.bf16.mxu0 0
        %2489 = vmatpush1.bf16.msra.mxu0 0
        %2490 = vmatprep.subr.bf16.mxu0 0
        %2491 = vmatpush1.bf16.msra.mxu0 0
        %2492 = vmatprep.subr.bf16.mxu0 0
        %2493 = vmatpush1.bf16.msra.mxu0 0
        %2494 = vmatprep.subr.bf16.mxu0 0
        %2495 = vmatpush1.bf16.msra.mxu0 0
        %2496 = vmatprep.subr.bf16.mxu0 0
        %2497 = vmatpush1.bf16.msra.mxu0 0
        %2498 = vmatprep.subr.bf16.mxu0 0
        %2499 = vmatpush1.bf16.msra.mxu0 0
        %2500 = vmatprep.subr.bf16.mxu0 0
        %2501 = vmatpush1.bf16.msra.mxu0 0
        %2502 = vmatprep.subr.bf16.mxu0 0
        %2503 = vmatpush1.bf16.msra.mxu0 0
        %2504 = vmatprep.mubr.bf16.mxu0 0
        %2505 = vmatmul.mubr.bf16.gmra.mrb[0].mxu0 %v2467
        %v2506 = vpop.f32.mrb[0].mxu0
        %v2507 = vadd.f32 0.0, %v2506
        %v2508 = vpop.f32.mrb[0].mxu0
        %v2509 = vpop.f32.mrb[0].mxu0
        %v2510 = vpop.f32.mrb[0].mxu0
        %2511 = vdwg.mxu0
        %v2512 = vadd.f32 %v2348, %v2507
        %v2513 = vpack.c.bf16 %v2020, %v2020
        %2514 = vrot.lane.b32.xlu0 %v2033, 104
        %v2515 = vpop.permute.xlu0 %2514
        %v2517 = vsel %vm1172, %v2515, 0
        %v2520 = vsel %vm1176, %v2513, 0
        %2522 = vmatprep.subr.bf16.mxu0 0
        %2523 = vmatpush1.bf16.msra.mxu0 %v2520
        %2524 = vmatprep.subr.bf16.mxu0 0
        %2525 = vmatpush1.bf16.msra.mxu0 0
        %2526 = vmatprep.subr.bf16.mxu0 0
        %2527 = vmatpush1.bf16.msra.mxu0 0
        %2528 = vmatprep.subr.bf16.mxu0 0
        %2529 = vmatpush1.bf16.msra.mxu0 0
        %2530 = vmatprep.subr.bf16.mxu0 0
        %2531 = vmatpush1.bf16.msra.mxu0 0
        %2532 = vmatprep.subr.bf16.mxu0 0
        %2533 = vmatpush1.bf16.msra.mxu0 0
        %2534 = vmatprep.subr.bf16.mxu0 0
        %2535 = vmatpush1.bf16.msra.mxu0 0
        %2536 = vmatprep.subr.bf16.mxu0 0
        %2537 = vmatpush1.bf16.msra.mxu0 0
        %2538 = vmatprep.subr.bf16.mxu0 0
        %2539 = vmatpush1.bf16.msra.mxu0 0
        %2540 = vmatprep.subr.bf16.mxu0 0
        %2541 = vmatpush1.bf16.msra.mxu0 0
        %2542 = vmatprep.subr.bf16.mxu0 0
        %2543 = vmatpush1.bf16.msra.mxu0 0
        %2544 = vmatprep.subr.bf16.mxu0 0
        %2545 = vmatpush1.bf16.msra.mxu0 0
        %2546 = vmatprep.subr.bf16.mxu0 0
        %2547 = vmatpush1.bf16.msra.mxu0 0
        %2548 = vmatprep.subr.bf16.mxu0 0
        %2549 = vmatpush1.bf16.msra.mxu0 0
        %2550 = vmatprep.subr.bf16.mxu0 0
        %2551 = vmatpush1.bf16.msra.mxu0 0
        %2552 = vmatprep.subr.bf16.mxu0 0
        %2553 = vmatpush1.bf16.msra.mxu0 0
        %2554 = vmatprep.mubr.bf16.mxu0 0
        %2555 = vmatmul.mubr.bf16.gmra.mrb[0].mxu0 %v2517
        %v2556 = vpop.f32.mrb[0].mxu0
        %v2557 = vadd.f32 0.0, %v2556
        %v2558 = vpop.f32.mrb[0].mxu0
        %v2559 = vpop.f32.mrb[0].mxu0
        %v2560 = vpop.f32.mrb[0].mxu0
        %2561 = vdwg.mxu0
        %v2562 = vsel %vm2081, %v2557, -inf
        %2563 = vmax.xlane.f32.xlu0 %v2562
        %v2564 = vpop.xlane.xlu0 %2563
        %v2565 = vsub.f32 %v2557, %v2564
        %v2566 = vmul.f32 %v2565, 1.442695
        %v2567 = vpow.pop %v2566
        %v2568 = vsel %vm2081, %v2567, 0.0
        %2569 = vadd.xlane.f32.xlu0 %v2568
        %v2570 = vpop.xlane.xlu0 %2569
        %v2571 = vrcp.pop %v2570
        %v2572 = vmul.f32 %v2570, %v2571
        %v2573 = vsub.f32 2.0, %v2572
        %v2574 = vmul.f32 %v2571, %v2573
        %v2575 = vmul.f32 %v2567, %v2574
        %v2576 = vpack.c.bf16 %v2575, %v2575
        %2577 = vrot.lane.b32.xlu0 %v2097, 72
        %v2578 = vpop.permute.xlu0 %2577
        %v2581 = vsel %vm2081, %v2576, 0
        %2583 = vmatprep.subr.bf16.mxu0 0
        %2584 = vmatpush1.bf16.msra.mxu0 %v2578
        %2585 = vmatprep.subr.bf16.mxu0 0
        %2586 = vmatpush1.bf16.msra.mxu0 0
        %2587 = vmatprep.subr.bf16.mxu0 0
        %2588 = vmatpush1.bf16.msra.mxu0 0
        %2589 = vmatprep.subr.bf16.mxu0 0
        %2590 = vmatpush1.bf16.msra.mxu0 0
        %2591 = vmatprep.subr.bf16.mxu0 0
        %2592 = vmatpush1.bf16.msra.mxu0 0
        %2593 = vmatprep.subr.bf16.mxu0 0
        %2594 = vmatpush1.bf16.msra.mxu0 0
        %2595 = vmatprep.subr.bf16.mxu0 0
        %2596 = vmatpush1.bf16.msra.mxu0 0
        %2597 = vmatprep.subr.bf16.mxu0 0
        %2598 = vmatpush1.bf16.msra.mxu0 0
        %2599 = vmatprep.subr.bf16.mxu0 0
        %2600 = vmatpush1.bf16.msra.mxu0 0
        %2601 = vmatprep.subr.bf16.mxu0 0
        %2602 = vmatpush1.bf16.msra.mxu0 0
        %2603 = vmatprep.subr.bf16.mxu0 0
        %2604 = vmatpush1.bf16.msra.mxu0 0
        %2605 = vmatprep.subr.bf16.mxu0 0
        %2606 = vmatpush1.bf16.msra.mxu0 0
        %2607 = vmatprep.subr.bf16.mxu0 0
        %2608 = vmatpush1.bf16.msra.mxu0 0
        %2609 = vmatprep.subr.bf16.mxu0 0
        %2610 = vmatpush1.bf16.msra.mxu0 0
        %2611 = vmatprep.subr.bf16.mxu0 0
        %2612 = vmatpush1.bf16.msra.mxu0 0
        %2613 = vmatprep.subr.bf16.mxu0 0
        %2614 = vmatpush1.bf16.msra.mxu0 0
        %2615 = vmatprep.mubr.bf16.mxu0 0
        %2616 = vmatmul.mubr.bf16.gmra.mrb[0].mxu0 %v2581
        %v2617 = vpop.f32.mrb[0].mxu0
        %v2618 = vadd.f32 0.0, %v2617
        %v2619 = vpop.f32.mrb[0].mxu0
        %v2620 = vpop.f32.mrb[0].mxu0
        %v2621 = vpop.f32.mrb[0].mxu0
        %2622 = vdwg.mxu0
        %v2623 = vpack.c.bf16 %v2618, %v2618
        %s2624 = scalar_lea.vmem [#allocation19], 12
        %v2625 = vld [vmem:[%s2624] sm:$0xf]
        %v2627 = vsel %vm1172, %v2623, 0
        %v2630 = vsel %vm1176, %v2625, 0
        %2632 = vmatprep.subr.bf16.mxu0 0
        %2633 = vmatpush1.bf16.msra.mxu0 %v2630
        %2634 = vmatprep.subr.bf16.mxu0 0
        %2635 = vmatpush1.bf16.msra.mxu0 0
        %2636 = vmatprep.subr.bf16.mxu0 0
        %2637 = vmatpush1.bf16.msra.mxu0 0
        %2638 = vmatprep.subr.bf16.mxu0 0
        %2639 = vmatpush1.bf16.msra.mxu0 0
        %2640 = vmatprep.subr.bf16.mxu0 0
        %2641 = vmatpush1.bf16.msra.mxu0 0
        %2642 = vmatprep.subr.bf16.mxu0 0
        %2643 = vmatpush1.bf16.msra.mxu0 0
        %2644 = vmatprep.subr.bf16.mxu0 0
        %2645 = vmatpush1.bf16.msra.mxu0 0
        %2646 = vmatprep.subr.bf16.mxu0 0
        %2647 = vmatpush1.bf16.msra.mxu0 0
        %2648 = vmatprep.subr.bf16.mxu0 0
        %2649 = vmatpush1.bf16.msra.mxu0 0
        %2650 = vmatprep.subr.bf16.mxu0 0
        %2651 = vmatpush1.bf16.msra.mxu0 0
        %2652 = vmatprep.subr.bf16.mxu0 0
        %2653 = vmatpush1.bf16.msra.mxu0 0
        %2654 = vmatprep.subr.bf16.mxu0 0
        %2655 = vmatpush1.bf16.msra.mxu0 0
        %2656 = vmatprep.subr.bf16.mxu0 0
        %2657 = vmatpush1.bf16.msra.mxu0 0
        %2658 = vmatprep.subr.bf16.mxu0 0
        %2659 = vmatpush1.bf16.msra.mxu0 0
        %2660 = vmatprep.subr.bf16.mxu0 0
        %2661 = vmatpush1.bf16.msra.mxu0 0
        %2662 = vmatprep.subr.bf16.mxu0 0
        %2663 = vmatpush1.bf16.msra.mxu0 0
        %2664 = vmatprep.mubr.bf16.mxu0 0
        %2665 = vmatmul.mubr.bf16.gmra.mrb[0].mxu0 %v2627
        %v2666 = vpop.f32.mrb[0].mxu0
        %v2667 = vadd.f32 0.0, %v2666
        %v2668 = vpop.f32.mrb[0].mxu0
        %v2669 = vpop.f32.mrb[0].mxu0
        %v2670 = vpop.f32.mrb[0].mxu0
        %2671 = vdwg.mxu0
        %v2672 = vadd.f32 %v2512, %v2667
        %v2673 = vld [vmem:[#allocation20] sm:$0x1]
        %v2675 = vlaneseq
        %v2676 = vshrl.u32 %v2675, 7
        %v2677 = vsub.s32 0, %v2676
        %v2678 = vrot.slane %v2673, %v2677
        %v2680 = vadd.f32 %v2672, %v2678
        %v2681 = vadd.f32 %v2680, %v1860
        %v2682 = vld [vmem:[#allocation22] sm:$0x1]
        %v2683 = vld [vmem:[%s18] sm:$0x1]
        %v2684 = vsel %vm1027, %v2681, 0.0
        %2685 = vadd.xlane.f32.xlu0 %v2684
        %v2686 = vpop.xlane.xlu0 %2685
        %v2687 = vmul.f32 %v2686, %v1833
        %v2688 = vmul.f32 %v2681, %v2681
        %v2689 = vsel %vm1027, %v2688, 0.0
        %2690 = vadd.xlane.f32.xlu0 %v2689
        %v2691 = vpop.xlane.xlu0 %2690
        %v2692 = vmul.f32 %v2691, %v1833
        %v2693 = vmul.f32 %v2687, %v2687
        %v2694 = vsub.f32 %v2692, %v2693
        %v2695 = vmax.f32 %v2694, 0.0
        %v2696 = vsub.f32 %v2681, %v2687
        %v2697 = vadd.f32 %v2695, 1e-05
        %v2698 = vrsqrt.pop %v2697
        %v2699 = vmul.f32 %v2696, %v2698
        %v2701 = vlaneseq
        %v2702 = vshrl.u32 %v2701, 7
        %v2703 = vsub.s32 0, %v2702
        %v2704 = vrot.slane %v2682, %v2703
        %v2706 = vmul.f32 %v2699, %v2704
        %v2708 = vlaneseq
        %v2709 = vshrl.u32 %v2708, 7
        %v2710 = vsub.s32 0, %v2709
        %v2711 = vrot.slane %v2683, %v2710
        %v2713 = vadd.f32 %v2706, %v2711
        %v2714 = vpack.c.bf16 %v2713, %v2713
        %v2715 = vld [vmem:[%s19] sm:$0xf]
        %v2716 = vld [vmem:[%s19 + $0x4] sm:$0xf]
        %v2717 = vld [vmem:[%s19 + $0x8] sm:$0xf]
        %v2718 = vld [vmem:[%s19 + $0xc] sm:$0xf]
        %v2719 = vld [vmem:[%s20] sm:$0x1]
        %v2721 = vlaneseq
        %v2722 = vshrl.u32 %v2721, 7
        %v2723 = vsub.s32 0, %v2722
        %v2724 = vrot.slane %v2719, %v2723
        %v2730 = vunpack.c.l.b16 %v2715
        %v2731 = vunpack.c.l.b16 %v2716
        %v2732 = vunpack.c.l.b16 %v2717
        %v2733 = vunpack.c.l.b16 %v2718
        %v2734 = vpack.c.b16 %v2731, %v2730
        %v2735 = vpack.c.b16 %v2733, %v2732
        %v2739 = vsel %vm1027, %v2714, 0
        %2741 = vmatprep.subr.bf16.mxu0 0
        %2742 = vmatpush1.bf16.msra.mxu0 %v2734
        %2743 = vmatprep.subr.bf16.mxu0 0
        %2744 = vmatpush1.bf16.msra.mxu0 %v2735
        %2745 = vmatprep.subr.bf16.mxu0 0
        %2746 = vmatpush1.bf16.msra.mxu0 0
        %2747 = vmatprep.subr.bf16.mxu0 0
        %2748 = vmatpush1.bf16.msra.mxu0 0
        %2749 = vmatprep.subr.bf16.mxu0 0
        %2750 = vmatpush1.bf16.msra.mxu0 0
        %2751 = vmatprep.subr.bf16.mxu0 0
        %2752 = vmatpush1.bf16.msra.mxu0 0
        %2753 = vmatprep.subr.bf16.mxu0 0
        %2754 = vmatpush1.bf16.msra.mxu0 0
        %2755 = vmatprep.subr.bf16.mxu0 0
        %2756 = vmatpush1.bf16.msra.mxu0 0
        %2757 = vmatprep.subr.bf16.mxu0 0
        %2758 = vmatpush1.bf16.msra.mxu0 0
        %2759 = vmatprep.subr.bf16.mxu0 0
        %2760 = vmatpush1.bf16.msra.mxu0 0
        %2761 = vmatprep.subr.bf16.mxu0 0
        %2762 = vmatpush1.bf16.msra.mxu0 0
        %2763 = vmatprep.subr.bf16.mxu0 0
        %2764 = vmatpush1.bf16.msra.mxu0 0
        %2765 = vmatprep.subr.bf16.mxu0 0
        %2766 = vmatpush1.bf16.msra.mxu0 0
        %2767 = vmatprep.subr.bf16.mxu0 0
        %2768 = vmatpush1.bf16.msra.mxu0 0
        %2769 = vmatprep.subr.bf16.mxu0 0
        %2770 = vmatpush1.bf16.msra.mxu0 0
        %2771 = vmatprep.subr.bf16.mxu0 0
        %2772 = vmatpush1.bf16.msra.mxu0 0
        %2773 = vmatprep.mubr.bf16.mxu0 0
        %2774 = vmatmul.mubr.bf16.gmra.mrb[0].mxu0 %v2739
        %v2775 = vpop.f32.mrb[0].mxu0
        %v2776 = vadd.f32 %v2724, %v2775
        %v2777 = vpop.f32.mrb[0].mxu0
        %v2778 = vpop.f32.mrb[0].mxu0
        %v2779 = vpop.f32.mrb[0].mxu0
        %2780 = vdwg.mxu0
        %v2781 = vtanh.pop %v2776
        %v2782 = vpack.c.bf16 %v2781, %v2781
        %v2783 = vld [vmem:[%s21] sm:$0xf]
        %v2784 = vld [vmem:[%s21 + $0x4] sm:$0xf]
        %v2785 = vld [vmem:[%s21 + $0x8] sm:$0xf]
        %v2786 = vld [vmem:[%s21 + $0xc] sm:$0xf]
        %v2787 = vld [vmem:[%s21 + $0x10] sm:$0xf]
        %v2788 = vld [vmem:[%s21 + $0x14] sm:$0xf]
        %v2789 = vld [vmem:[%s21 + $0x18] sm:$0xf]
        %v2790 = vld [vmem:[%s21 + $0x1c] sm:$0xf]
        %v2791 = vld [vmem:[%s22] sm:$0x1]
        %v2793 = vlaneseq
        %v2794 = vshrl.u32 %v2793, 7
        %v2795 = vsub.s32 0, %v2794
        %v2796 = vrot.slane %v2791, %v2795
        %v2806 = vunpack.c.l.b16 %v2783
        %v2807 = vunpack.c.l.b16 %v2784
        %v2808 = vunpack.c.l.b16 %v2785
        %v2809 = vunpack.c.l.b16 %v2786
        %v2810 = vunpack.c.l.b16 %v2787
        %v2811 = vunpack.c.l.b16 %v2788
        %v2812 = vunpack.c.l.b16 %v2789
        %v2813 = vunpack.c.l.b16 %v2790
        %v2814 = vpack.c.b16 %v2807, %v2806
        %v2815 = vpack.c.b16 %v2809, %v2808
        %v2816 = vpack.c.b16 %v2811, %v2810
        %v2817 = vpack.c.b16 %v2813, %v2812
        %vm2822 = vcmask 523264
        %v2824 = vsel %vm2822, %v2782, 0
        %2826 = vmatprep.subr.bf16.mxu0 0
        %2827 = vmatpush1.bf16.msra.mxu0 %v2814
        %2828 = vmatprep.subr.bf16.mxu0 0
        %2829 = vmatpush1.bf16.msra.mxu0 %v2815
        %2830 = vmatprep.subr.bf16.mxu0 0
        %2831 = vmatpush1.bf16.msra.mxu0 %v2816
        %2832 = vmatprep.subr.bf16.mxu0 0
        %2833 = vmatpush1.bf16.msra.mxu0 %v2817
        %2834 = vmatprep.subr.bf16.mxu0 0
        %2835 = vmatpush1.bf16.msra.mxu0 0
        %2836 = vmatprep.subr.bf16.mxu0 0
        %2837 = vmatpush1.bf16.msra.mxu0 0
        %2838 = vmatprep.subr.bf16.mxu0 0
        %2839 = vmatpush1.bf16.msra.mxu0 0
        %2840 = vmatprep.subr.bf16.mxu0 0
        %2841 = vmatpush1.bf16.msra.mxu0 0
        %2842 = vmatprep.subr.bf16.mxu0 0
        %2843 = vmatpush1.bf16.msra.mxu0 0
        %2844 = vmatprep.subr.bf16.mxu0 0
        %2845 = vmatpush1.bf16.msra.mxu0 0
        %2846 = vmatprep.subr.bf16.mxu0 0
        %2847 = vmatpush1.bf16.msra.mxu0 0
        %2848 = vmatprep.subr.bf16.mxu0 0
        %2849 = vmatpush1.bf16.msra.mxu0 0
        %2850 = vmatprep.subr.bf16.mxu0 0
        %2851 = vmatpush1.bf16.msra.mxu0 0
        %2852 = vmatprep.subr.bf16.mxu0 0
        %2853 = vmatpush1.bf16.msra.mxu0 0
        %2854 = vmatprep.subr.bf16.mxu0 0
        %2855 = vmatpush1.bf16.msra.mxu0 0
        %2856 = vmatprep.subr.bf16.mxu0 0
        %2857 = vmatpush1.bf16.msra.mxu0 0
        %2858 = vmatprep.mubr.bf16.mxu0 0
        %2859 = vmatmul.mubr.bf16.gmra.mrb[0].mxu0 %v2824
        %v2860 = vpop.f32.mrb[0].mxu0
        %v2861 = vadd.f32 %v2796, %v2860
        %v2862 = vpop.f32.mrb[0].mxu0
        %v2863 = vpop.f32.mrb[0].mxu0
        %v2864 = vpop.f32.mrb[0].mxu0
        %2865 = vdwg.mxu0
        %v2866 = vadd.f32 %v2861, %v2713
        %v2867 = vld [vmem:[%s23] sm:$0x1]
        %v2868 = vld [vmem:[%s24] sm:$0x1]
        %v2869 = vsel %vm1027, %v2866, 0.0
        %2870 = vadd.xlane.f32.xlu0 %v2869
        %v2871 = vpop.xlane.xlu0 %2870
        %v2872 = vmul.f32 %v2871, %v1833
        %v2873 = vmul.f32 %v2866, %v2866
        %v2874 = vsel %vm1027, %v2873, 0.0
        %2875 = vadd.xlane.f32.xlu0 %v2874
        %v2876 = vpop.xlane.xlu0 %2875
        %v2877 = vmul.f32 %v2876, %v1833
        %v2878 = vmul.f32 %v2872, %v2872
        %v2879 = vsub.f32 %v2877, %v2878
        %v2880 = vmax.f32 %v2879, 0.0
        %v2881 = vsub.f32 %v2866, %v2872
        %v2882 = vadd.f32 %v2880, 1e-05
        %v2883 = vrsqrt.pop %v2882
        %v2884 = vmul.f32 %v2881, %v2883
        %v2886 = vlaneseq
        %v2887 = vshrl.u32 %v2886, 7
        %v2888 = vsub.s32 0, %v2887
        %v2889 = vrot.slane %v2867, %v2888
        %v2891 = vmul.f32 %v2884, %v2889
        %v2893 = vlaneseq
        %v2894 = vshrl.u32 %v2893, 7
        %v2895 = vsub.s32 0, %v2894
        %v2896 = vrot.slane %v2868, %v2895
        %v2898 = vadd.f32 %v2891, %v2896
        %2899 = vst.msk [vmem:[%s985] sm:$0xff] %vm1027, %v2898
        %s2900 = sand.u32 %s612, 1
        %s2901 = scalar_lea.sflag [#allocation4], %s2900
        %s2902 = sand.u32 %s612, 1
        %s2903 = smul.addr %s2902, 8
        %s2904 = scalar_lea.vmem [#allocation23], %s2903
        // Predicated region
        $region173: #{tpu_custom_call.1} parent=119 // pred_check
          %p2905 = pneg %p622
        $region174: #{tpu_custom_call.1} parent=119 // pred_check_branch
          %2907 = sbr.rel (%p2905) target = $region176
        $region175: #{tpu_custom_call.1} parent=119 // pred_region
          %s2909 = ssub.s32 128, 128
          %2910 = vsyncadd %s2901, %s2909
          %s2911 = sadd.s32 %s53, %s52
          %s2912 = smul.addr %s2911, 128
          %s2913 = scalar_lea.hbm %s25, %s2912
          %s2915 = sshll.u32 %s2904, 4
          %s2916 = int_to_ptr.vmem [resolvable:$true] %s2915
          %2918 = dma.vmem_to_hbm [thread:$0]  %s2916, 128, %s2913, %s2901
        $region176: #{tpu_custom_call.1} parent=119 // pred_fallthru
          _
      $region120: #{tpu_custom_call.1} parent=5 // pred_fallthru
        _
      %p2919 = scmp.le.s32.totalorder 2, %s43
      // Predicated region
      $region177: #{tpu_custom_call.1} parent=5 // pred_check
        %p2920 = pneg %p2919
      $region178: #{tpu_custom_call.1} parent=5 // pred_check_branch
        %2922 = sbr.rel (%p2920) target = $region180
      $region179: #{tpu_custom_call.1} parent=5 // pred_region
        %s2923 = ssub.s32 %s43, 2
        // Predicated region
        $region181: #{tpu_custom_call.1} parent=179 // pred_check
          %p2924 = pneg %p628
        $region182: #{tpu_custom_call.1} parent=179 // pred_check_branch
          %2926 = sbr.rel (%p2924) target = $region184
        $region183: #{tpu_custom_call.1} parent=179 // pred_region
          %s2927 = sand.u32 %s613, 1
          %s2928 = scalar_lea.sflag [#allocation4], %s2927
          %s2929 = sand.u32 %s613, 1
          %s2930 = smul.addr %s2929, 8
          %s2931 = scalar_lea.vmem [#allocation23], %s2930
          %2932 = dma.done %s2928, 128
        $region184: #{tpu_custom_call.1} parent=179 // pred_fallthru
          _
      $region180: #{tpu_custom_call.1} parent=5 // pred_fallthru
        _
    $region6: #{tpu_custom_call.1} parent=1 // loop_footer
      %s47 = sadd.s32 1, %s43
    $region7: #{tpu_custom_call.1} parent=1 // loop_footer_branch
      %42 = sbr.rel target = $region3
    $region8: #{tpu_custom_call.1} parent=1 // loop_exit
      _
    %2933 = vsyncpa [#allocation3], 1
    %s2934 = scalar_lea.sflag [#allocation3], 1
    %2935 = vsyncpa %s2934, 1
    %2936 = vsyncpa [#allocation6], 1
    %2937 = vsyncpa [#allocation9], 1
    %2938 = vsyncpa [#allocation12], 1
    %2939 = vsyncpa [#allocation15], 1
    %2940 = vsyncpa [#allocation18], 1
    %2941 = vsyncpa [#allocation21], 1
    %2942 = vsyncpa [#allocation4], 1
    %s2943 = scalar_lea.sflag [#allocation4], 1
    %2944 = vsyncpa %s2943, 1

</llo_original>
